<compile_context>
chip_gen: v7x
topology: tpu7x:2x2x1
jax: 0.10.0
libtpu: 0.0.40
codegen_flags: <defaults>
</compile_context>

<pallas_src>
import math

import jax
import jax.numpy as jnp
import numpy as np
from jax.experimental import pallas as pl
from jax.experimental.pallas import tpu as pltpu

# ----------------------------- config ---------------------------------------
HIDDEN_SIZE = 32
NUM_HEADS = 4
HEAD_DIM = HIDDEN_SIZE // NUM_HEADS
BATCH = 2
SEQ = 8
MASK_VALUE = 10000.0


# ----------------------------- fused kernel ---------------------------------
def _make_fused_kernel(b, s, h, n):
    """Fused QKV-projection -> attention -> per-head dense kernel (gridless)."""
    hn = h // n
    g_qkv = 3 * n * b      # batch dim of the QKV projection matmul
    g_att = n * b          # batch dim of the per-(head, batch) attention

    def kernel(x_ref, wqkv_ref, bqkv_ref, wd_ref, bd_ref, m_ref, o_ref):
        # x_ref:    [b, s, h]
        # wqkv_ref: [3*n*b, h, hn]  pre-stacked per (chunk, head, batch);
        #                           1/sqrt(hn) already folded into the Q heads
        # bqkv_ref: [3*n*b, 1, hn]
        # wd_ref:   [n*b, hn, h]    dense weight split per head (tiled over b)
        # bd_ref:   [1, 1, h]
        # m_ref:    [s, s]          multiplicative mask (1 = attend)
        # o_ref:    [b, s, h]
        x = x_ref[...]

        # Broadcast x along the (chunk, head) leading dim; all layout work is
        # on leading (untiled) dims only.
        xb = jnp.broadcast_to(x[None], (3 * n, b, s, h)).reshape(g_qkv, s, h)

        # Batched QKV projection: q/k/v come out with (head, batch) already as
        # the leading dim -- no transposes or lane slices needed afterwards.
        qkv = (
            jnp.einsum("gsh,ghd->gsd", xb, wqkv_ref[...],
                       preferred_element_type=jnp.float32)
            + bqkv_ref[...]
        )                                          # [3*n*b, s, hn]
        q = qkv[:g_att]                            # [n*b, s, hn], pre-scaled
        k = qkv[g_att:2 * g_att]
        v = qkv[2 * g_att:]

        # Scores for all (head, batch) pairs in one batched dot.
        scores = jnp.einsum("gqd,gkd->gqk", q, k,
                            preferred_element_type=jnp.float32)   # [n*b, s, s]

        # scores * m - MASK_VALUE * (1 - m); additive part computed once on a
        # single [s, s] vreg and broadcast over the leading dim.
        m = m_ref[...]
        scores = scores * m - (1.0 - m) * MASK_VALUE

        # ONE numerically stable softmax over the whole slab.
        scores = scores - jnp.max(scores, axis=-1, keepdims=True)
        p = jnp.exp(scores)
        p = p * pl.reciprocal(jnp.sum(p, axis=-1, keepdims=True), approx=False)

        # Attention-weighted values, then per-head dense contributions:
        #   ctx @ Wd == sum_head (p_h @ v_h) @ Wd[head*hn:(head+1)*hn, :]
        ctx = jnp.einsum("gqk,gkd->gqd", p, v,
                         preferred_element_type=jnp.float32)      # [n*b, s, hn]
        per_head = jnp.einsum("gqd,gdh->gqh", ctx, wd_ref[...],
                              preferred_element_type=jnp.float32) # [n*b, s, h]
        out = jnp.sum(per_head.reshape(n, b, s, h), axis=0) + bd_ref[...]
        o_ref[...] = out

    return kernel


# ----------------------------- params ---------------------------------------
def init_params(key, hidden_size=HIDDEN_SIZE):
    """Module parameters (weights stored as [in, out], i.e. torch W^T)."""
    k1, k2, k3, k4 = jax.random.split(key, 4)
    bound = 1.0 / math.sqrt(hidden_size)
    w_qkv = jax.random.uniform(
        k1, (hidden_size, 3 * hidden_size), jnp.float32, -bound, bound)
    b_qkv = jax.random.uniform(
        k2, (3 * hidden_size,), jnp.float32, -bound, bound)
    w_dense = jax.random.uniform(
        k3, (hidden_size, hidden_size), jnp.float32, -bound, bound)
    b_dense = jax.random.uniform(
        k4, (hidden_size,), jnp.float32, -bound, bound)
    return dict(w_qkv=w_qkv, b_qkv=b_qkv, w_dense=w_dense, b_dense=b_dense)


def prepare_kernel_params(params, ltor_mask, batch=BATCH,
                          hidden_size=HIDDEN_SIZE, num_heads=NUM_HEADS):
    """One-time prep for fixed (batch, seq, hidden, heads):
      * fold 1/sqrt(head_dim) into the Q chunk of w_qkv / b_qkv,
      * re-stack QKV weights per (chunk, head, batch) -> [3*n*b, h, hn] so the
        kernel's batched matmul directly emits per-head q/k/v (no in-kernel
        lane->sublane relayout),
      * split the dense weight per head (tiled over batch) -> [n*b, hn, h],
      * bake the static causal mask [s, s]."""
    h, n, b = hidden_size, num_heads, batch
    hn = h // n
    scale = 1.0 / math.sqrt(hn)

    w_qkv = params["w_qkv"].at[:, :h].multiply(scale)        # [h, 3h]
    b_qkv = params["b_qkv"].at[:h].multiply(scale)           # [3h]

    w4 = w_qkv.reshape(h, 3, n, hn).transpose(1, 2, 0, 3)    # [3, n, h, hn]
    w_qkv_g = jnp.broadcast_to(
        w4[:, :, None], (3, n, b, h, hn)).reshape(3 * n * b, h, hn)
    b4 = b_qkv.reshape(3, n, hn)
    b_qkv_g = jnp.broadcast_to(
        b4[:, :, None], (3, n, b, hn)).reshape(3 * n * b, 1, hn)

    wd4 = params["w_dense"].reshape(n, hn, h)                 # [n, hn, h]
    w_dense_g = jnp.broadcast_to(
        wd4[:, None], (n, b, hn, h)).reshape(n * b, hn, h)
    b_dense = params["b_dense"].reshape(1, 1, h)

    # ltor_mask is [1, 1, s, s] and identical across batch/heads (causal).
    m2d = ltor_mask[0, 0].astype(jnp.float32)                 # [s, s]

    return dict(w_qkv_g=w_qkv_g, b_qkv_g=b_qkv_g,
                w_dense_g=w_dense_g, b_dense=b_dense, mask=m2d)


# ----------------------------- forward wrapper -------------------------------
def dalle_self_attention(hidden_states, kparams):
    """Forward pass (use_cache=False, dropout = identity, cogview_pb_relax=False).
    The static causal ltor_mask is baked into kparams at prep time (no per-call
    wrapper-side HLO work)."""
    b, s, h = hidden_states.shape
    n = NUM_HEADS

    vmem_specs = [pl.BlockSpec(memory_space=pltpu.MemorySpace.VMEM)
                  for _ in range(6)]
    out = pl.pallas_call(
        _make_fused_kernel(b, s, h, n),
        out_shape=jax.ShapeDtypeStruct((b, s, h), jnp.float32),
        in_specs=vmem_specs,
        out_specs=pl.BlockSpec(memory_space=pltpu.MemorySpace.VMEM),
    )(
        hidden_states,
        kparams["w_qkv_g"],
        kparams["b_qkv_g"],
        kparams["w_dense_g"],
        kparams["b_dense"],
        kparams["mask"],
    )

    # TODO(synk): use_cache / KV-cache concatenation path not implemented
    # (inference with use_cache=False); attention/output dropout are identity
    # in eval mode; cogview_pb_relax branch not implemented (default False).
    cache = None
    return out, cache


# ----------------------------- pure-JAX reference -----------------------------
def _reference(hidden_states, ltor_mask, params):
    b, s, h = hidden_states.shape
    n, hn = NUM_HEADS, HEAD_DIM
    mixed = hidden_states.reshape(b * s, h) @ params["w_qkv"] + params["b_qkv"]
    mixed = mixed.reshape(b, s, 3, n, hn)
    q = jnp.transpose(mixed[:, :, 0], (0, 2, 1, 3))
    k = jnp.transpose(mixed[:, :, 1], (0, 2, 1, 3))
    v = jnp.transpose(mixed[:, :, 2], (0, 2, 1, 3))
    scores = jnp.einsum("bnqd,bnkd->bnqk", q, k) / math.sqrt(hn)
    m = ltor_mask[:, :, -s:, :]
    scores = scores * m - MASK_VALUE * (1.0 - m)
    probs = jax.nn.softmax(scores, axis=-1)
    ctx = jnp.einsum("bnqk,bnkd->bnqd", probs, v)
    ctx = jnp.transpose(ctx, (0, 2, 1, 3)).reshape(b * s, h)
    return (ctx @ params["w_dense"] + params["b_dense"]).reshape(b, s, h)


# ----------------------------- main ------------------------------------------
if __name__ == "__main__":
    key = jax.random.PRNGKey(0)
    k_param, k_x = jax.random.split(key)

    params = init_params(k_param)

    # causal (left-to-right) mask, [1, 1, s, s]
    ltor_mask = jnp.tril(jnp.ones((SEQ, SEQ), jnp.float32))[None, None]
    kparams = prepare_kernel_params(params, ltor_mask)

    x = jax.random.normal(k_x, (BATCH, SEQ, HIDDEN_SIZE), jnp.float32)

    out, cache = dalle_self_attention(x, kparams)
    out = jax.block_until_ready(out)

    ref = _reference(x, ltor_mask, params)
    np.testing.assert_allclose(np.asarray(out), np.asarray(ref),
                               atol=1e-4, rtol=1e-4)

    print("KERNEL_OK")
</pallas_src>

<mosaic_0001>
module attributes {stable_mosaic.version = 11 : i64} {
  func.func @kernel(%arg0: memref<2x8x32xf32, #tpu.memory_space<vmem>>, %arg1: memref<24x32x8xf32, #tpu.memory_space<vmem>>, %arg2: memref<24x1x8xf32, #tpu.memory_space<vmem>>, %arg3: memref<8x8x32xf32, #tpu.memory_space<vmem>>, %arg4: memref<1x1x32xf32, #tpu.memory_space<vmem>>, %arg5: memref<8x8xf32, #tpu.memory_space<vmem>>, %arg6: memref<2x8x32xf32, #tpu.memory_space<vmem>>) attributes {dimension_semantics = [], scalar_prefetch = 0 : i64, scratch_operands = 0 : i64, tpu.core_type = #tpu.core_type<tc>} {
    %c0 = arith.constant 0 : index
    %c0_0 = arith.constant 0 : index
    %c0_1 = arith.constant 0 : index
    %0 = vector.load %arg0[%c0, %c0_0, %c0_1] : memref<2x8x32xf32, #tpu.memory_space<vmem>>, vector<2x8x32xf32>
    %1 = vector.shape_cast %0 : vector<2x8x32xf32> to vector<1x2x8x32xf32>
    %2 = vector.shape_cast %1 : vector<1x2x8x32xf32> to vector<1x2x8x32xf32>
    %3 = vector.broadcast %2 : vector<1x2x8x32xf32> to vector<12x2x8x32xf32>
    %4 = vector.shape_cast %3 : vector<12x2x8x32xf32> to vector<24x8x32xf32>
    %c0_2 = arith.constant 0 : index
    %c0_3 = arith.constant 0 : index
    %c0_4 = arith.constant 0 : index
    %5 = vector.load %arg1[%c0_2, %c0_3, %c0_4] : memref<24x32x8xf32, #tpu.memory_space<vmem>>, vector<24x32x8xf32>
    "tpu.trace_start"() <{level = 10 : i32, message = "gsh,ghd->gsd"}> : () -> ()
    %cst = arith.constant dense<0.000000e+00> : vector<24x8x8xf32>
    %6 = tpu.matmul %4, %5, %cst {dimension_numbers = #tpu.dot_dimension_numbers<[2], [1], [1], [2], [0, 0, 0, 1, 1, 2], [0], [0]>} : vector<24x8x32xf32>, vector<24x32x8xf32>, vector<24x8x8xf32> -> vector<24x8x8xf32>
    "tpu.trace_stop"() : () -> ()
    %c0_5 = arith.constant 0 : index
    %c0_6 = arith.constant 0 : index
    %c0_7 = arith.constant 0 : index
    %7 = vector.load %arg2[%c0_5, %c0_6, %c0_7] : memref<24x1x8xf32, #tpu.memory_space<vmem>>, vector<24x1x8xf32>
    %8 = vector.broadcast %7 : vector<24x1x8xf32> to vector<24x8x8xf32>
    %9 = arith.addf %6, %8 : vector<24x8x8xf32>
    %10 = vector.extract_strided_slice %9 {offsets = [0, 0, 0], sizes = [8, 8, 8], strides = [1, 1, 1]} : vector<24x8x8xf32> to vector<8x8x8xf32>
    %11 = vector.extract_strided_slice %9 {offsets = [8, 0, 0], sizes = [8, 8, 8], strides = [1, 1, 1]} : vector<24x8x8xf32> to vector<8x8x8xf32>
    %12 = vector.extract_strided_slice %9 {offsets = [16, 0, 0], sizes = [8, 8, 8], strides = [1, 1, 1]} : vector<24x8x8xf32> to vector<8x8x8xf32>
    "tpu.trace_start"() <{level = 10 : i32, message = "gqd,gkd->gqk"}> : () -> ()
    %cst_8 = arith.constant dense<0.000000e+00> : vector<8x8x8xf32>
    %13 = tpu.matmul %10, %11, %cst_8 {dimension_numbers = #tpu.dot_dimension_numbers<[2], [2], [1], [1], [0, 0, 0, 1, 1, 1], [0], [0]>} : vector<8x8x8xf32>, vector<8x8x8xf32>, vector<8x8x8xf32> -> vector<8x8x8xf32>
    "tpu.trace_stop"() : () -> ()
    %c0_9 = arith.constant 0 : index
    %c0_10 = arith.constant 0 : index
    %14 = vector.load %arg5[%c0_9, %c0_10] : memref<8x8xf32, #tpu.memory_space<vmem>>, vector<8x8xf32>
    %15 = vector.shape_cast %14 : vector<8x8xf32> to vector<1x8x8xf32>
    %16 = vector.broadcast %15 : vector<1x8x8xf32> to vector<8x8x8xf32>
    %17 = arith.mulf %13, %16 : vector<8x8x8xf32>
    %cst_11 = arith.constant 1.000000e+00 : f32
    %18 = vector.broadcast %cst_11 : f32 to vector<8x8xf32>
    %19 = arith.subf %18, %14 : vector<8x8xf32>
    %cst_12 = arith.constant 1.000000e+04 : f32
    %20 = vector.broadcast %cst_12 : f32 to vector<8x8xf32>
    %21 = arith.mulf %19, %20 : vector<8x8xf32>
    %22 = vector.shape_cast %21 : vector<8x8xf32> to vector<1x8x8xf32>
    %23 = vector.broadcast %22 : vector<1x8x8xf32> to vector<8x8x8xf32>
    %24 = arith.subf %17, %23 : vector<8x8x8xf32>
    %cst_13 = arith.constant dense<0xFF800000> : vector<8x8xf32>
    %25 = vector.multi_reduction <maximumf>, %24, %cst_13 [2] : vector<8x8x8xf32> to vector<8x8xf32>
    %26 = vector.shape_cast %25 : vector<8x8xf32> to vector<8x8x1xf32>
    %27 = vector.broadcast %26 : vector<8x8x1xf32> to vector<8x8x8xf32>
    %28 = arith.subf %24, %27 : vector<8x8x8xf32>
    %29 = math.exp %28 : vector<8x8x8xf32>
    %cst_14 = arith.constant dense<0.000000e+00> : vector<8x8xf32>
    %30 = vector.multi_reduction <add>, %29, %cst_14 [2] : vector<8x8x8xf32> to vector<8x8xf32>
    %31 = vector.shape_cast %30 : vector<8x8xf32> to vector<8x8x1xf32>
    %32 = tpu.reciprocal %31 : vector<8x8x1xf32> -> vector<8x8x1xf32>
    %33 = vector.broadcast %32 : vector<8x8x1xf32> to vector<8x8x8xf32>
    %34 = arith.mulf %29, %33 : vector<8x8x8xf32>
    "tpu.trace_start"() <{level = 10 : i32, message = "gqk,gkd->gqd"}> : () -> ()
    %cst_15 = arith.constant dense<0.000000e+00> : vector<8x8x8xf32>
    %35 = tpu.matmul %34, %12, %cst_15 {dimension_numbers = #tpu.dot_dimension_numbers<[2], [1], [1], [2], [0, 0, 0, 1, 1, 2], [0], [0]>} : vector<8x8x8xf32>, vector<8x8x8xf32>, vector<8x8x8xf32> -> vector<8x8x8xf32>
    "tpu.trace_stop"() : () -> ()
    %c0_16 = arith.constant 0 : index
    %c0_17 = arith.constant 0 : index
    %c0_18 = arith.constant 0 : index
    %36 = vector.load %arg3[%c0_16, %c0_17, %c0_18] : memref<8x8x32xf32, #tpu.memory_space<vmem>>, vector<8x8x32xf32>
    "tpu.trace_start"() <{level = 10 : i32, message = "gqd,gdh->gqh"}> : () -> ()
    %cst_19 = arith.constant dense<0.000000e+00> : vector<8x8x32xf32>
    %37 = tpu.matmul %35, %36, %cst_19 {dimension_numbers = #tpu.dot_dimension_numbers<[2], [1], [1], [2], [0, 0, 0, 1, 1, 2], [0], [0]>} : vector<8x8x8xf32>, vector<8x8x32xf32>, vector<8x8x32xf32> -> vector<8x8x32xf32>
    "tpu.trace_stop"() : () -> ()
    %38 = vector.shape_cast %37 : vector<8x8x32xf32> to vector<4x2x8x32xf32>
    %cst_20 = arith.constant dense<0.000000e+00> : vector<2x8x32xf32>
    %39 = vector.multi_reduction <add>, %38, %cst_20 [0] : vector<4x2x8x32xf32> to vector<2x8x32xf32>
    %c0_21 = arith.constant 0 : index
    %c0_22 = arith.constant 0 : index
    %c0_23 = arith.constant 0 : index
    %40 = vector.load %arg4[%c0_21, %c0_22, %c0_23] : memref<1x1x32xf32, #tpu.memory_space<vmem>>, vector<1x1x32xf32>
    %41 = vector.broadcast %40 : vector<1x1x32xf32> to vector<2x8x32xf32>
    %42 = arith.addf %39, %41 : vector<2x8x32xf32>
    %c0_24 = arith.constant 0 : index
    %c0_25 = arith.constant 0 : index
    %c0_26 = arith.constant 0 : index
    %43 = vector.load %arg6[%c0_24, %c0_25, %c0_26] : memref<2x8x32xf32, #tpu.memory_space<vmem>>, vector<2x8x32xf32>
    tpu.vector_store %arg6[%c0_24, %c0_25, %c0_26], %42 {strides = array<i32>} : memref<2x8x32xf32, #tpu.memory_space<vmem>>, vector<2x8x32xf32>,
    return
  }
}

</mosaic_0001>

<llo_original>
// kernel: tpu_custom_call.1
$region0: #{tpu_custom_call.1}
  #allocation0 [shape = 'u32[]', space=smem, size = 0x4, offset = 0x4, fixed_abs, tag = 'smem constant byte address 0x4 - core index']
  #allocation1 [shape = 'u32[144,128]{1,0:T(1,128)}', space=vmem, size = 0x12000, scoped, tag = 'internal scratch']
  %s0 = inlined_call_operand.vmem [shape: f32[2,8,32], index: 0, kind: input, shape index: {}]
  %s1 = inlined_call_operand.vmem [shape: f32[24,32,8], index: 1, kind: input, shape index: {}]
  %s2 = inlined_call_operand.vmem [shape: f32[24,1,8], index: 2, kind: input, shape index: {}]
  %s3 = inlined_call_operand.vmem [shape: f32[8,8,32], index: 3, kind: input, shape index: {}]
  %s4 = inlined_call_operand.vmem [shape: f32[1,1,32], index: 4, kind: input, shape index: {}]
  %s5 = inlined_call_operand.vmem [shape: f32[8,8], index: 5, kind: input, shape index: {}]
  %s6 = inlined_call_operand.hbm [shape: f32[2,8,32], index: 6, kind: output, shape index: {}]
  %s7 = sld [smem:[#allocation0]]
  $region34: #{tpu_custom_call.1} parent=0
    _
  %s9 = ssub.s32 1, %s7
  %s10 = scalar_select 0, %s9, %s7
  $region1: #{tpu_custom_call.1} parent=0
    #allocation2 [shape = 'u8[8192]{0}', space=vmem, size = 0x2000, scoped, tag = 'output window, operand 0, single buffered']
    #allocation3 [shape = 's32[1]{0}', space=sflag, size = 0x4, scoped, tag = 'scoped memory for tpu_custom_call.1']
    %11 = vsyncpa [#allocation3], 0
    // Predicated region
    $region2: #{tpu_custom_call.1} parent=1 // pred_check
      _
    $region3: #{tpu_custom_call.1} parent=1 // pred_check_branch
      %13 = sbr.rel (0) target = $region5
    $region4: #{tpu_custom_call.1} parent=1 // pred_region
      _
    $region5: #{tpu_custom_call.1} parent=1 // pred_fallthru
      _
    // Predicated region
    $region6: #{tpu_custom_call.1} parent=1 // pred_check
      _
    $region7: #{tpu_custom_call.1} parent=1 // pred_check_branch
      %15 = sbr.rel (0) target = $region9
    $region8: #{tpu_custom_call.1} parent=1 // pred_region
      _
    $region9: #{tpu_custom_call.1} parent=1 // pred_fallthru
      _
    // Predicated region
    $region10: #{tpu_custom_call.1} parent=1 // pred_check
      _
    $region11: #{tpu_custom_call.1} parent=1 // pred_check_branch
      %17 = sbr.rel (0) target = $region13
    $region12: #{tpu_custom_call.1} parent=1 // pred_region
      _
    $region13: #{tpu_custom_call.1} parent=1 // pred_fallthru
      _
    // Predicated region
    $region14: #{tpu_custom_call.1} parent=1 // pred_check
      _
    $region15: #{tpu_custom_call.1} parent=1 // pred_check_branch
      %19 = sbr.rel (0) target = $region17
    $region16: #{tpu_custom_call.1} parent=1 // pred_region
      _
    $region17: #{tpu_custom_call.1} parent=1 // pred_fallthru
      _
    // Predicated region
    $region18: #{tpu_custom_call.1} parent=1 // pred_check
      _
    $region19: #{tpu_custom_call.1} parent=1 // pred_check_branch
      %21 = sbr.rel (0) target = $region21
    $region20: #{tpu_custom_call.1} parent=1 // pred_region
      _
    $region21: #{tpu_custom_call.1} parent=1 // pred_fallthru
      _
    // Predicated region
    $region22: #{tpu_custom_call.1} parent=1 // pred_check
      _
    $region23: #{tpu_custom_call.1} parent=1 // pred_check_branch
      %23 = sbr.rel (0) target = $region25
    $region24: #{tpu_custom_call.1} parent=1 // pred_region
      _
    $region25: #{tpu_custom_call.1} parent=1 // pred_fallthru
      _
    %v24 = vld [vmem:[%s0] sm:$0xff]
    %v25 = vld [vmem:[%s0 + $0x8] sm:$0xff]
    %v26 = vld [vmem:[%s1] sm:$0xff]
    %v27 = vld [vmem:[%s1 + $0x8] sm:$0xff]
    %v28 = vld [vmem:[%s1 + $0x10] sm:$0xff]
    %v29 = vld [vmem:[%s1 + $0x18] sm:$0xff]
    %v30 = vld [vmem:[%s1 + $0x20] sm:$0xff]
    %v31 = vld [vmem:[%s1 + $0x28] sm:$0xff]
    %v32 = vld [vmem:[%s1 + $0x30] sm:$0xff]
    %v33 = vld [vmem:[%s1 + $0x38] sm:$0xff]
    %v34 = vld [vmem:[%s1 + $0x40] sm:$0xff]
    %v35 = vld [vmem:[%s1 + $0x48] sm:$0xff]
    %v36 = vld [vmem:[%s1 + $0x50] sm:$0xff]
    %v37 = vld [vmem:[%s1 + $0x58] sm:$0xff]
    %v38 = vld [vmem:[%s1 + $0x60] sm:$0xff]
    %v39 = vld [vmem:[%s1 + $0x68] sm:$0xff]
    %v40 = vld [vmem:[%s1 + $0x70] sm:$0xff]
    %v41 = vld [vmem:[%s1 + $0x78] sm:$0xff]
    %v42 = vld [vmem:[%s1 + $0x80] sm:$0xff]
    %v43 = vld [vmem:[%s1 + $0x88] sm:$0xff]
    %v44 = vld [vmem:[%s1 + $0x90] sm:$0xff]
    %v45 = vld [vmem:[%s1 + $0x98] sm:$0xff]
    %v46 = vld [vmem:[%s1 + $0xa0] sm:$0xff]
    %v47 = vld [vmem:[%s1 + $0xa8] sm:$0xff]
    %v48 = vld [vmem:[%s1 + $0xb0] sm:$0xff]
    %v49 = vld [vmem:[%s1 + $0xb8] sm:$0xff]
    %v50 = vld [vmem:[%s1 + $0xc0] sm:$0xff]
    %v51 = vld [vmem:[%s1 + $0xc8] sm:$0xff]
    %v52 = vld [vmem:[%s1 + $0xd0] sm:$0xff]
    %v53 = vld [vmem:[%s1 + $0xd8] sm:$0xff]
    %v54 = vld [vmem:[%s1 + $0xe0] sm:$0xff]
    %v55 = vld [vmem:[%s1 + $0xe8] sm:$0xff]
    %v56 = vld [vmem:[%s1 + $0xf0] sm:$0xff]
    %v57 = vld [vmem:[%s1 + $0xf8] sm:$0xff]
    %v58 = vld [vmem:[%s1 + $0x100] sm:$0xff]
    %v59 = vld [vmem:[%s1 + $0x108] sm:$0xff]
    %v60 = vld [vmem:[%s1 + $0x110] sm:$0xff]
    %v61 = vld [vmem:[%s1 + $0x118] sm:$0xff]
    %v62 = vld [vmem:[%s1 + $0x120] sm:$0xff]
    %v63 = vld [vmem:[%s1 + $0x128] sm:$0xff]
    %v64 = vld [vmem:[%s1 + $0x130] sm:$0xff]
    %v65 = vld [vmem:[%s1 + $0x138] sm:$0xff]
    %v66 = vld [vmem:[%s1 + $0x140] sm:$0xff]
    %v67 = vld [vmem:[%s1 + $0x148] sm:$0xff]
    %v68 = vld [vmem:[%s1 + $0x150] sm:$0xff]
    %v69 = vld [vmem:[%s1 + $0x158] sm:$0xff]
    %v70 = vld [vmem:[%s1 + $0x160] sm:$0xff]
    %v71 = vld [vmem:[%s1 + $0x168] sm:$0xff]
    %v72 = vld [vmem:[%s1 + $0x170] sm:$0xff]
    %v73 = vld [vmem:[%s1 + $0x178] sm:$0xff]
    %v74 = vld [vmem:[%s1 + $0x180] sm:$0xff]
    %v75 = vld [vmem:[%s1 + $0x188] sm:$0xff]
    %v76 = vld [vmem:[%s1 + $0x190] sm:$0xff]
    %v77 = vld [vmem:[%s1 + $0x198] sm:$0xff]
    %v78 = vld [vmem:[%s1 + $0x1a0] sm:$0xff]
    %v79 = vld [vmem:[%s1 + $0x1a8] sm:$0xff]
    %v80 = vld [vmem:[%s1 + $0x1b0] sm:$0xff]
    %v81 = vld [vmem:[%s1 + $0x1b8] sm:$0xff]
    %v82 = vld [vmem:[%s1 + $0x1c0] sm:$0xff]
    %v83 = vld [vmem:[%s1 + $0x1c8] sm:$0xff]
    %v84 = vld [vmem:[%s1 + $0x1d0] sm:$0xff]
    %v85 = vld [vmem:[%s1 + $0x1d8] sm:$0xff]
    %v86 = vld [vmem:[%s1 + $0x1e0] sm:$0xff]
    %v87 = vld [vmem:[%s1 + $0x1e8] sm:$0xff]
    %v88 = vld [vmem:[%s1 + $0x1f0] sm:$0xff]
    %v89 = vld [vmem:[%s1 + $0x1f8] sm:$0xff]
    %v90 = vld [vmem:[%s1 + $0x200] sm:$0xff]
    %v91 = vld [vmem:[%s1 + $0x208] sm:$0xff]
    %v92 = vld [vmem:[%s1 + $0x210] sm:$0xff]
    %v93 = vld [vmem:[%s1 + $0x218] sm:$0xff]
    %v94 = vld [vmem:[%s1 + $0x220] sm:$0xff]
    %v95 = vld [vmem:[%s1 + $0x228] sm:$0xff]
    %v96 = vld [vmem:[%s1 + $0x230] sm:$0xff]
    %v97 = vld [vmem:[%s1 + $0x238] sm:$0xff]
    %v98 = vld [vmem:[%s1 + $0x240] sm:$0xff]
    %v99 = vld [vmem:[%s1 + $0x248] sm:$0xff]
    %v100 = vld [vmem:[%s1 + $0x250] sm:$0xff]
    %v101 = vld [vmem:[%s1 + $0x258] sm:$0xff]
    %v102 = vld [vmem:[%s1 + $0x260] sm:$0xff]
    %v103 = vld [vmem:[%s1 + $0x268] sm:$0xff]
    %v104 = vld [vmem:[%s1 + $0x270] sm:$0xff]
    %v105 = vld [vmem:[%s1 + $0x278] sm:$0xff]
    %v106 = vld [vmem:[%s1 + $0x280] sm:$0xff]
    %v107 = vld [vmem:[%s1 + $0x288] sm:$0xff]
    %v108 = vld [vmem:[%s1 + $0x290] sm:$0xff]
    %v109 = vld [vmem:[%s1 + $0x298] sm:$0xff]
    %v110 = vld [vmem:[%s1 + $0x2a0] sm:$0xff]
    %v111 = vld [vmem:[%s1 + $0x2a8] sm:$0xff]
    %v112 = vld [vmem:[%s1 + $0x2b0] sm:$0xff]
    %v113 = vld [vmem:[%s1 + $0x2b8] sm:$0xff]
    %v114 = vld [vmem:[%s1 + $0x2c0] sm:$0xff]
    %v115 = vld [vmem:[%s1 + $0x2c8] sm:$0xff]
    %v116 = vld [vmem:[%s1 + $0x2d0] sm:$0xff]
    %v117 = vld [vmem:[%s1 + $0x2d8] sm:$0xff]
    %v118 = vld [vmem:[%s1 + $0x2e0] sm:$0xff]
    %v119 = vld [vmem:[%s1 + $0x2e8] sm:$0xff]
    %v120 = vld [vmem:[%s1 + $0x2f0] sm:$0xff]
    %v121 = vld [vmem:[%s1 + $0x2f8] sm:$0xff]
    %v122 = vld [vmem:[%s2] sm:$0x1]
    %v123 = vld [vmem:[%s2 + $0x1] sm:$0x1]
    %v124 = vld [vmem:[%s2 + $0x2] sm:$0x1]
    %v125 = vld [vmem:[%s2 + $0x3] sm:$0x1]
    %v126 = vld [vmem:[%s2 + $0x4] sm:$0x1]
    %v127 = vld [vmem:[%s2 + $0x5] sm:$0x1]
    %v128 = vld [vmem:[%s2 + $0x6] sm:$0x1]
    %v129 = vld [vmem:[%s2 + $0x7] sm:$0x1]
    %v130 = vld [vmem:[%s2 + $0x8] sm:$0x1]
    %v131 = vld [vmem:[%s2 + $0x9] sm:$0x1]
    %v132 = vld [vmem:[%s2 + $0xa] sm:$0x1]
    %v133 = vld [vmem:[%s2 + $0xb] sm:$0x1]
    %v134 = vld [vmem:[%s2 + $0xc] sm:$0x1]
    %v135 = vld [vmem:[%s2 + $0xd] sm:$0x1]
    %v136 = vld [vmem:[%s2 + $0xe] sm:$0x1]
    %v137 = vld [vmem:[%s2 + $0xf] sm:$0x1]
    %v138 = vld [vmem:[%s2 + $0x10] sm:$0x1]
    %v139 = vld [vmem:[%s2 + $0x11] sm:$0x1]
    %v140 = vld [vmem:[%s2 + $0x12] sm:$0x1]
    %v141 = vld [vmem:[%s2 + $0x13] sm:$0x1]
    %v142 = vld [vmem:[%s2 + $0x14] sm:$0x1]
    %v143 = vld [vmem:[%s2 + $0x15] sm:$0x1]
    %v144 = vld [vmem:[%s2 + $0x16] sm:$0x1]
    %v145 = vld [vmem:[%s2 + $0x17] sm:$0x1]
    %v170 = vlaneseq
    %v171 = vshrl.u32 %v170, 7
    %v172 = vsub.s32 0, %v171
    %v173 = vrot.slane %v122, %v172
    %v174 = vlaneseq
    %v175 = vshrl.u32 %v174, 7
    %v176 = vsub.s32 0, %v175
    %v177 = vrot.slane %v123, %v176
    %v178 = vlaneseq
    %v179 = vshrl.u32 %v178, 7
    %v180 = vsub.s32 0, %v179
    %v181 = vrot.slane %v124, %v180
    %v182 = vlaneseq
    %v183 = vshrl.u32 %v182, 7
    %v184 = vsub.s32 0, %v183
    %v185 = vrot.slane %v125, %v184
    %v186 = vlaneseq
    %v187 = vshrl.u32 %v186, 7
    %v188 = vsub.s32 0, %v187
    %v189 = vrot.slane %v126, %v188
    %v190 = vlaneseq
    %v191 = vshrl.u32 %v190, 7
    %v192 = vsub.s32 0, %v191
    %v193 = vrot.slane %v127, %v192
    %v194 = vlaneseq
    %v195 = vshrl.u32 %v194, 7
    %v196 = vsub.s32 0, %v195
    %v197 = vrot.slane %v128, %v196
    %v198 = vlaneseq
    %v199 = vshrl.u32 %v198, 7
    %v200 = vsub.s32 0, %v199
    %v201 = vrot.slane %v129, %v200
    %v202 = vlaneseq
    %v203 = vshrl.u32 %v202, 7
    %v204 = vsub.s32 0, %v203
    %v205 = vrot.slane %v130, %v204
    %v206 = vlaneseq
    %v207 = vshrl.u32 %v206, 7
    %v208 = vsub.s32 0, %v207
    %v209 = vrot.slane %v131, %v208
    %v210 = vlaneseq
    %v211 = vshrl.u32 %v210, 7
    %v212 = vsub.s32 0, %v211
    %v213 = vrot.slane %v132, %v212
    %v214 = vlaneseq
    %v215 = vshrl.u32 %v214, 7
    %v216 = vsub.s32 0, %v215
    %v217 = vrot.slane %v133, %v216
    %v218 = vlaneseq
    %v219 = vshrl.u32 %v218, 7
    %v220 = vsub.s32 0, %v219
    %v221 = vrot.slane %v134, %v220
    %v222 = vlaneseq
    %v223 = vshrl.u32 %v222, 7
    %v224 = vsub.s32 0, %v223
    %v225 = vrot.slane %v135, %v224
    %v226 = vlaneseq
    %v227 = vshrl.u32 %v226, 7
    %v228 = vsub.s32 0, %v227
    %v229 = vrot.slane %v136, %v228
    %v230 = vlaneseq
    %v231 = vshrl.u32 %v230, 7
    %v232 = vsub.s32 0, %v231
    %v233 = vrot.slane %v137, %v232
    %v234 = vlaneseq
    %v235 = vshrl.u32 %v234, 7
    %v236 = vsub.s32 0, %v235
    %v237 = vrot.slane %v138, %v236
    %v238 = vlaneseq
    %v239 = vshrl.u32 %v238, 7
    %v240 = vsub.s32 0, %v239
    %v241 = vrot.slane %v139, %v240
    %v242 = vlaneseq
    %v243 = vshrl.u32 %v242, 7
    %v244 = vsub.s32 0, %v243
    %v245 = vrot.slane %v140, %v244
    %v246 = vlaneseq
    %v247 = vshrl.u32 %v246, 7
    %v248 = vsub.s32 0, %v247
    %v249 = vrot.slane %v141, %v248
    %v250 = vlaneseq
    %v251 = vshrl.u32 %v250, 7
    %v252 = vsub.s32 0, %v251
    %v253 = vrot.slane %v142, %v252
    %v254 = vlaneseq
    %v255 = vshrl.u32 %v254, 7
    %v256 = vsub.s32 0, %v255
    %v257 = vrot.slane %v143, %v256
    %v258 = vlaneseq
    %v259 = vshrl.u32 %v258, 7
    %v260 = vsub.s32 0, %v259
    %v261 = vrot.slane %v144, %v260
    %v262 = vlaneseq
    %v263 = vshrl.u32 %v262, 7
    %v264 = vsub.s32 0, %v263
    %v265 = vrot.slane %v145, %v264
    %vm290 = vcmask 261120
    %v292 = vsel %vm290, %v24, 0
    %294 = vmatprep.subr.mxu0 0.0
    %295 = vmatpush1.msra.mxu0 %v26
    %296 = vmatprep.subr.mxu0 0.0
    %297 = vmatpush1.msra.mxu0 %v27
    %298 = vmatprep.subr.mxu0 0.0
    %299 = vmatpush1.msra.mxu0 %v28
    %300 = vmatprep.subr.mxu0 0.0
    %301 = vmatpush1.msra.mxu0 %v29
    %302 = vmatprep.subr.mxu0 0.0
    %303 = vmatpush1.msra.mxu0 0.0
    %304 = vmatprep.subr.mxu0 0.0
    %305 = vmatpush1.msra.mxu0 0.0
    %306 = vmatprep.subr.mxu0 0.0
    %307 = vmatpush1.msra.mxu0 0.0
    %308 = vmatprep.subr.mxu0 0.0
    %309 = vmatpush1.msra.mxu0 0.0
    %310 = vmatprep.subr.mxu0 0.0
    %311 = vmatpush1.msra.mxu0 0.0
    %312 = vmatprep.subr.mxu0 0.0
    %313 = vmatpush1.msra.mxu0 0.0
    %314 = vmatprep.subr.mxu0 0.0
    %315 = vmatpush1.msra.mxu0 0.0
    %316 = vmatprep.subr.mxu0 0.0
    %317 = vmatpush1.msra.mxu0 0.0
    %318 = vmatprep.subr.mxu0 0.0
    %319 = vmatpush1.msra.mxu0 0.0
    %320 = vmatprep.subr.mxu0 0.0
    %321 = vmatpush1.msra.mxu0 0.0
    %322 = vmatprep.subr.mxu0 0.0
    %323 = vmatpush1.msra.mxu0 0.0
    %324 = vmatprep.subr.mxu0 0.0
    %325 = vmatpush1.msra.mxu0 0.0
    %326 = vmatprep.subr.mxu0 0.0
    %327 = vmatpush1.msra.mxu0 0.0
    %328 = vmatprep.subr.mxu0 0.0
    %329 = vmatpush1.msra.mxu0 0.0
    %330 = vmatprep.subr.mxu0 0.0
    %331 = vmatpush1.msra.mxu0 0.0
    %332 = vmatprep.subr.mxu0 0.0
    %333 = vmatpush1.msra.mxu0 0.0
    %334 = vmatprep.subr.mxu0 0.0
    %335 = vmatpush1.msra.mxu0 0.0
    %336 = vmatprep.subr.mxu0 0.0
    %337 = vmatpush1.msra.mxu0 0.0
    %338 = vmatprep.subr.mxu0 0.0
    %339 = vmatpush1.msra.mxu0 0.0
    %340 = vmatprep.subr.mxu0 0.0
    %341 = vmatpush1.msra.mxu0 0.0
    %342 = vmatprep.subr.mxu0 0.0
    %343 = vmatpush1.msra.mxu0 0.0
    %344 = vmatprep.subr.mxu0 0.0
    %345 = vmatpush1.msra.mxu0 0.0
    %346 = vmatprep.subr.mxu0 0.0
    %347 = vmatpush1.msra.mxu0 0.0
    %348 = vmatprep.subr.mxu0 0.0
    %349 = vmatpush1.msra.mxu0 0.0
    %350 = vmatprep.subr.mxu0 0.0
    %351 = vmatpush1.msra.mxu0 0.0
    %352 = vmatprep.subr.mxu0 0.0
    %353 = vmatpush1.msra.mxu0 0.0
    %354 = vmatprep.subr.mxu0 0.0
    %355 = vmatpush1.msra.mxu0 0.0
    %356 = vmatprep.subr.mxu0 0.0
    %357 = vmatpush1.msra.mxu0 0.0
    %358 = vmatprep.mubr.f32.mxu0 0.0
    %359 = vmatmul.mubr.f32.gmra.mrb[0].mxu0 %v292
    %v360 = vpop.f32.mrb[0].mxu0
    %v361 = vadd.f32 %v173, %v360
    %v362 = vpop.f32.mrb[0].mxu0
    %363 = vdwg.mxu0
    %v365 = vsel %vm290, %v25, 0
    %367 = vmatprep.subr.mxu0 0.0
    %368 = vmatpush1.msra.mxu0 %v30
    %369 = vmatprep.subr.mxu0 0.0
    %370 = vmatpush1.msra.mxu0 %v31
    %371 = vmatprep.subr.mxu0 0.0
    %372 = vmatpush1.msra.mxu0 %v32
    %373 = vmatprep.subr.mxu0 0.0
    %374 = vmatpush1.msra.mxu0 %v33
    %375 = vmatprep.subr.mxu0 0.0
    %376 = vmatpush1.msra.mxu0 0.0
    %377 = vmatprep.subr.mxu0 0.0
    %378 = vmatpush1.msra.mxu0 0.0
    %379 = vmatprep.subr.mxu0 0.0
    %380 = vmatpush1.msra.mxu0 0.0
    %381 = vmatprep.subr.mxu0 0.0
    %382 = vmatpush1.msra.mxu0 0.0
    %383 = vmatprep.subr.mxu0 0.0
    %384 = vmatpush1.msra.mxu0 0.0
    %385 = vmatprep.subr.mxu0 0.0
    %386 = vmatpush1.msra.mxu0 0.0
    %387 = vmatprep.subr.mxu0 0.0
    %388 = vmatpush1.msra.mxu0 0.0
    %389 = vmatprep.subr.mxu0 0.0
    %390 = vmatpush1.msra.mxu0 0.0
    %391 = vmatprep.subr.mxu0 0.0
    %392 = vmatpush1.msra.mxu0 0.0
    %393 = vmatprep.subr.mxu0 0.0
    %394 = vmatpush1.msra.mxu0 0.0
    %395 = vmatprep.subr.mxu0 0.0
    %396 = vmatpush1.msra.mxu0 0.0
    %397 = vmatprep.subr.mxu0 0.0
    %398 = vmatpush1.msra.mxu0 0.0
    %399 = vmatprep.subr.mxu0 0.0
    %400 = vmatpush1.msra.mxu0 0.0
    %401 = vmatprep.subr.mxu0 0.0
    %402 = vmatpush1.msra.mxu0 0.0
    %403 = vmatprep.subr.mxu0 0.0
    %404 = vmatpush1.msra.mxu0 0.0
    %405 = vmatprep.subr.mxu0 0.0
    %406 = vmatpush1.msra.mxu0 0.0
    %407 = vmatprep.subr.mxu0 0.0
    %408 = vmatpush1.msra.mxu0 0.0
    %409 = vmatprep.subr.mxu0 0.0
    %410 = vmatpush1.msra.mxu0 0.0
    %411 = vmatprep.subr.mxu0 0.0
    %412 = vmatpush1.msra.mxu0 0.0
    %413 = vmatprep.subr.mxu0 0.0
    %414 = vmatpush1.msra.mxu0 0.0
    %415 = vmatprep.subr.mxu0 0.0
    %416 = vmatpush1.msra.mxu0 0.0
    %417 = vmatprep.subr.mxu0 0.0
    %418 = vmatpush1.msra.mxu0 0.0
    %419 = vmatprep.subr.mxu0 0.0
    %420 = vmatpush1.msra.mxu0 0.0
    %421 = vmatprep.subr.mxu0 0.0
    %422 = vmatpush1.msra.mxu0 0.0
    %423 = vmatprep.subr.mxu0 0.0
    %424 = vmatpush1.msra.mxu0 0.0
    %425 = vmatprep.subr.mxu0 0.0
    %426 = vmatpush1.msra.mxu0 0.0
    %427 = vmatprep.subr.mxu0 0.0
    %428 = vmatpush1.msra.mxu0 0.0
    %429 = vmatprep.subr.mxu0 0.0
    %430 = vmatpush1.msra.mxu0 0.0
    %431 = vmatprep.mubr.f32.mxu0 0.0
    %432 = vmatmul.mubr.f32.gmra.mrb[0].mxu0 %v365
    %v433 = vpop.f32.mrb[0].mxu0
    %v434 = vadd.f32 %v177, %v433
    %v435 = vpop.f32.mrb[0].mxu0
    %436 = vdwg.mxu0
    %437 = vmatprep.subr.mxu0 0.0
    %438 = vmatpush1.msra.mxu0 %v34
    %439 = vmatprep.subr.mxu0 0.0
    %440 = vmatpush1.msra.mxu0 %v35
    %441 = vmatprep.subr.mxu0 0.0
    %442 = vmatpush1.msra.mxu0 %v36
    %443 = vmatprep.subr.mxu0 0.0
    %444 = vmatpush1.msra.mxu0 %v37
    %445 = vmatprep.subr.mxu0 0.0
    %446 = vmatpush1.msra.mxu0 0.0
    %447 = vmatprep.subr.mxu0 0.0
    %448 = vmatpush1.msra.mxu0 0.0
    %449 = vmatprep.subr.mxu0 0.0
    %450 = vmatpush1.msra.mxu0 0.0
    %451 = vmatprep.subr.mxu0 0.0
    %452 = vmatpush1.msra.mxu0 0.0
    %453 = vmatprep.subr.mxu0 0.0
    %454 = vmatpush1.msra.mxu0 0.0
    %455 = vmatprep.subr.mxu0 0.0
    %456 = vmatpush1.msra.mxu0 0.0
    %457 = vmatprep.subr.mxu0 0.0
    %458 = vmatpush1.msra.mxu0 0.0
    %459 = vmatprep.subr.mxu0 0.0
    %460 = vmatpush1.msra.mxu0 0.0
    %461 = vmatprep.subr.mxu0 0.0
    %462 = vmatpush1.msra.mxu0 0.0
    %463 = vmatprep.subr.mxu0 0.0
    %464 = vmatpush1.msra.mxu0 0.0
    %465 = vmatprep.subr.mxu0 0.0
    %466 = vmatpush1.msra.mxu0 0.0
    %467 = vmatprep.subr.mxu0 0.0
    %468 = vmatpush1.msra.mxu0 0.0
    %469 = vmatprep.subr.mxu0 0.0
    %470 = vmatpush1.msra.mxu0 0.0
    %471 = vmatprep.subr.mxu0 0.0
    %472 = vmatpush1.msra.mxu0 0.0
    %473 = vmatprep.subr.mxu0 0.0
    %474 = vmatpush1.msra.mxu0 0.0
    %475 = vmatprep.subr.mxu0 0.0
    %476 = vmatpush1.msra.mxu0 0.0
    %477 = vmatprep.subr.mxu0 0.0
    %478 = vmatpush1.msra.mxu0 0.0
    %479 = vmatprep.subr.mxu0 0.0
    %480 = vmatpush1.msra.mxu0 0.0
    %481 = vmatprep.subr.mxu0 0.0
    %482 = vmatpush1.msra.mxu0 0.0
    %483 = vmatprep.subr.mxu0 0.0
    %484 = vmatpush1.msra.mxu0 0.0
    %485 = vmatprep.subr.mxu0 0.0
    %486 = vmatpush1.msra.mxu0 0.0
    %487 = vmatprep.subr.mxu0 0.0
    %488 = vmatpush1.msra.mxu0 0.0
    %489 = vmatprep.subr.mxu0 0.0
    %490 = vmatpush1.msra.mxu0 0.0
    %491 = vmatprep.subr.mxu0 0.0
    %492 = vmatpush1.msra.mxu0 0.0
    %493 = vmatprep.subr.mxu0 0.0
    %494 = vmatpush1.msra.mxu0 0.0
    %495 = vmatprep.subr.mxu0 0.0
    %496 = vmatpush1.msra.mxu0 0.0
    %497 = vmatprep.subr.mxu0 0.0
    %498 = vmatpush1.msra.mxu0 0.0
    %499 = vmatprep.subr.mxu0 0.0
    %500 = vmatpush1.msra.mxu0 0.0
    %501 = vmatprep.mubr.f32.mxu0 0.0
    %502 = vmatmul.mubr.f32.gmra.mrb[0].mxu0 %v292
    %v503 = vpop.f32.mrb[0].mxu0
    %v504 = vadd.f32 %v181, %v503
    %v505 = vpop.f32.mrb[0].mxu0
    %506 = vdwg.mxu0
    %507 = vmatprep.subr.mxu0 0.0
    %508 = vmatpush1.msra.mxu0 %v38
    %509 = vmatprep.subr.mxu0 0.0
    %510 = vmatpush1.msra.mxu0 %v39
    %511 = vmatprep.subr.mxu0 0.0
    %512 = vmatpush1.msra.mxu0 %v40
    %513 = vmatprep.subr.mxu0 0.0
    %514 = vmatpush1.msra.mxu0 %v41
    %515 = vmatprep.subr.mxu0 0.0
    %516 = vmatpush1.msra.mxu0 0.0
    %517 = vmatprep.subr.mxu0 0.0
    %518 = vmatpush1.msra.mxu0 0.0
    %519 = vmatprep.subr.mxu0 0.0
    %520 = vmatpush1.msra.mxu0 0.0
    %521 = vmatprep.subr.mxu0 0.0
    %522 = vmatpush1.msra.mxu0 0.0
    %523 = vmatprep.subr.mxu0 0.0
    %524 = vmatpush1.msra.mxu0 0.0
    %525 = vmatprep.subr.mxu0 0.0
    %526 = vmatpush1.msra.mxu0 0.0
    %527 = vmatprep.subr.mxu0 0.0
    %528 = vmatpush1.msra.mxu0 0.0
    %529 = vmatprep.subr.mxu0 0.0
    %530 = vmatpush1.msra.mxu0 0.0
    %531 = vmatprep.subr.mxu0 0.0
    %532 = vmatpush1.msra.mxu0 0.0
    %533 = vmatprep.subr.mxu0 0.0
    %534 = vmatpush1.msra.mxu0 0.0
    %535 = vmatprep.subr.mxu0 0.0
    %536 = vmatpush1.msra.mxu0 0.0
    %537 = vmatprep.subr.mxu0 0.0
    %538 = vmatpush1.msra.mxu0 0.0
    %539 = vmatprep.subr.mxu0 0.0
    %540 = vmatpush1.msra.mxu0 0.0
    %541 = vmatprep.subr.mxu0 0.0
    %542 = vmatpush1.msra.mxu0 0.0
    %543 = vmatprep.subr.mxu0 0.0
    %544 = vmatpush1.msra.mxu0 0.0
    %545 = vmatprep.subr.mxu0 0.0
    %546 = vmatpush1.msra.mxu0 0.0
    %547 = vmatprep.subr.mxu0 0.0
    %548 = vmatpush1.msra.mxu0 0.0
    %549 = vmatprep.subr.mxu0 0.0
    %550 = vmatpush1.msra.mxu0 0.0
    %551 = vmatprep.subr.mxu0 0.0
    %552 = vmatpush1.msra.mxu0 0.0
    %553 = vmatprep.subr.mxu0 0.0
    %554 = vmatpush1.msra.mxu0 0.0
    %555 = vmatprep.subr.mxu0 0.0
    %556 = vmatpush1.msra.mxu0 0.0
    %557 = vmatprep.subr.mxu0 0.0
    %558 = vmatpush1.msra.mxu0 0.0
    %559 = vmatprep.subr.mxu0 0.0
    %560 = vmatpush1.msra.mxu0 0.0
    %561 = vmatprep.subr.mxu0 0.0
    %562 = vmatpush1.msra.mxu0 0.0
    %563 = vmatprep.subr.mxu0 0.0
    %564 = vmatpush1.msra.mxu0 0.0
    %565 = vmatprep.subr.mxu0 0.0
    %566 = vmatpush1.msra.mxu0 0.0
    %567 = vmatprep.subr.mxu0 0.0
    %568 = vmatpush1.msra.mxu0 0.0
    %569 = vmatprep.subr.mxu0 0.0
    %570 = vmatpush1.msra.mxu0 0.0
    %571 = vmatprep.mubr.f32.mxu0 0.0
    %572 = vmatmul.mubr.f32.gmra.mrb[0].mxu0 %v365
    %v573 = vpop.f32.mrb[0].mxu0
    %v574 = vadd.f32 %v185, %v573
    %v575 = vpop.f32.mrb[0].mxu0
    %576 = vdwg.mxu0
    %577 = vmatprep.subr.mxu0 0.0
    %578 = vmatpush1.msra.mxu0 %v42
    %579 = vmatprep.subr.mxu0 0.0
    %580 = vmatpush1.msra.mxu0 %v43
    %581 = vmatprep.subr.mxu0 0.0
    %582 = vmatpush1.msra.mxu0 %v44
    %583 = vmatprep.subr.mxu0 0.0
    %584 = vmatpush1.msra.mxu0 %v45
    %585 = vmatprep.subr.mxu0 0.0
    %586 = vmatpush1.msra.mxu0 0.0
    %587 = vmatprep.subr.mxu0 0.0
    %588 = vmatpush1.msra.mxu0 0.0
    %589 = vmatprep.subr.mxu0 0.0
    %590 = vmatpush1.msra.mxu0 0.0
    %591 = vmatprep.subr.mxu0 0.0
    %592 = vmatpush1.msra.mxu0 0.0
    %593 = vmatprep.subr.mxu0 0.0
    %594 = vmatpush1.msra.mxu0 0.0
    %595 = vmatprep.subr.mxu0 0.0
    %596 = vmatpush1.msra.mxu0 0.0
    %597 = vmatprep.subr.mxu0 0.0
    %598 = vmatpush1.msra.mxu0 0.0
    %599 = vmatprep.subr.mxu0 0.0
    %600 = vmatpush1.msra.mxu0 0.0
    %601 = vmatprep.subr.mxu0 0.0
    %602 = vmatpush1.msra.mxu0 0.0
    %603 = vmatprep.subr.mxu0 0.0
    %604 = vmatpush1.msra.mxu0 0.0
    %605 = vmatprep.subr.mxu0 0.0
    %606 = vmatpush1.msra.mxu0 0.0
    %607 = vmatprep.subr.mxu0 0.0
    %608 = vmatpush1.msra.mxu0 0.0
    %609 = vmatprep.subr.mxu0 0.0
    %610 = vmatpush1.msra.mxu0 0.0
    %611 = vmatprep.subr.mxu0 0.0
    %612 = vmatpush1.msra.mxu0 0.0
    %613 = vmatprep.subr.mxu0 0.0
    %614 = vmatpush1.msra.mxu0 0.0
    %615 = vmatprep.subr.mxu0 0.0
    %616 = vmatpush1.msra.mxu0 0.0
    %617 = vmatprep.subr.mxu0 0.0
    %618 = vmatpush1.msra.mxu0 0.0
    %619 = vmatprep.subr.mxu0 0.0
    %620 = vmatpush1.msra.mxu0 0.0
    %621 = vmatprep.subr.mxu0 0.0
    %622 = vmatpush1.msra.mxu0 0.0
    %623 = vmatprep.subr.mxu0 0.0
    %624 = vmatpush1.msra.mxu0 0.0
    %625 = vmatprep.subr.mxu0 0.0
    %626 = vmatpush1.msra.mxu0 0.0
    %627 = vmatprep.subr.mxu0 0.0
    %628 = vmatpush1.msra.mxu0 0.0
    %629 = vmatprep.subr.mxu0 0.0
    %630 = vmatpush1.msra.mxu0 0.0
    %631 = vmatprep.subr.mxu0 0.0
    %632 = vmatpush1.msra.mxu0 0.0
    %633 = vmatprep.subr.mxu0 0.0
    %634 = vmatpush1.msra.mxu0 0.0
    %635 = vmatprep.subr.mxu0 0.0
    %636 = vmatpush1.msra.mxu0 0.0
    %637 = vmatprep.subr.mxu0 0.0
    %638 = vmatpush1.msra.mxu0 0.0
    %639 = vmatprep.subr.mxu0 0.0
    %640 = vmatpush1.msra.mxu0 0.0
    %641 = vmatprep.mubr.f32.mxu0 0.0
    %642 = vmatmul.mubr.f32.gmra.mrb[0].mxu0 %v292
    %v643 = vpop.f32.mrb[0].mxu0
    %v644 = vadd.f32 %v189, %v643
    %v645 = vpop.f32.mrb[0].mxu0
    %646 = vdwg.mxu0
    %647 = vmatprep.subr.mxu0 0.0
    %648 = vmatpush1.msra.mxu0 %v46
    %649 = vmatprep.subr.mxu0 0.0
    %650 = vmatpush1.msra.mxu0 %v47
    %651 = vmatprep.subr.mxu0 0.0
    %652 = vmatpush1.msra.mxu0 %v48
    %653 = vmatprep.subr.mxu0 0.0
    %654 = vmatpush1.msra.mxu0 %v49
    %655 = vmatprep.subr.mxu0 0.0
    %656 = vmatpush1.msra.mxu0 0.0
    %657 = vmatprep.subr.mxu0 0.0
    %658 = vmatpush1.msra.mxu0 0.0
    %659 = vmatprep.subr.mxu0 0.0
    %660 = vmatpush1.msra.mxu0 0.0
    %661 = vmatprep.subr.mxu0 0.0
    %662 = vmatpush1.msra.mxu0 0.0
    %663 = vmatprep.subr.mxu0 0.0
    %664 = vmatpush1.msra.mxu0 0.0
    %665 = vmatprep.subr.mxu0 0.0
    %666 = vmatpush1.msra.mxu0 0.0
    %667 = vmatprep.subr.mxu0 0.0
    %668 = vmatpush1.msra.mxu0 0.0
    %669 = vmatprep.subr.mxu0 0.0
    %670 = vmatpush1.msra.mxu0 0.0
    %671 = vmatprep.subr.mxu0 0.0
    %672 = vmatpush1.msra.mxu0 0.0
    %673 = vmatprep.subr.mxu0 0.0
    %674 = vmatpush1.msra.mxu0 0.0
    %675 = vmatprep.subr.mxu0 0.0
    %676 = vmatpush1.msra.mxu0 0.0
    %677 = vmatprep.subr.mxu0 0.0
    %678 = vmatpush1.msra.mxu0 0.0
    %679 = vmatprep.subr.mxu0 0.0
    %680 = vmatpush1.msra.mxu0 0.0
    %681 = vmatprep.subr.mxu0 0.0
    %682 = vmatpush1.msra.mxu0 0.0
    %683 = vmatprep.subr.mxu0 0.0
    %684 = vmatpush1.msra.mxu0 0.0
    %685 = vmatprep.subr.mxu0 0.0
    %686 = vmatpush1.msra.mxu0 0.0
    %687 = vmatprep.subr.mxu0 0.0
    %688 = vmatpush1.msra.mxu0 0.0
    %689 = vmatprep.subr.mxu0 0.0
    %690 = vmatpush1.msra.mxu0 0.0
    %691 = vmatprep.subr.mxu0 0.0
    %692 = vmatpush1.msra.mxu0 0.0
    %693 = vmatprep.subr.mxu0 0.0
    %694 = vmatpush1.msra.mxu0 0.0
    %695 = vmatprep.subr.mxu0 0.0
    %696 = vmatpush1.msra.mxu0 0.0
    %697 = vmatprep.subr.mxu0 0.0
    %698 = vmatpush1.msra.mxu0 0.0
    %699 = vmatprep.subr.mxu0 0.0
    %700 = vmatpush1.msra.mxu0 0.0
    %701 = vmatprep.subr.mxu0 0.0
    %702 = vmatpush1.msra.mxu0 0.0
    %703 = vmatprep.subr.mxu0 0.0
    %704 = vmatpush1.msra.mxu0 0.0
    %705 = vmatprep.subr.mxu0 0.0
    %706 = vmatpush1.msra.mxu0 0.0
    %707 = vmatprep.subr.mxu0 0.0
    %708 = vmatpush1.msra.mxu0 0.0
    %709 = vmatprep.subr.mxu0 0.0
    %710 = vmatpush1.msra.mxu0 0.0
    %711 = vmatprep.mubr.f32.mxu0 0.0
    %712 = vmatmul.mubr.f32.gmra.mrb[0].mxu0 %v365
    %v713 = vpop.f32.mrb[0].mxu0
    %v714 = vadd.f32 %v193, %v713
    %v715 = vpop.f32.mrb[0].mxu0
    %716 = vdwg.mxu0
    %717 = vmatprep.subr.mxu0 0.0
    %718 = vmatpush1.msra.mxu0 %v50
    %719 = vmatprep.subr.mxu0 0.0
    %720 = vmatpush1.msra.mxu0 %v51
    %721 = vmatprep.subr.mxu0 0.0
    %722 = vmatpush1.msra.mxu0 %v52
    %723 = vmatprep.subr.mxu0 0.0
    %724 = vmatpush1.msra.mxu0 %v53
    %725 = vmatprep.subr.mxu0 0.0
    %726 = vmatpush1.msra.mxu0 0.0
    %727 = vmatprep.subr.mxu0 0.0
    %728 = vmatpush1.msra.mxu0 0.0
    %729 = vmatprep.subr.mxu0 0.0
    %730 = vmatpush1.msra.mxu0 0.0
    %731 = vmatprep.subr.mxu0 0.0
    %732 = vmatpush1.msra.mxu0 0.0
    %733 = vmatprep.subr.mxu0 0.0
    %734 = vmatpush1.msra.mxu0 0.0
    %735 = vmatprep.subr.mxu0 0.0
    %736 = vmatpush1.msra.mxu0 0.0
    %737 = vmatprep.subr.mxu0 0.0
    %738 = vmatpush1.msra.mxu0 0.0
    %739 = vmatprep.subr.mxu0 0.0
    %740 = vmatpush1.msra.mxu0 0.0
    %741 = vmatprep.subr.mxu0 0.0
    %742 = vmatpush1.msra.mxu0 0.0
    %743 = vmatprep.subr.mxu0 0.0
    %744 = vmatpush1.msra.mxu0 0.0
    %745 = vmatprep.subr.mxu0 0.0
    %746 = vmatpush1.msra.mxu0 0.0
    %747 = vmatprep.subr.mxu0 0.0
    %748 = vmatpush1.msra.mxu0 0.0
    %749 = vmatprep.subr.mxu0 0.0
    %750 = vmatpush1.msra.mxu0 0.0
    %751 = vmatprep.subr.mxu0 0.0
    %752 = vmatpush1.msra.mxu0 0.0
    %753 = vmatprep.subr.mxu0 0.0
    %754 = vmatpush1.msra.mxu0 0.0
    %755 = vmatprep.subr.mxu0 0.0
    %756 = vmatpush1.msra.mxu0 0.0
    %757 = vmatprep.subr.mxu0 0.0
    %758 = vmatpush1.msra.mxu0 0.0
    %759 = vmatprep.subr.mxu0 0.0
    %760 = vmatpush1.msra.mxu0 0.0
    %761 = vmatprep.subr.mxu0 0.0
    %762 = vmatpush1.msra.mxu0 0.0
    %763 = vmatprep.subr.mxu0 0.0
    %764 = vmatpush1.msra.mxu0 0.0
    %765 = vmatprep.subr.mxu0 0.0
    %766 = vmatpush1.msra.mxu0 0.0
    %767 = vmatprep.subr.mxu0 0.0
    %768 = vmatpush1.msra.mxu0 0.0
    %769 = vmatprep.subr.mxu0 0.0
    %770 = vmatpush1.msra.mxu0 0.0
    %771 = vmatprep.subr.mxu0 0.0
    %772 = vmatpush1.msra.mxu0 0.0
    %773 = vmatprep.subr.mxu0 0.0
    %774 = vmatpush1.msra.mxu0 0.0
    %775 = vmatprep.subr.mxu0 0.0
    %776 = vmatpush1.msra.mxu0 0.0
    %777 = vmatprep.subr.mxu0 0.0
    %778 = vmatpush1.msra.mxu0 0.0
    %779 = vmatprep.subr.mxu0 0.0
    %780 = vmatpush1.msra.mxu0 0.0
    %781 = vmatprep.mubr.f32.mxu0 0.0
    %782 = vmatmul.mubr.f32.gmra.mrb[0].mxu0 %v292
    %v783 = vpop.f32.mrb[0].mxu0
    %v784 = vadd.f32 %v197, %v783
    %v785 = vpop.f32.mrb[0].mxu0
    %786 = vdwg.mxu0
    %787 = vmatprep.subr.mxu0 0.0
    %788 = vmatpush1.msra.mxu0 %v54
    %789 = vmatprep.subr.mxu0 0.0
    %790 = vmatpush1.msra.mxu0 %v55
    %791 = vmatprep.subr.mxu0 0.0
    %792 = vmatpush1.msra.mxu0 %v56
    %793 = vmatprep.subr.mxu0 0.0
    %794 = vmatpush1.msra.mxu0 %v57
    %795 = vmatprep.subr.mxu0 0.0
    %796 = vmatpush1.msra.mxu0 0.0
    %797 = vmatprep.subr.mxu0 0.0
    %798 = vmatpush1.msra.mxu0 0.0
    %799 = vmatprep.subr.mxu0 0.0
    %800 = vmatpush1.msra.mxu0 0.0
    %801 = vmatprep.subr.mxu0 0.0
    %802 = vmatpush1.msra.mxu0 0.0
    %803 = vmatprep.subr.mxu0 0.0
    %804 = vmatpush1.msra.mxu0 0.0
    %805 = vmatprep.subr.mxu0 0.0
    %806 = vmatpush1.msra.mxu0 0.0
    %807 = vmatprep.subr.mxu0 0.0
    %808 = vmatpush1.msra.mxu0 0.0
    %809 = vmatprep.subr.mxu0 0.0
    %810 = vmatpush1.msra.mxu0 0.0
    %811 = vmatprep.subr.mxu0 0.0
    %812 = vmatpush1.msra.mxu0 0.0
    %813 = vmatprep.subr.mxu0 0.0
    %814 = vmatpush1.msra.mxu0 0.0
    %815 = vmatprep.subr.mxu0 0.0
    %816 = vmatpush1.msra.mxu0 0.0
    %817 = vmatprep.subr.mxu0 0.0
    %818 = vmatpush1.msra.mxu0 0.0
    %819 = vmatprep.subr.mxu0 0.0
    %820 = vmatpush1.msra.mxu0 0.0
    %821 = vmatprep.subr.mxu0 0.0
    %822 = vmatpush1.msra.mxu0 0.0
    %823 = vmatprep.subr.mxu0 0.0
    %824 = vmatpush1.msra.mxu0 0.0
    %825 = vmatprep.subr.mxu0 0.0
    %826 = vmatpush1.msra.mxu0 0.0
    %827 = vmatprep.subr.mxu0 0.0
    %828 = vmatpush1.msra.mxu0 0.0
    %829 = vmatprep.subr.mxu0 0.0
    %830 = vmatpush1.msra.mxu0 0.0
    %831 = vmatprep.subr.mxu0 0.0
    %832 = vmatpush1.msra.mxu0 0.0
    %833 = vmatprep.subr.mxu0 0.0
    %834 = vmatpush1.msra.mxu0 0.0
    %835 = vmatprep.subr.mxu0 0.0
    %836 = vmatpush1.msra.mxu0 0.0
    %837 = vmatprep.subr.mxu0 0.0
    %838 = vmatpush1.msra.mxu0 0.0
    %839 = vmatprep.subr.mxu0 0.0
    %840 = vmatpush1.msra.mxu0 0.0
    %841 = vmatprep.subr.mxu0 0.0
    %842 = vmatpush1.msra.mxu0 0.0
    %843 = vmatprep.subr.mxu0 0.0
    %844 = vmatpush1.msra.mxu0 0.0
    %845 = vmatprep.subr.mxu0 0.0
    %846 = vmatpush1.msra.mxu0 0.0
    %847 = vmatprep.subr.mxu0 0.0
    %848 = vmatpush1.msra.mxu0 0.0
    %849 = vmatprep.subr.mxu0 0.0
    %850 = vmatpush1.msra.mxu0 0.0
    %851 = vmatprep.mubr.f32.mxu0 0.0
    %852 = vmatmul.mubr.f32.gmra.mrb[0].mxu0 %v365
    %v853 = vpop.f32.mrb[0].mxu0
    %v854 = vadd.f32 %v201, %v853
    %v855 = vpop.f32.mrb[0].mxu0
    %856 = vdwg.mxu0
    %857 = vmatprep.subr.mxu0 0.0
    %858 = vmatpush1.msra.mxu0 %v58
    %859 = vmatprep.subr.mxu0 0.0
    %860 = vmatpush1.msra.mxu0 %v59
    %861 = vmatprep.subr.mxu0 0.0
    %862 = vmatpush1.msra.mxu0 %v60
    %863 = vmatprep.subr.mxu0 0.0
    %864 = vmatpush1.msra.mxu0 %v61
    %865 = vmatprep.subr.mxu0 0.0
    %866 = vmatpush1.msra.mxu0 0.0
    %867 = vmatprep.subr.mxu0 0.0
    %868 = vmatpush1.msra.mxu0 0.0
    %869 = vmatprep.subr.mxu0 0.0
    %870 = vmatpush1.msra.mxu0 0.0
    %871 = vmatprep.subr.mxu0 0.0
    %872 = vmatpush1.msra.mxu0 0.0
    %873 = vmatprep.subr.mxu0 0.0
    %874 = vmatpush1.msra.mxu0 0.0
    %875 = vmatprep.subr.mxu0 0.0
    %876 = vmatpush1.msra.mxu0 0.0
    %877 = vmatprep.subr.mxu0 0.0
    %878 = vmatpush1.msra.mxu0 0.0
    %879 = vmatprep.subr.mxu0 0.0
    %880 = vmatpush1.msra.mxu0 0.0
    %881 = vmatprep.subr.mxu0 0.0
    %882 = vmatpush1.msra.mxu0 0.0
    %883 = vmatprep.subr.mxu0 0.0
    %884 = vmatpush1.msra.mxu0 0.0
    %885 = vmatprep.subr.mxu0 0.0
    %886 = vmatpush1.msra.mxu0 0.0
    %887 = vmatprep.subr.mxu0 0.0
    %888 = vmatpush1.msra.mxu0 0.0
    %889 = vmatprep.subr.mxu0 0.0
    %890 = vmatpush1.msra.mxu0 0.0
    %891 = vmatprep.subr.mxu0 0.0
    %892 = vmatpush1.msra.mxu0 0.0
    %893 = vmatprep.subr.mxu0 0.0
    %894 = vmatpush1.msra.mxu0 0.0
    %895 = vmatprep.subr.mxu0 0.0
    %896 = vmatpush1.msra.mxu0 0.0
    %897 = vmatprep.subr.mxu0 0.0
    %898 = vmatpush1.msra.mxu0 0.0
    %899 = vmatprep.subr.mxu0 0.0
    %900 = vmatpush1.msra.mxu0 0.0
    %901 = vmatprep.subr.mxu0 0.0
    %902 = vmatpush1.msra.mxu0 0.0
    %903 = vmatprep.subr.mxu0 0.0
    %904 = vmatpush1.msra.mxu0 0.0
    %905 = vmatprep.subr.mxu0 0.0
    %906 = vmatpush1.msra.mxu0 0.0
    %907 = vmatprep.subr.mxu0 0.0
    %908 = vmatpush1.msra.mxu0 0.0
    %909 = vmatprep.subr.mxu0 0.0
    %910 = vmatpush1.msra.mxu0 0.0
    %911 = vmatprep.subr.mxu0 0.0
    %912 = vmatpush1.msra.mxu0 0.0
    %913 = vmatprep.subr.mxu0 0.0
    %914 = vmatpush1.msra.mxu0 0.0
    %915 = vmatprep.subr.mxu0 0.0
    %916 = vmatpush1.msra.mxu0 0.0
    %917 = vmatprep.subr.mxu0 0.0
    %918 = vmatpush1.msra.mxu0 0.0
    %919 = vmatprep.subr.mxu0 0.0
    %920 = vmatpush1.msra.mxu0 0.0
    %921 = vmatprep.mubr.f32.mxu0 0.0
    %922 = vmatmul.mubr.f32.gmra.mrb[0].mxu0 %v292
    %v923 = vpop.f32.mrb[0].mxu0
    %v924 = vadd.f32 %v205, %v923
    %v925 = vpop.f32.mrb[0].mxu0
    %926 = vdwg.mxu0
    %927 = vmatprep.subr.mxu0 0.0
    %928 = vmatpush1.msra.mxu0 %v62
    %929 = vmatprep.subr.mxu0 0.0
    %930 = vmatpush1.msra.mxu0 %v63
    %931 = vmatprep.subr.mxu0 0.0
    %932 = vmatpush1.msra.mxu0 %v64
    %933 = vmatprep.subr.mxu0 0.0
    %934 = vmatpush1.msra.mxu0 %v65
    %935 = vmatprep.subr.mxu0 0.0
    %936 = vmatpush1.msra.mxu0 0.0
    %937 = vmatprep.subr.mxu0 0.0
    %938 = vmatpush1.msra.mxu0 0.0
    %939 = vmatprep.subr.mxu0 0.0
    %940 = vmatpush1.msra.mxu0 0.0
    %941 = vmatprep.subr.mxu0 0.0
    %942 = vmatpush1.msra.mxu0 0.0
    %943 = vmatprep.subr.mxu0 0.0
    %944 = vmatpush1.msra.mxu0 0.0
    %945 = vmatprep.subr.mxu0 0.0
    %946 = vmatpush1.msra.mxu0 0.0
    %947 = vmatprep.subr.mxu0 0.0
    %948 = vmatpush1.msra.mxu0 0.0
    %949 = vmatprep.subr.mxu0 0.0
    %950 = vmatpush1.msra.mxu0 0.0
    %951 = vmatprep.subr.mxu0 0.0
    %952 = vmatpush1.msra.mxu0 0.0
    %953 = vmatprep.subr.mxu0 0.0
    %954 = vmatpush1.msra.mxu0 0.0
    %955 = vmatprep.subr.mxu0 0.0
    %956 = vmatpush1.msra.mxu0 0.0
    %957 = vmatprep.subr.mxu0 0.0
    %958 = vmatpush1.msra.mxu0 0.0
    %959 = vmatprep.subr.mxu0 0.0
    %960 = vmatpush1.msra.mxu0 0.0
    %961 = vmatprep.subr.mxu0 0.0
    %962 = vmatpush1.msra.mxu0 0.0
    %963 = vmatprep.subr.mxu0 0.0
    %964 = vmatpush1.msra.mxu0 0.0
    %965 = vmatprep.subr.mxu0 0.0
    %966 = vmatpush1.msra.mxu0 0.0
    %967 = vmatprep.subr.mxu0 0.0
    %968 = vmatpush1.msra.mxu0 0.0
    %969 = vmatprep.subr.mxu0 0.0
    %970 = vmatpush1.msra.mxu0 0.0
    %971 = vmatprep.subr.mxu0 0.0
    %972 = vmatpush1.msra.mxu0 0.0
    %973 = vmatprep.subr.mxu0 0.0
    %974 = vmatpush1.msra.mxu0 0.0
    %975 = vmatprep.subr.mxu0 0.0
    %976 = vmatpush1.msra.mxu0 0.0
    %977 = vmatprep.subr.mxu0 0.0
    %978 = vmatpush1.msra.mxu0 0.0
    %979 = vmatprep.subr.mxu0 0.0
    %980 = vmatpush1.msra.mxu0 0.0
    %981 = vmatprep.subr.mxu0 0.0
    %982 = vmatpush1.msra.mxu0 0.0
    %983 = vmatprep.subr.mxu0 0.0
    %984 = vmatpush1.msra.mxu0 0.0
    %985 = vmatprep.subr.mxu0 0.0
    %986 = vmatpush1.msra.mxu0 0.0
    %987 = vmatprep.subr.mxu0 0.0
    %988 = vmatpush1.msra.mxu0 0.0
    %989 = vmatprep.subr.mxu0 0.0
    %990 = vmatpush1.msra.mxu0 0.0
    %991 = vmatprep.mubr.f32.mxu0 0.0
    %992 = vmatmul.mubr.f32.gmra.mrb[0].mxu0 %v365
    %v993 = vpop.f32.mrb[0].mxu0
    %v994 = vadd.f32 %v209, %v993
    %v995 = vpop.f32.mrb[0].mxu0
    %996 = vdwg.mxu0
    %997 = vmatprep.subr.mxu0 0.0
    %998 = vmatpush1.msra.mxu0 %v66
    %999 = vmatprep.subr.mxu0 0.0
    %1000 = vmatpush1.msra.mxu0 %v67
    %1001 = vmatprep.subr.mxu0 0.0
    %1002 = vmatpush1.msra.mxu0 %v68
    %1003 = vmatprep.subr.mxu0 0.0
    %1004 = vmatpush1.msra.mxu0 %v69
    %1005 = vmatprep.subr.mxu0 0.0
    %1006 = vmatpush1.msra.mxu0 0.0
    %1007 = vmatprep.subr.mxu0 0.0
    %1008 = vmatpush1.msra.mxu0 0.0
    %1009 = vmatprep.subr.mxu0 0.0
    %1010 = vmatpush1.msra.mxu0 0.0
    %1011 = vmatprep.subr.mxu0 0.0
    %1012 = vmatpush1.msra.mxu0 0.0
    %1013 = vmatprep.subr.mxu0 0.0
    %1014 = vmatpush1.msra.mxu0 0.0
    %1015 = vmatprep.subr.mxu0 0.0
    %1016 = vmatpush1.msra.mxu0 0.0
    %1017 = vmatprep.subr.mxu0 0.0
    %1018 = vmatpush1.msra.mxu0 0.0
    %1019 = vmatprep.subr.mxu0 0.0
    %1020 = vmatpush1.msra.mxu0 0.0
    %1021 = vmatprep.subr.mxu0 0.0
    %1022 = vmatpush1.msra.mxu0 0.0
    %1023 = vmatprep.subr.mxu0 0.0
    %1024 = vmatpush1.msra.mxu0 0.0
    %1025 = vmatprep.subr.mxu0 0.0
    %1026 = vmatpush1.msra.mxu0 0.0
    %1027 = vmatprep.subr.mxu0 0.0
    %1028 = vmatpush1.msra.mxu0 0.0
    %1029 = vmatprep.subr.mxu0 0.0
    %1030 = vmatpush1.msra.mxu0 0.0
    %1031 = vmatprep.subr.mxu0 0.0
    %1032 = vmatpush1.msra.mxu0 0.0
    %1033 = vmatprep.subr.mxu0 0.0
    %1034 = vmatpush1.msra.mxu0 0.0
    %1035 = vmatprep.subr.mxu0 0.0
    %1036 = vmatpush1.msra.mxu0 0.0
    %1037 = vmatprep.subr.mxu0 0.0
    %1038 = vmatpush1.msra.mxu0 0.0
    %1039 = vmatprep.subr.mxu0 0.0
    %1040 = vmatpush1.msra.mxu0 0.0
    %1041 = vmatprep.subr.mxu0 0.0
    %1042 = vmatpush1.msra.mxu0 0.0
    %1043 = vmatprep.subr.mxu0 0.0
    %1044 = vmatpush1.msra.mxu0 0.0
    %1045 = vmatprep.subr.mxu0 0.0
    %1046 = vmatpush1.msra.mxu0 0.0
    %1047 = vmatprep.subr.mxu0 0.0
    %1048 = vmatpush1.msra.mxu0 0.0
    %1049 = vmatprep.subr.mxu0 0.0
    %1050 = vmatpush1.msra.mxu0 0.0
    %1051 = vmatprep.subr.mxu0 0.0
    %1052 = vmatpush1.msra.mxu0 0.0
    %1053 = vmatprep.subr.mxu0 0.0
    %1054 = vmatpush1.msra.mxu0 0.0
    %1055 = vmatprep.subr.mxu0 0.0
    %1056 = vmatpush1.msra.mxu0 0.0
    %1057 = vmatprep.subr.mxu0 0.0
    %1058 = vmatpush1.msra.mxu0 0.0
    %1059 = vmatprep.subr.mxu0 0.0
    %1060 = vmatpush1.msra.mxu0 0.0
    %1061 = vmatprep.mubr.f32.mxu0 0.0
    %1062 = vmatmul.mubr.f32.gmra.mrb[0].mxu0 %v292
    %v1063 = vpop.f32.mrb[0].mxu0
    %v1064 = vadd.f32 %v213, %v1063
    %v1065 = vpop.f32.mrb[0].mxu0
    %1066 = vdwg.mxu0
    %1067 = vmatprep.subr.mxu0 0.0
    %1068 = vmatpush1.msra.mxu0 %v70
    %1069 = vmatprep.subr.mxu0 0.0
    %1070 = vmatpush1.msra.mxu0 %v71
    %1071 = vmatprep.subr.mxu0 0.0
    %1072 = vmatpush1.msra.mxu0 %v72
    %1073 = vmatprep.subr.mxu0 0.0
    %1074 = vmatpush1.msra.mxu0 %v73
    %1075 = vmatprep.subr.mxu0 0.0
    %1076 = vmatpush1.msra.mxu0 0.0
    %1077 = vmatprep.subr.mxu0 0.0
    %1078 = vmatpush1.msra.mxu0 0.0
    %1079 = vmatprep.subr.mxu0 0.0
    %1080 = vmatpush1.msra.mxu0 0.0
    %1081 = vmatprep.subr.mxu0 0.0
    %1082 = vmatpush1.msra.mxu0 0.0
    %1083 = vmatprep.subr.mxu0 0.0
    %1084 = vmatpush1.msra.mxu0 0.0
    %1085 = vmatprep.subr.mxu0 0.0
    %1086 = vmatpush1.msra.mxu0 0.0
    %1087 = vmatprep.subr.mxu0 0.0
    %1088 = vmatpush1.msra.mxu0 0.0
    %1089 = vmatprep.subr.mxu0 0.0
    %1090 = vmatpush1.msra.mxu0 0.0
    %1091 = vmatprep.subr.mxu0 0.0
    %1092 = vmatpush1.msra.mxu0 0.0
    %1093 = vmatprep.subr.mxu0 0.0
    %1094 = vmatpush1.msra.mxu0 0.0
    %1095 = vmatprep.subr.mxu0 0.0
    %1096 = vmatpush1.msra.mxu0 0.0
    %1097 = vmatprep.subr.mxu0 0.0
    %1098 = vmatpush1.msra.mxu0 0.0
    %1099 = vmatprep.subr.mxu0 0.0
    %1100 = vmatpush1.msra.mxu0 0.0
    %1101 = vmatprep.subr.mxu0 0.0
    %1102 = vmatpush1.msra.mxu0 0.0
    %1103 = vmatprep.subr.mxu0 0.0
    %1104 = vmatpush1.msra.mxu0 0.0
    %1105 = vmatprep.subr.mxu0 0.0
    %1106 = vmatpush1.msra.mxu0 0.0
    %1107 = vmatprep.subr.mxu0 0.0
    %1108 = vmatpush1.msra.mxu0 0.0
    %1109 = vmatprep.subr.mxu0 0.0
    %1110 = vmatpush1.msra.mxu0 0.0
    %1111 = vmatprep.subr.mxu0 0.0
    %1112 = vmatpush1.msra.mxu0 0.0
    %1113 = vmatprep.subr.mxu0 0.0
    %1114 = vmatpush1.msra.mxu0 0.0
    %1115 = vmatprep.subr.mxu0 0.0
    %1116 = vmatpush1.msra.mxu0 0.0
    %1117 = vmatprep.subr.mxu0 0.0
    %1118 = vmatpush1.msra.mxu0 0.0
    %1119 = vmatprep.subr.mxu0 0.0
    %1120 = vmatpush1.msra.mxu0 0.0
    %1121 = vmatprep.subr.mxu0 0.0
    %1122 = vmatpush1.msra.mxu0 0.0
    %1123 = vmatprep.subr.mxu0 0.0
    %1124 = vmatpush1.msra.mxu0 0.0
    %1125 = vmatprep.subr.mxu0 0.0
    %1126 = vmatpush1.msra.mxu0 0.0
    %1127 = vmatprep.subr.mxu0 0.0
    %1128 = vmatpush1.msra.mxu0 0.0
    %1129 = vmatprep.subr.mxu0 0.0
    %1130 = vmatpush1.msra.mxu0 0.0
    %1131 = vmatprep.mubr.f32.mxu0 0.0
    %1132 = vmatmul.mubr.f32.gmra.mrb[0].mxu0 %v365
    %v1133 = vpop.f32.mrb[0].mxu0
    %v1134 = vadd.f32 %v217, %v1133
    %v1135 = vpop.f32.mrb[0].mxu0
    %1136 = vdwg.mxu0
    %1137 = vmatprep.subr.mxu0 0.0
    %1138 = vmatpush1.msra.mxu0 %v74
    %1139 = vmatprep.subr.mxu0 0.0
    %1140 = vmatpush1.msra.mxu0 %v75
    %1141 = vmatprep.subr.mxu0 0.0
    %1142 = vmatpush1.msra.mxu0 %v76
    %1143 = vmatprep.subr.mxu0 0.0
    %1144 = vmatpush1.msra.mxu0 %v77
    %1145 = vmatprep.subr.mxu0 0.0
    %1146 = vmatpush1.msra.mxu0 0.0
    %1147 = vmatprep.subr.mxu0 0.0
    %1148 = vmatpush1.msra.mxu0 0.0
    %1149 = vmatprep.subr.mxu0 0.0
    %1150 = vmatpush1.msra.mxu0 0.0
    %1151 = vmatprep.subr.mxu0 0.0
    %1152 = vmatpush1.msra.mxu0 0.0
    %1153 = vmatprep.subr.mxu0 0.0
    %1154 = vmatpush1.msra.mxu0 0.0
    %1155 = vmatprep.subr.mxu0 0.0
    %1156 = vmatpush1.msra.mxu0 0.0
    %1157 = vmatprep.subr.mxu0 0.0
    %1158 = vmatpush1.msra.mxu0 0.0
    %1159 = vmatprep.subr.mxu0 0.0
    %1160 = vmatpush1.msra.mxu0 0.0
    %1161 = vmatprep.subr.mxu0 0.0
    %1162 = vmatpush1.msra.mxu0 0.0
    %1163 = vmatprep.subr.mxu0 0.0
    %1164 = vmatpush1.msra.mxu0 0.0
    %1165 = vmatprep.subr.mxu0 0.0
    %1166 = vmatpush1.msra.mxu0 0.0
    %1167 = vmatprep.subr.mxu0 0.0
    %1168 = vmatpush1.msra.mxu0 0.0
    %1169 = vmatprep.subr.mxu0 0.0
    %1170 = vmatpush1.msra.mxu0 0.0
    %1171 = vmatprep.subr.mxu0 0.0
    %1172 = vmatpush1.msra.mxu0 0.0
    %1173 = vmatprep.subr.mxu0 0.0
    %1174 = vmatpush1.msra.mxu0 0.0
    %1175 = vmatprep.subr.mxu0 0.0
    %1176 = vmatpush1.msra.mxu0 0.0
    %1177 = vmatprep.subr.mxu0 0.0
    %1178 = vmatpush1.msra.mxu0 0.0
    %1179 = vmatprep.subr.mxu0 0.0
    %1180 = vmatpush1.msra.mxu0 0.0
    %1181 = vmatprep.subr.mxu0 0.0
    %1182 = vmatpush1.msra.mxu0 0.0
    %1183 = vmatprep.subr.mxu0 0.0
    %1184 = vmatpush1.msra.mxu0 0.0
    %1185 = vmatprep.subr.mxu0 0.0
    %1186 = vmatpush1.msra.mxu0 0.0
    %1187 = vmatprep.subr.mxu0 0.0
    %1188 = vmatpush1.msra.mxu0 0.0
    %1189 = vmatprep.subr.mxu0 0.0
    %1190 = vmatpush1.msra.mxu0 0.0
    %1191 = vmatprep.subr.mxu0 0.0
    %1192 = vmatpush1.msra.mxu0 0.0
    %1193 = vmatprep.subr.mxu0 0.0
    %1194 = vmatpush1.msra.mxu0 0.0
    %1195 = vmatprep.subr.mxu0 0.0
    %1196 = vmatpush1.msra.mxu0 0.0
    %1197 = vmatprep.subr.mxu0 0.0
    %1198 = vmatpush1.msra.mxu0 0.0
    %1199 = vmatprep.subr.mxu0 0.0
    %1200 = vmatpush1.msra.mxu0 0.0
    %1201 = vmatprep.mubr.f32.mxu0 0.0
    %1202 = vmatmul.mubr.f32.gmra.mrb[0].mxu0 %v292
    %v1203 = vpop.f32.mrb[0].mxu0
    %v1204 = vadd.f32 %v221, %v1203
    %v1205 = vpop.f32.mrb[0].mxu0
    %1206 = vdwg.mxu0
    %1207 = vmatprep.subr.mxu0 0.0
    %1208 = vmatpush1.msra.mxu0 %v78
    %1209 = vmatprep.subr.mxu0 0.0
    %1210 = vmatpush1.msra.mxu0 %v79
    %1211 = vmatprep.subr.mxu0 0.0
    %1212 = vmatpush1.msra.mxu0 %v80
    %1213 = vmatprep.subr.mxu0 0.0
    %1214 = vmatpush1.msra.mxu0 %v81
    %1215 = vmatprep.subr.mxu0 0.0
    %1216 = vmatpush1.msra.mxu0 0.0
    %1217 = vmatprep.subr.mxu0 0.0
    %1218 = vmatpush1.msra.mxu0 0.0
    %1219 = vmatprep.subr.mxu0 0.0
    %1220 = vmatpush1.msra.mxu0 0.0
    %1221 = vmatprep.subr.mxu0 0.0
    %1222 = vmatpush1.msra.mxu0 0.0
    %1223 = vmatprep.subr.mxu0 0.0
    %1224 = vmatpush1.msra.mxu0 0.0
    %1225 = vmatprep.subr.mxu0 0.0
    %1226 = vmatpush1.msra.mxu0 0.0
    %1227 = vmatprep.subr.mxu0 0.0
    %1228 = vmatpush1.msra.mxu0 0.0
    %1229 = vmatprep.subr.mxu0 0.0
    %1230 = vmatpush1.msra.mxu0 0.0
    %1231 = vmatprep.subr.mxu0 0.0
    %1232 = vmatpush1.msra.mxu0 0.0
    %1233 = vmatprep.subr.mxu0 0.0
    %1234 = vmatpush1.msra.mxu0 0.0
    %1235 = vmatprep.subr.mxu0 0.0
    %1236 = vmatpush1.msra.mxu0 0.0
    %1237 = vmatprep.subr.mxu0 0.0
    %1238 = vmatpush1.msra.mxu0 0.0
    %1239 = vmatprep.subr.mxu0 0.0
    %1240 = vmatpush1.msra.mxu0 0.0
    %1241 = vmatprep.subr.mxu0 0.0
    %1242 = vmatpush1.msra.mxu0 0.0
    %1243 = vmatprep.subr.mxu0 0.0
    %1244 = vmatpush1.msra.mxu0 0.0
    %1245 = vmatprep.subr.mxu0 0.0
    %1246 = vmatpush1.msra.mxu0 0.0
    %1247 = vmatprep.subr.mxu0 0.0
    %1248 = vmatpush1.msra.mxu0 0.0
    %1249 = vmatprep.subr.mxu0 0.0
    %1250 = vmatpush1.msra.mxu0 0.0
    %1251 = vmatprep.subr.mxu0 0.0
    %1252 = vmatpush1.msra.mxu0 0.0
    %1253 = vmatprep.subr.mxu0 0.0
    %1254 = vmatpush1.msra.mxu0 0.0
    %1255 = vmatprep.subr.mxu0 0.0
    %1256 = vmatpush1.msra.mxu0 0.0
    %1257 = vmatprep.subr.mxu0 0.0
    %1258 = vmatpush1.msra.mxu0 0.0
    %1259 = vmatprep.subr.mxu0 0.0
    %1260 = vmatpush1.msra.mxu0 0.0
    %1261 = vmatprep.subr.mxu0 0.0
    %1262 = vmatpush1.msra.mxu0 0.0
    %1263 = vmatprep.subr.mxu0 0.0
    %1264 = vmatpush1.msra.mxu0 0.0
    %1265 = vmatprep.subr.mxu0 0.0
    %1266 = vmatpush1.msra.mxu0 0.0
    %1267 = vmatprep.subr.mxu0 0.0
    %1268 = vmatpush1.msra.mxu0 0.0
    %1269 = vmatprep.subr.mxu0 0.0
    %1270 = vmatpush1.msra.mxu0 0.0
    %1271 = vmatprep.mubr.f32.mxu0 0.0
    %1272 = vmatmul.mubr.f32.gmra.mrb[0].mxu0 %v365
    %v1273 = vpop.f32.mrb[0].mxu0
    %v1274 = vadd.f32 %v225, %v1273
    %v1275 = vpop.f32.mrb[0].mxu0
    %1276 = vdwg.mxu0
    %1277 = vmatprep.subr.mxu0 0.0
    %1278 = vmatpush1.msra.mxu0 %v82
    %1279 = vmatprep.subr.mxu0 0.0
    %1280 = vmatpush1.msra.mxu0 %v83
    %1281 = vmatprep.subr.mxu0 0.0
    %1282 = vmatpush1.msra.mxu0 %v84
    %1283 = vmatprep.subr.mxu0 0.0
    %1284 = vmatpush1.msra.mxu0 %v85
    %1285 = vmatprep.subr.mxu0 0.0
    %1286 = vmatpush1.msra.mxu0 0.0
    %1287 = vmatprep.subr.mxu0 0.0
    %1288 = vmatpush1.msra.mxu0 0.0
    %1289 = vmatprep.subr.mxu0 0.0
    %1290 = vmatpush1.msra.mxu0 0.0
    %1291 = vmatprep.subr.mxu0 0.0
    %1292 = vmatpush1.msra.mxu0 0.0
    %1293 = vmatprep.subr.mxu0 0.0
    %1294 = vmatpush1.msra.mxu0 0.0
    %1295 = vmatprep.subr.mxu0 0.0
    %1296 = vmatpush1.msra.mxu0 0.0
    %1297 = vmatprep.subr.mxu0 0.0
    %1298 = vmatpush1.msra.mxu0 0.0
    %1299 = vmatprep.subr.mxu0 0.0
    %1300 = vmatpush1.msra.mxu0 0.0
    %1301 = vmatprep.subr.mxu0 0.0
    %1302 = vmatpush1.msra.mxu0 0.0
    %1303 = vmatprep.subr.mxu0 0.0
    %1304 = vmatpush1.msra.mxu0 0.0
    %1305 = vmatprep.subr.mxu0 0.0
    %1306 = vmatpush1.msra.mxu0 0.0
    %1307 = vmatprep.subr.mxu0 0.0
    %1308 = vmatpush1.msra.mxu0 0.0
    %1309 = vmatprep.subr.mxu0 0.0
    %1310 = vmatpush1.msra.mxu0 0.0
    %1311 = vmatprep.subr.mxu0 0.0
    %1312 = vmatpush1.msra.mxu0 0.0
    %1313 = vmatprep.subr.mxu0 0.0
    %1314 = vmatpush1.msra.mxu0 0.0
    %1315 = vmatprep.subr.mxu0 0.0
    %1316 = vmatpush1.msra.mxu0 0.0
    %1317 = vmatprep.subr.mxu0 0.0
    %1318 = vmatpush1.msra.mxu0 0.0
    %1319 = vmatprep.subr.mxu0 0.0
    %1320 = vmatpush1.msra.mxu0 0.0
    %1321 = vmatprep.subr.mxu0 0.0
    %1322 = vmatpush1.msra.mxu0 0.0
    %1323 = vmatprep.subr.mxu0 0.0
    %1324 = vmatpush1.msra.mxu0 0.0
    %1325 = vmatprep.subr.mxu0 0.0
    %1326 = vmatpush1.msra.mxu0 0.0
    %1327 = vmatprep.subr.mxu0 0.0
    %1328 = vmatpush1.msra.mxu0 0.0
    %1329 = vmatprep.subr.mxu0 0.0
    %1330 = vmatpush1.msra.mxu0 0.0
    %1331 = vmatprep.subr.mxu0 0.0
    %1332 = vmatpush1.msra.mxu0 0.0
    %1333 = vmatprep.subr.mxu0 0.0
    %1334 = vmatpush1.msra.mxu0 0.0
    %1335 = vmatprep.subr.mxu0 0.0
    %1336 = vmatpush1.msra.mxu0 0.0
    %1337 = vmatprep.subr.mxu0 0.0
    %1338 = vmatpush1.msra.mxu0 0.0
    %1339 = vmatprep.subr.mxu0 0.0
    %1340 = vmatpush1.msra.mxu0 0.0
    %1341 = vmatprep.mubr.f32.mxu0 0.0
    %1342 = vmatmul.mubr.f32.gmra.mrb[0].mxu0 %v292
    %v1343 = vpop.f32.mrb[0].mxu0
    %v1344 = vadd.f32 %v229, %v1343
    %v1345 = vpop.f32.mrb[0].mxu0
    %1346 = vdwg.mxu0
    %1347 = vmatprep.subr.mxu0 0.0
    %1348 = vmatpush1.msra.mxu0 %v86
    %1349 = vmatprep.subr.mxu0 0.0
    %1350 = vmatpush1.msra.mxu0 %v87
    %1351 = vmatprep.subr.mxu0 0.0
    %1352 = vmatpush1.msra.mxu0 %v88
    %1353 = vmatprep.subr.mxu0 0.0
    %1354 = vmatpush1.msra.mxu0 %v89
    %1355 = vmatprep.subr.mxu0 0.0
    %1356 = vmatpush1.msra.mxu0 0.0
    %1357 = vmatprep.subr.mxu0 0.0
    %1358 = vmatpush1.msra.mxu0 0.0
    %1359 = vmatprep.subr.mxu0 0.0
    %1360 = vmatpush1.msra.mxu0 0.0
    %1361 = vmatprep.subr.mxu0 0.0
    %1362 = vmatpush1.msra.mxu0 0.0
    %1363 = vmatprep.subr.mxu0 0.0
    %1364 = vmatpush1.msra.mxu0 0.0
    %1365 = vmatprep.subr.mxu0 0.0
    %1366 = vmatpush1.msra.mxu0 0.0
    %1367 = vmatprep.subr.mxu0 0.0
    %1368 = vmatpush1.msra.mxu0 0.0
    %1369 = vmatprep.subr.mxu0 0.0
    %1370 = vmatpush1.msra.mxu0 0.0
    %1371 = vmatprep.subr.mxu0 0.0
    %1372 = vmatpush1.msra.mxu0 0.0
    %1373 = vmatprep.subr.mxu0 0.0
    %1374 = vmatpush1.msra.mxu0 0.0
    %1375 = vmatprep.subr.mxu0 0.0
    %1376 = vmatpush1.msra.mxu0 0.0
    %1377 = vmatprep.subr.mxu0 0.0
    %1378 = vmatpush1.msra.mxu0 0.0
    %1379 = vmatprep.subr.mxu0 0.0
    %1380 = vmatpush1.msra.mxu0 0.0
    %1381 = vmatprep.subr.mxu0 0.0
    %1382 = vmatpush1.msra.mxu0 0.0
    %1383 = vmatprep.subr.mxu0 0.0
    %1384 = vmatpush1.msra.mxu0 0.0
    %1385 = vmatprep.subr.mxu0 0.0
    %1386 = vmatpush1.msra.mxu0 0.0
    %1387 = vmatprep.subr.mxu0 0.0
    %1388 = vmatpush1.msra.mxu0 0.0
    %1389 = vmatprep.subr.mxu0 0.0
    %1390 = vmatpush1.msra.mxu0 0.0
    %1391 = vmatprep.subr.mxu0 0.0
    %1392 = vmatpush1.msra.mxu0 0.0
    %1393 = vmatprep.subr.mxu0 0.0
    %1394 = vmatpush1.msra.mxu0 0.0
    %1395 = vmatprep.subr.mxu0 0.0
    %1396 = vmatpush1.msra.mxu0 0.0
    %1397 = vmatprep.subr.mxu0 0.0
    %1398 = vmatpush1.msra.mxu0 0.0
    %1399 = vmatprep.subr.mxu0 0.0
    %1400 = vmatpush1.msra.mxu0 0.0
    %1401 = vmatprep.subr.mxu0 0.0
    %1402 = vmatpush1.msra.mxu0 0.0
    %1403 = vmatprep.subr.mxu0 0.0
    %1404 = vmatpush1.msra.mxu0 0.0
    %1405 = vmatprep.subr.mxu0 0.0
    %1406 = vmatpush1.msra.mxu0 0.0
    %1407 = vmatprep.subr.mxu0 0.0
    %1408 = vmatpush1.msra.mxu0 0.0
    %1409 = vmatprep.subr.mxu0 0.0
    %1410 = vmatpush1.msra.mxu0 0.0
    %1411 = vmatprep.mubr.f32.mxu0 0.0
    %1412 = vmatmul.mubr.f32.gmra.mrb[0].mxu0 %v365
    %v1413 = vpop.f32.mrb[0].mxu0
    %v1414 = vadd.f32 %v233, %v1413
    %v1415 = vpop.f32.mrb[0].mxu0
    %1416 = vdwg.mxu0
    %1417 = vmatprep.subr.mxu0 0.0
    %1418 = vmatpush1.msra.mxu0 %v90
    %1419 = vmatprep.subr.mxu0 0.0
    %1420 = vmatpush1.msra.mxu0 %v91
    %1421 = vmatprep.subr.mxu0 0.0
    %1422 = vmatpush1.msra.mxu0 %v92
    %1423 = vmatprep.subr.mxu0 0.0
    %1424 = vmatpush1.msra.mxu0 %v93
    %1425 = vmatprep.subr.mxu0 0.0
    %1426 = vmatpush1.msra.mxu0 0.0
    %1427 = vmatprep.subr.mxu0 0.0
    %1428 = vmatpush1.msra.mxu0 0.0
    %1429 = vmatprep.subr.mxu0 0.0
    %1430 = vmatpush1.msra.mxu0 0.0
    %1431 = vmatprep.subr.mxu0 0.0
    %1432 = vmatpush1.msra.mxu0 0.0
    %1433 = vmatprep.subr.mxu0 0.0
    %1434 = vmatpush1.msra.mxu0 0.0
    %1435 = vmatprep.subr.mxu0 0.0
    %1436 = vmatpush1.msra.mxu0 0.0
    %1437 = vmatprep.subr.mxu0 0.0
    %1438 = vmatpush1.msra.mxu0 0.0
    %1439 = vmatprep.subr.mxu0 0.0
    %1440 = vmatpush1.msra.mxu0 0.0
    %1441 = vmatprep.subr.mxu0 0.0
    %1442 = vmatpush1.msra.mxu0 0.0
    %1443 = vmatprep.subr.mxu0 0.0
    %1444 = vmatpush1.msra.mxu0 0.0
    %1445 = vmatprep.subr.mxu0 0.0
    %1446 = vmatpush1.msra.mxu0 0.0
    %1447 = vmatprep.subr.mxu0 0.0
    %1448 = vmatpush1.msra.mxu0 0.0
    %1449 = vmatprep.subr.mxu0 0.0
    %1450 = vmatpush1.msra.mxu0 0.0
    %1451 = vmatprep.subr.mxu0 0.0
    %1452 = vmatpush1.msra.mxu0 0.0
    %1453 = vmatprep.subr.mxu0 0.0
    %1454 = vmatpush1.msra.mxu0 0.0
    %1455 = vmatprep.subr.mxu0 0.0
    %1456 = vmatpush1.msra.mxu0 0.0
    %1457 = vmatprep.subr.mxu0 0.0
    %1458 = vmatpush1.msra.mxu0 0.0
    %1459 = vmatprep.subr.mxu0 0.0
    %1460 = vmatpush1.msra.mxu0 0.0
    %1461 = vmatprep.subr.mxu0 0.0
    %1462 = vmatpush1.msra.mxu0 0.0
    %1463 = vmatprep.subr.mxu0 0.0
    %1464 = vmatpush1.msra.mxu0 0.0
    %1465 = vmatprep.subr.mxu0 0.0
    %1466 = vmatpush1.msra.mxu0 0.0
    %1467 = vmatprep.subr.mxu0 0.0
    %1468 = vmatpush1.msra.mxu0 0.0
    %1469 = vmatprep.subr.mxu0 0.0
    %1470 = vmatpush1.msra.mxu0 0.0
    %1471 = vmatprep.subr.mxu0 0.0
    %1472 = vmatpush1.msra.mxu0 0.0
    %1473 = vmatprep.subr.mxu0 0.0
    %1474 = vmatpush1.msra.mxu0 0.0
    %1475 = vmatprep.subr.mxu0 0.0
    %1476 = vmatpush1.msra.mxu0 0.0
    %1477 = vmatprep.subr.mxu0 0.0
    %1478 = vmatpush1.msra.mxu0 0.0
    %1479 = vmatprep.subr.mxu0 0.0
    %1480 = vmatpush1.msra.mxu0 0.0
    %1481 = vmatprep.mubr.f32.mxu0 0.0
    %1482 = vmatmul.mubr.f32.gmra.mrb[0].mxu0 %v292
    %v1483 = vpop.f32.mrb[0].mxu0
    %v1484 = vadd.f32 %v237, %v1483
    %v1485 = vpop.f32.mrb[0].mxu0
    %1486 = vdwg.mxu0
    %1487 = vmatprep.subr.mxu0 0.0
    %1488 = vmatpush1.msra.mxu0 %v94
    %1489 = vmatprep.subr.mxu0 0.0
    %1490 = vmatpush1.msra.mxu0 %v95
    %1491 = vmatprep.subr.mxu0 0.0
    %1492 = vmatpush1.msra.mxu0 %v96
    %1493 = vmatprep.subr.mxu0 0.0
    %1494 = vmatpush1.msra.mxu0 %v97
    %1495 = vmatprep.subr.mxu0 0.0
    %1496 = vmatpush1.msra.mxu0 0.0
    %1497 = vmatprep.subr.mxu0 0.0
    %1498 = vmatpush1.msra.mxu0 0.0
    %1499 = vmatprep.subr.mxu0 0.0
    %1500 = vmatpush1.msra.mxu0 0.0
    %1501 = vmatprep.subr.mxu0 0.0
    %1502 = vmatpush1.msra.mxu0 0.0
    %1503 = vmatprep.subr.mxu0 0.0
    %1504 = vmatpush1.msra.mxu0 0.0
    %1505 = vmatprep.subr.mxu0 0.0
    %1506 = vmatpush1.msra.mxu0 0.0
    %1507 = vmatprep.subr.mxu0 0.0
    %1508 = vmatpush1.msra.mxu0 0.0
    %1509 = vmatprep.subr.mxu0 0.0
    %1510 = vmatpush1.msra.mxu0 0.0
    %1511 = vmatprep.subr.mxu0 0.0
    %1512 = vmatpush1.msra.mxu0 0.0
    %1513 = vmatprep.subr.mxu0 0.0
    %1514 = vmatpush1.msra.mxu0 0.0
    %1515 = vmatprep.subr.mxu0 0.0
    %1516 = vmatpush1.msra.mxu0 0.0
    %1517 = vmatprep.subr.mxu0 0.0
    %1518 = vmatpush1.msra.mxu0 0.0
    %1519 = vmatprep.subr.mxu0 0.0
    %1520 = vmatpush1.msra.mxu0 0.0
    %1521 = vmatprep.subr.mxu0 0.0
    %1522 = vmatpush1.msra.mxu0 0.0
    %1523 = vmatprep.subr.mxu0 0.0
    %1524 = vmatpush1.msra.mxu0 0.0
    %1525 = vmatprep.subr.mxu0 0.0
    %1526 = vmatpush1.msra.mxu0 0.0
    %1527 = vmatprep.subr.mxu0 0.0
    %1528 = vmatpush1.msra.mxu0 0.0
    %1529 = vmatprep.subr.mxu0 0.0
    %1530 = vmatpush1.msra.mxu0 0.0
    %1531 = vmatprep.subr.mxu0 0.0
    %1532 = vmatpush1.msra.mxu0 0.0
    %1533 = vmatprep.subr.mxu0 0.0
    %1534 = vmatpush1.msra.mxu0 0.0
    %1535 = vmatprep.subr.mxu0 0.0
    %1536 = vmatpush1.msra.mxu0 0.0
    %1537 = vmatprep.subr.mxu0 0.0
    %1538 = vmatpush1.msra.mxu0 0.0
    %1539 = vmatprep.subr.mxu0 0.0
    %1540 = vmatpush1.msra.mxu0 0.0
    %1541 = vmatprep.subr.mxu0 0.0
    %1542 = vmatpush1.msra.mxu0 0.0
    %1543 = vmatprep.subr.mxu0 0.0
    %1544 = vmatpush1.msra.mxu0 0.0
    %1545 = vmatprep.subr.mxu0 0.0
    %1546 = vmatpush1.msra.mxu0 0.0
    %1547 = vmatprep.subr.mxu0 0.0
    %1548 = vmatpush1.msra.mxu0 0.0
    %1549 = vmatprep.subr.mxu0 0.0
    %1550 = vmatpush1.msra.mxu0 0.0
    %1551 = vmatprep.mubr.f32.mxu0 0.0
    %1552 = vmatmul.mubr.f32.gmra.mrb[0].mxu0 %v365
    %v1553 = vpop.f32.mrb[0].mxu0
    %v1554 = vadd.f32 %v241, %v1553
    %v1555 = vpop.f32.mrb[0].mxu0
    %1556 = vdwg.mxu0
    %1557 = vmatprep.subr.mxu0 0.0
    %1558 = vmatpush1.msra.mxu0 %v98
    %1559 = vmatprep.subr.mxu0 0.0
    %1560 = vmatpush1.msra.mxu0 %v99
    %1561 = vmatprep.subr.mxu0 0.0
    %1562 = vmatpush1.msra.mxu0 %v100
    %1563 = vmatprep.subr.mxu0 0.0
    %1564 = vmatpush1.msra.mxu0 %v101
    %1565 = vmatprep.subr.mxu0 0.0
    %1566 = vmatpush1.msra.mxu0 0.0
    %1567 = vmatprep.subr.mxu0 0.0
    %1568 = vmatpush1.msra.mxu0 0.0
    %1569 = vmatprep.subr.mxu0 0.0
    %1570 = vmatpush1.msra.mxu0 0.0
    %1571 = vmatprep.subr.mxu0 0.0
    %1572 = vmatpush1.msra.mxu0 0.0
    %1573 = vmatprep.subr.mxu0 0.0
    %1574 = vmatpush1.msra.mxu0 0.0
    %1575 = vmatprep.subr.mxu0 0.0
    %1576 = vmatpush1.msra.mxu0 0.0
    %1577 = vmatprep.subr.mxu0 0.0
    %1578 = vmatpush1.msra.mxu0 0.0
    %1579 = vmatprep.subr.mxu0 0.0
    %1580 = vmatpush1.msra.mxu0 0.0
    %1581 = vmatprep.subr.mxu0 0.0
    %1582 = vmatpush1.msra.mxu0 0.0
    %1583 = vmatprep.subr.mxu0 0.0
    %1584 = vmatpush1.msra.mxu0 0.0
    %1585 = vmatprep.subr.mxu0 0.0
    %1586 = vmatpush1.msra.mxu0 0.0
    %1587 = vmatprep.subr.mxu0 0.0
    %1588 = vmatpush1.msra.mxu0 0.0
    %1589 = vmatprep.subr.mxu0 0.0
    %1590 = vmatpush1.msra.mxu0 0.0
    %1591 = vmatprep.subr.mxu0 0.0
    %1592 = vmatpush1.msra.mxu0 0.0
    %1593 = vmatprep.subr.mxu0 0.0
    %1594 = vmatpush1.msra.mxu0 0.0
    %1595 = vmatprep.subr.mxu0 0.0
    %1596 = vmatpush1.msra.mxu0 0.0
    %1597 = vmatprep.subr.mxu0 0.0
    %1598 = vmatpush1.msra.mxu0 0.0
    %1599 = vmatprep.subr.mxu0 0.0
    %1600 = vmatpush1.msra.mxu0 0.0
    %1601 = vmatprep.subr.mxu0 0.0
    %1602 = vmatpush1.msra.mxu0 0.0
    %1603 = vmatprep.subr.mxu0 0.0
    %1604 = vmatpush1.msra.mxu0 0.0
    %1605 = vmatprep.subr.mxu0 0.0
    %1606 = vmatpush1.msra.mxu0 0.0
    %1607 = vmatprep.subr.mxu0 0.0
    %1608 = vmatpush1.msra.mxu0 0.0
    %1609 = vmatprep.subr.mxu0 0.0
    %1610 = vmatpush1.msra.mxu0 0.0
    %1611 = vmatprep.subr.mxu0 0.0
    %1612 = vmatpush1.msra.mxu0 0.0
    %1613 = vmatprep.subr.mxu0 0.0
    %1614 = vmatpush1.msra.mxu0 0.0
    %1615 = vmatprep.subr.mxu0 0.0
    %1616 = vmatpush1.msra.mxu0 0.0
    %1617 = vmatprep.subr.mxu0 0.0
    %1618 = vmatpush1.msra.mxu0 0.0
    %1619 = vmatprep.subr.mxu0 0.0
    %1620 = vmatpush1.msra.mxu0 0.0
    %1621 = vmatprep.mubr.f32.mxu0 0.0
    %1622 = vmatmul.mubr.f32.gmra.mrb[0].mxu0 %v292
    %v1623 = vpop.f32.mrb[0].mxu0
    %v1624 = vadd.f32 %v245, %v1623
    %v1625 = vpop.f32.mrb[0].mxu0
    %1626 = vdwg.mxu0
    %1627 = vmatprep.subr.mxu0 0.0
    %1628 = vmatpush1.msra.mxu0 %v102
    %1629 = vmatprep.subr.mxu0 0.0
    %1630 = vmatpush1.msra.mxu0 %v103
    %1631 = vmatprep.subr.mxu0 0.0
    %1632 = vmatpush1.msra.mxu0 %v104
    %1633 = vmatprep.subr.mxu0 0.0
    %1634 = vmatpush1.msra.mxu0 %v105
    %1635 = vmatprep.subr.mxu0 0.0
    %1636 = vmatpush1.msra.mxu0 0.0
    %1637 = vmatprep.subr.mxu0 0.0
    %1638 = vmatpush1.msra.mxu0 0.0
    %1639 = vmatprep.subr.mxu0 0.0
    %1640 = vmatpush1.msra.mxu0 0.0
    %1641 = vmatprep.subr.mxu0 0.0
    %1642 = vmatpush1.msra.mxu0 0.0
    %1643 = vmatprep.subr.mxu0 0.0
    %1644 = vmatpush1.msra.mxu0 0.0
    %1645 = vmatprep.subr.mxu0 0.0
    %1646 = vmatpush1.msra.mxu0 0.0
    %1647 = vmatprep.subr.mxu0 0.0
    %1648 = vmatpush1.msra.mxu0 0.0
    %1649 = vmatprep.subr.mxu0 0.0
    %1650 = vmatpush1.msra.mxu0 0.0
    %1651 = vmatprep.subr.mxu0 0.0
    %1652 = vmatpush1.msra.mxu0 0.0
    %1653 = vmatprep.subr.mxu0 0.0
    %1654 = vmatpush1.msra.mxu0 0.0
    %1655 = vmatprep.subr.mxu0 0.0
    %1656 = vmatpush1.msra.mxu0 0.0
    %1657 = vmatprep.subr.mxu0 0.0
    %1658 = vmatpush1.msra.mxu0 0.0
    %1659 = vmatprep.subr.mxu0 0.0
    %1660 = vmatpush1.msra.mxu0 0.0
    %1661 = vmatprep.subr.mxu0 0.0
    %1662 = vmatpush1.msra.mxu0 0.0
    %1663 = vmatprep.subr.mxu0 0.0
    %1664 = vmatpush1.msra.mxu0 0.0
    %1665 = vmatprep.subr.mxu0 0.0
    %1666 = vmatpush1.msra.mxu0 0.0
    %1667 = vmatprep.subr.mxu0 0.0
    %1668 = vmatpush1.msra.mxu0 0.0
    %1669 = vmatprep.subr.mxu0 0.0
    %1670 = vmatpush1.msra.mxu0 0.0
    %1671 = vmatprep.subr.mxu0 0.0
    %1672 = vmatpush1.msra.mxu0 0.0
    %1673 = vmatprep.subr.mxu0 0.0
    %1674 = vmatpush1.msra.mxu0 0.0
    %1675 = vmatprep.subr.mxu0 0.0
    %1676 = vmatpush1.msra.mxu0 0.0
    %1677 = vmatprep.subr.mxu0 0.0
    %1678 = vmatpush1.msra.mxu0 0.0
    %1679 = vmatprep.subr.mxu0 0.0
    %1680 = vmatpush1.msra.mxu0 0.0
    %1681 = vmatprep.subr.mxu0 0.0
    %1682 = vmatpush1.msra.mxu0 0.0
    %1683 = vmatprep.subr.mxu0 0.0
    %1684 = vmatpush1.msra.mxu0 0.0
    %1685 = vmatprep.subr.mxu0 0.0
    %1686 = vmatpush1.msra.mxu0 0.0
    %1687 = vmatprep.subr.mxu0 0.0
    %1688 = vmatpush1.msra.mxu0 0.0
    %1689 = vmatprep.subr.mxu0 0.0
    %1690 = vmatpush1.msra.mxu0 0.0
    %1691 = vmatprep.mubr.f32.mxu0 0.0
    %1692 = vmatmul.mubr.f32.gmra.mrb[0].mxu0 %v365
    %v1693 = vpop.f32.mrb[0].mxu0
    %v1694 = vadd.f32 %v249, %v1693
    %v1695 = vpop.f32.mrb[0].mxu0
    %1696 = vdwg.mxu0
    %1697 = vmatprep.subr.mxu0 0.0
    %1698 = vmatpush1.msra.mxu0 %v106
    %1699 = vmatprep.subr.mxu0 0.0
    %1700 = vmatpush1.msra.mxu0 %v107
    %1701 = vmatprep.subr.mxu0 0.0
    %1702 = vmatpush1.msra.mxu0 %v108
    %1703 = vmatprep.subr.mxu0 0.0
    %1704 = vmatpush1.msra.mxu0 %v109
    %1705 = vmatprep.subr.mxu0 0.0
    %1706 = vmatpush1.msra.mxu0 0.0
    %1707 = vmatprep.subr.mxu0 0.0
    %1708 = vmatpush1.msra.mxu0 0.0
    %1709 = vmatprep.subr.mxu0 0.0
    %1710 = vmatpush1.msra.mxu0 0.0
    %1711 = vmatprep.subr.mxu0 0.0
    %1712 = vmatpush1.msra.mxu0 0.0
    %1713 = vmatprep.subr.mxu0 0.0
    %1714 = vmatpush1.msra.mxu0 0.0
    %1715 = vmatprep.subr.mxu0 0.0
    %1716 = vmatpush1.msra.mxu0 0.0
    %1717 = vmatprep.subr.mxu0 0.0
    %1718 = vmatpush1.msra.mxu0 0.0
    %1719 = vmatprep.subr.mxu0 0.0
    %1720 = vmatpush1.msra.mxu0 0.0
    %1721 = vmatprep.subr.mxu0 0.0
    %1722 = vmatpush1.msra.mxu0 0.0
    %1723 = vmatprep.subr.mxu0 0.0
    %1724 = vmatpush1.msra.mxu0 0.0
    %1725 = vmatprep.subr.mxu0 0.0
    %1726 = vmatpush1.msra.mxu0 0.0
    %1727 = vmatprep.subr.mxu0 0.0
    %1728 = vmatpush1.msra.mxu0 0.0
    %1729 = vmatprep.subr.mxu0 0.0
    %1730 = vmatpush1.msra.mxu0 0.0
    %1731 = vmatprep.subr.mxu0 0.0
    %1732 = vmatpush1.msra.mxu0 0.0
    %1733 = vmatprep.subr.mxu0 0.0
    %1734 = vmatpush1.msra.mxu0 0.0
    %1735 = vmatprep.subr.mxu0 0.0
    %1736 = vmatpush1.msra.mxu0 0.0
    %1737 = vmatprep.subr.mxu0 0.0
    %1738 = vmatpush1.msra.mxu0 0.0
    %1739 = vmatprep.subr.mxu0 0.0
    %1740 = vmatpush1.msra.mxu0 0.0
    %1741 = vmatprep.subr.mxu0 0.0
    %1742 = vmatpush1.msra.mxu0 0.0
    %1743 = vmatprep.subr.mxu0 0.0
    %1744 = vmatpush1.msra.mxu0 0.0
    %1745 = vmatprep.subr.mxu0 0.0
    %1746 = vmatpush1.msra.mxu0 0.0
    %1747 = vmatprep.subr.mxu0 0.0
    %1748 = vmatpush1.msra.mxu0 0.0
    %1749 = vmatprep.subr.mxu0 0.0
    %1750 = vmatpush1.msra.mxu0 0.0
    %1751 = vmatprep.subr.mxu0 0.0
    %1752 = vmatpush1.msra.mxu0 0.0
    %1753 = vmatprep.subr.mxu0 0.0
    %1754 = vmatpush1.msra.mxu0 0.0
    %1755 = vmatprep.subr.mxu0 0.0
    %1756 = vmatpush1.msra.mxu0 0.0
    %1757 = vmatprep.subr.mxu0 0.0
    %1758 = vmatpush1.msra.mxu0 0.0
    %1759 = vmatprep.subr.mxu0 0.0
    %1760 = vmatpush1.msra.mxu0 0.0
    %1761 = vmatprep.mubr.f32.mxu0 0.0
    %1762 = vmatmul.mubr.f32.gmra.mrb[0].mxu0 %v292
    %v1763 = vpop.f32.mrb[0].mxu0
    %v1764 = vadd.f32 %v253, %v1763
    %v1765 = vpop.f32.mrb[0].mxu0
    %1766 = vdwg.mxu0
    %1767 = vmatprep.subr.mxu0 0.0
    %1768 = vmatpush1.msra.mxu0 %v110
    %1769 = vmatprep.subr.mxu0 0.0
    %1770 = vmatpush1.msra.mxu0 %v111
    %1771 = vmatprep.subr.mxu0 0.0
    %1772 = vmatpush1.msra.mxu0 %v112
    %1773 = vmatprep.subr.mxu0 0.0
    %1774 = vmatpush1.msra.mxu0 %v113
    %1775 = vmatprep.subr.mxu0 0.0
    %1776 = vmatpush1.msra.mxu0 0.0
    %1777 = vmatprep.subr.mxu0 0.0
    %1778 = vmatpush1.msra.mxu0 0.0
    %1779 = vmatprep.subr.mxu0 0.0
    %1780 = vmatpush1.msra.mxu0 0.0
    %1781 = vmatprep.subr.mxu0 0.0
    %1782 = vmatpush1.msra.mxu0 0.0
    %1783 = vmatprep.subr.mxu0 0.0
    %1784 = vmatpush1.msra.mxu0 0.0
    %1785 = vmatprep.subr.mxu0 0.0
    %1786 = vmatpush1.msra.mxu0 0.0
    %1787 = vmatprep.subr.mxu0 0.0
    %1788 = vmatpush1.msra.mxu0 0.0
    %1789 = vmatprep.subr.mxu0 0.0
    %1790 = vmatpush1.msra.mxu0 0.0
    %1791 = vmatprep.subr.mxu0 0.0
    %1792 = vmatpush1.msra.mxu0 0.0
    %1793 = vmatprep.subr.mxu0 0.0
    %1794 = vmatpush1.msra.mxu0 0.0
    %1795 = vmatprep.subr.mxu0 0.0
    %1796 = vmatpush1.msra.mxu0 0.0
    %1797 = vmatprep.subr.mxu0 0.0
    %1798 = vmatpush1.msra.mxu0 0.0
    %1799 = vmatprep.subr.mxu0 0.0
    %1800 = vmatpush1.msra.mxu0 0.0
    %1801 = vmatprep.subr.mxu0 0.0
    %1802 = vmatpush1.msra.mxu0 0.0
    %1803 = vmatprep.subr.mxu0 0.0
    %1804 = vmatpush1.msra.mxu0 0.0
    %1805 = vmatprep.subr.mxu0 0.0
    %1806 = vmatpush1.msra.mxu0 0.0
    %1807 = vmatprep.subr.mxu0 0.0
    %1808 = vmatpush1.msra.mxu0 0.0
    %1809 = vmatprep.subr.mxu0 0.0
    %1810 = vmatpush1.msra.mxu0 0.0
    %1811 = vmatprep.subr.mxu0 0.0
    %1812 = vmatpush1.msra.mxu0 0.0
    %1813 = vmatprep.subr.mxu0 0.0
    %1814 = vmatpush1.msra.mxu0 0.0
    %1815 = vmatprep.subr.mxu0 0.0
    %1816 = vmatpush1.msra.mxu0 0.0
    %1817 = vmatprep.subr.mxu0 0.0
    %1818 = vmatpush1.msra.mxu0 0.0
    %1819 = vmatprep.subr.mxu0 0.0
    %1820 = vmatpush1.msra.mxu0 0.0
    %1821 = vmatprep.subr.mxu0 0.0
    %1822 = vmatpush1.msra.mxu0 0.0
    %1823 = vmatprep.subr.mxu0 0.0
    %1824 = vmatpush1.msra.mxu0 0.0
    %1825 = vmatprep.subr.mxu0 0.0
    %1826 = vmatpush1.msra.mxu0 0.0
    %1827 = vmatprep.subr.mxu0 0.0
    %1828 = vmatpush1.msra.mxu0 0.0
    %1829 = vmatprep.subr.mxu0 0.0
    %1830 = vmatpush1.msra.mxu0 0.0
    %1831 = vmatprep.mubr.f32.mxu0 0.0
    %1832 = vmatmul.mubr.f32.gmra.mrb[0].mxu0 %v365
    %v1833 = vpop.f32.mrb[0].mxu0
    %v1834 = vadd.f32 %v257, %v1833
    %v1835 = vpop.f32.mrb[0].mxu0
    %1836 = vdwg.mxu0
    %1837 = vmatprep.subr.mxu0 0.0
    %1838 = vmatpush1.msra.mxu0 %v114
    %1839 = vmatprep.subr.mxu0 0.0
    %1840 = vmatpush1.msra.mxu0 %v115
    %1841 = vmatprep.subr.mxu0 0.0
    %1842 = vmatpush1.msra.mxu0 %v116
    %1843 = vmatprep.subr.mxu0 0.0
    %1844 = vmatpush1.msra.mxu0 %v117
    %1845 = vmatprep.subr.mxu0 0.0
    %1846 = vmatpush1.msra.mxu0 0.0
    %1847 = vmatprep.subr.mxu0 0.0
    %1848 = vmatpush1.msra.mxu0 0.0
    %1849 = vmatprep.subr.mxu0 0.0
    %1850 = vmatpush1.msra.mxu0 0.0
    %1851 = vmatprep.subr.mxu0 0.0
    %1852 = vmatpush1.msra.mxu0 0.0
    %1853 = vmatprep.subr.mxu0 0.0
    %1854 = vmatpush1.msra.mxu0 0.0
    %1855 = vmatprep.subr.mxu0 0.0
    %1856 = vmatpush1.msra.mxu0 0.0
    %1857 = vmatprep.subr.mxu0 0.0
    %1858 = vmatpush1.msra.mxu0 0.0
    %1859 = vmatprep.subr.mxu0 0.0
    %1860 = vmatpush1.msra.mxu0 0.0
    %1861 = vmatprep.subr.mxu0 0.0
    %1862 = vmatpush1.msra.mxu0 0.0
    %1863 = vmatprep.subr.mxu0 0.0
    %1864 = vmatpush1.msra.mxu0 0.0
    %1865 = vmatprep.subr.mxu0 0.0
    %1866 = vmatpush1.msra.mxu0 0.0
    %1867 = vmatprep.subr.mxu0 0.0
    %1868 = vmatpush1.msra.mxu0 0.0
    %1869 = vmatprep.subr.mxu0 0.0
    %1870 = vmatpush1.msra.mxu0 0.0
    %1871 = vmatprep.subr.mxu0 0.0
    %1872 = vmatpush1.msra.mxu0 0.0
    %1873 = vmatprep.subr.mxu0 0.0
    %1874 = vmatpush1.msra.mxu0 0.0
    %1875 = vmatprep.subr.mxu0 0.0
    %1876 = vmatpush1.msra.mxu0 0.0
    %1877 = vmatprep.subr.mxu0 0.0
    %1878 = vmatpush1.msra.mxu0 0.0
    %1879 = vmatprep.subr.mxu0 0.0
    %1880 = vmatpush1.msra.mxu0 0.0
    %1881 = vmatprep.subr.mxu0 0.0
    %1882 = vmatpush1.msra.mxu0 0.0
    %1883 = vmatprep.subr.mxu0 0.0
    %1884 = vmatpush1.msra.mxu0 0.0
    %1885 = vmatprep.subr.mxu0 0.0
    %1886 = vmatpush1.msra.mxu0 0.0
    %1887 = vmatprep.subr.mxu0 0.0
    %1888 = vmatpush1.msra.mxu0 0.0
    %1889 = vmatprep.subr.mxu0 0.0
    %1890 = vmatpush1.msra.mxu0 0.0
    %1891 = vmatprep.subr.mxu0 0.0
    %1892 = vmatpush1.msra.mxu0 0.0
    %1893 = vmatprep.subr.mxu0 0.0
    %1894 = vmatpush1.msra.mxu0 0.0
    %1895 = vmatprep.subr.mxu0 0.0
    %1896 = vmatpush1.msra.mxu0 0.0
    %1897 = vmatprep.subr.mxu0 0.0
    %1898 = vmatpush1.msra.mxu0 0.0
    %1899 = vmatprep.subr.mxu0 0.0
    %1900 = vmatpush1.msra.mxu0 0.0
    %1901 = vmatprep.mubr.f32.mxu0 0.0
    %1902 = vmatmul.mubr.f32.gmra.mrb[0].mxu0 %v292
    %v1903 = vpop.f32.mrb[0].mxu0
    %v1904 = vadd.f32 %v261, %v1903
    %v1905 = vpop.f32.mrb[0].mxu0
    %1906 = vdwg.mxu0
    %1907 = vmatprep.subr.mxu0 0.0
    %1908 = vmatpush1.msra.mxu0 %v118
    %1909 = vmatprep.subr.mxu0 0.0
    %1910 = vmatpush1.msra.mxu0 %v119
    %1911 = vmatprep.subr.mxu0 0.0
    %1912 = vmatpush1.msra.mxu0 %v120
    %1913 = vmatprep.subr.mxu0 0.0
    %1914 = vmatpush1.msra.mxu0 %v121
    %1915 = vmatprep.subr.mxu0 0.0
    %1916 = vmatpush1.msra.mxu0 0.0
    %1917 = vmatprep.subr.mxu0 0.0
    %1918 = vmatpush1.msra.mxu0 0.0
    %1919 = vmatprep.subr.mxu0 0.0
    %1920 = vmatpush1.msra.mxu0 0.0
    %1921 = vmatprep.subr.mxu0 0.0
    %1922 = vmatpush1.msra.mxu0 0.0
    %1923 = vmatprep.subr.mxu0 0.0
    %1924 = vmatpush1.msra.mxu0 0.0
    %1925 = vmatprep.subr.mxu0 0.0
    %1926 = vmatpush1.msra.mxu0 0.0
    %1927 = vmatprep.subr.mxu0 0.0
    %1928 = vmatpush1.msra.mxu0 0.0
    %1929 = vmatprep.subr.mxu0 0.0
    %1930 = vmatpush1.msra.mxu0 0.0
    %1931 = vmatprep.subr.mxu0 0.0
    %1932 = vmatpush1.msra.mxu0 0.0
    %1933 = vmatprep.subr.mxu0 0.0
    %1934 = vmatpush1.msra.mxu0 0.0
    %1935 = vmatprep.subr.mxu0 0.0
    %1936 = vmatpush1.msra.mxu0 0.0
    %1937 = vmatprep.subr.mxu0 0.0
    %1938 = vmatpush1.msra.mxu0 0.0
    %1939 = vmatprep.subr.mxu0 0.0
    %1940 = vmatpush1.msra.mxu0 0.0
    %1941 = vmatprep.subr.mxu0 0.0
    %1942 = vmatpush1.msra.mxu0 0.0
    %1943 = vmatprep.subr.mxu0 0.0
    %1944 = vmatpush1.msra.mxu0 0.0
    %1945 = vmatprep.subr.mxu0 0.0
    %1946 = vmatpush1.msra.mxu0 0.0
    %1947 = vmatprep.subr.mxu0 0.0
    %1948 = vmatpush1.msra.mxu0 0.0
    %1949 = vmatprep.subr.mxu0 0.0
    %1950 = vmatpush1.msra.mxu0 0.0
    %1951 = vmatprep.subr.mxu0 0.0
    %1952 = vmatpush1.msra.mxu0 0.0
    %1953 = vmatprep.subr.mxu0 0.0
    %1954 = vmatpush1.msra.mxu0 0.0
    %1955 = vmatprep.subr.mxu0 0.0
    %1956 = vmatpush1.msra.mxu0 0.0
    %1957 = vmatprep.subr.mxu0 0.0
    %1958 = vmatpush1.msra.mxu0 0.0
    %1959 = vmatprep.subr.mxu0 0.0
    %1960 = vmatpush1.msra.mxu0 0.0
    %1961 = vmatprep.subr.mxu0 0.0
    %1962 = vmatpush1.msra.mxu0 0.0
    %1963 = vmatprep.subr.mxu0 0.0
    %1964 = vmatpush1.msra.mxu0 0.0
    %1965 = vmatprep.subr.mxu0 0.0
    %1966 = vmatpush1.msra.mxu0 0.0
    %1967 = vmatprep.subr.mxu0 0.0
    %1968 = vmatpush1.msra.mxu0 0.0
    %1969 = vmatprep.subr.mxu0 0.0
    %1970 = vmatpush1.msra.mxu0 0.0
    %1971 = vmatprep.mubr.f32.mxu0 0.0
    %1972 = vmatmul.mubr.f32.gmra.mrb[0].mxu0 %v365
    %v1973 = vpop.f32.mrb[0].mxu0
    %v1974 = vadd.f32 %v265, %v1973
    %v1975 = vpop.f32.mrb[0].mxu0
    %1976 = vdwg.mxu0
    %vm1977 = vcmask 64512
    %v1979 = vsel %vm1977, %v361, 0
    %v1982 = vsel %vm1977, %v924, 0
    %1984 = vmatprep.subr.mxu0 0.0
    %1985 = vmatpush1.xpose.msra.mxu0 %v1982
    %1986 = vmatprep.subr.mxu0 0.0
    %1987 = vmatpush1.xpose.msra.mxu0 0.0
    %1988 = vmatprep.subr.mxu0 0.0
    %1989 = vmatpush1.xpose.msra.mxu0 0.0
    %1990 = vmatprep.subr.mxu0 0.0
    %1991 = vmatpush1.xpose.msra.mxu0 0.0
    %1992 = vmatprep.subr.mxu0 0.0
    %1993 = vmatpush1.xpose.msra.mxu0 0.0
    %1994 = vmatprep.subr.mxu0 0.0
    %1995 = vmatpush1.xpose.msra.mxu0 0.0
    %1996 = vmatprep.subr.mxu0 0.0
    %1997 = vmatpush1.xpose.msra.mxu0 0.0
    %1998 = vmatprep.subr.mxu0 0.0
    %1999 = vmatpush1.xpose.msra.mxu0 0.0
    %2000 = vmatprep.subr.mxu0 0.0
    %2001 = vmatpush1.xpose.msra.mxu0 0.0
    %2002 = vmatprep.subr.mxu0 0.0
    %2003 = vmatpush1.xpose.msra.mxu0 0.0
    %2004 = vmatprep.subr.mxu0 0.0
    %2005 = vmatpush1.xpose.msra.mxu0 0.0
    %2006 = vmatprep.subr.mxu0 0.0
    %2007 = vmatpush1.xpose.msra.mxu0 0.0
    %2008 = vmatprep.subr.mxu0 0.0
    %2009 = vmatpush1.xpose.msra.mxu0 0.0
    %2010 = vmatprep.subr.mxu0 0.0
    %2011 = vmatpush1.xpose.msra.mxu0 0.0
    %2012 = vmatprep.subr.mxu0 0.0
    %2013 = vmatpush1.xpose.msra.mxu0 0.0
    %2014 = vmatprep.subr.mxu0 0.0
    %2015 = vmatpush1.xpose.msra.mxu0 0.0
    %2016 = vmatprep.subr.mxu0 0.0
    %2017 = vmatpush1.xpose.msra.mxu0 0.0
    %2018 = vmatprep.subr.mxu0 0.0
    %2019 = vmatpush1.xpose.msra.mxu0 0.0
    %2020 = vmatprep.subr.mxu0 0.0
    %2021 = vmatpush1.xpose.msra.mxu0 0.0
    %2022 = vmatprep.subr.mxu0 0.0
    %2023 = vmatpush1.xpose.msra.mxu0 0.0
    %2024 = vmatprep.subr.mxu0 0.0
    %2025 = vmatpush1.xpose.msra.mxu0 0.0
    %2026 = vmatprep.subr.mxu0 0.0
    %2027 = vmatpush1.xpose.msra.mxu0 0.0
    %2028 = vmatprep.subr.mxu0 0.0
    %2029 = vmatpush1.xpose.msra.mxu0 0.0
    %2030 = vmatprep.subr.mxu0 0.0
    %2031 = vmatpush1.xpose.msra.mxu0 0.0
    %2032 = vmatprep.subr.mxu0 0.0
    %2033 = vmatpush1.xpose.msra.mxu0 0.0
    %2034 = vmatprep.subr.mxu0 0.0
    %2035 = vmatpush1.xpose.msra.mxu0 0.0
    %2036 = vmatprep.subr.mxu0 0.0
    %2037 = vmatpush1.xpose.msra.mxu0 0.0
    %2038 = vmatprep.subr.mxu0 0.0
    %2039 = vmatpush1.xpose.msra.mxu0 0.0
    %2040 = vmatprep.subr.mxu0 0.0
    %2041 = vmatpush1.xpose.msra.mxu0 0.0
    %2042 = vmatprep.subr.mxu0 0.0
    %2043 = vmatpush1.xpose.msra.mxu0 0.0
    %2044 = vmatprep.subr.mxu0 0.0
    %2045 = vmatpush1.xpose.msra.mxu0 0.0
    %2046 = vmatprep.subr.mxu0 0.0
    %2047 = vmatpush1.xpose.msra.mxu0 0.0
    %2048 = vmatprep.mubr.f32.mxu0 0.0
    %2049 = vmatmul.mubr.f32.gmra.mrb[0].mxu0 %v1979
    %v2050 = vpop.f32.mrb[0].mxu0
    %v2051 = vadd.f32 0.0, %v2050
    %v2052 = vpop.f32.mrb[0].mxu0
    %2053 = vdwg.mxu0
    %v2055 = vsel %vm1977, %v434, 0
    %v2058 = vsel %vm1977, %v994, 0
    %2060 = vmatprep.subr.mxu0 0.0
    %2061 = vmatpush1.xpose.msra.mxu0 %v2058
    %2062 = vmatprep.subr.mxu0 0.0
    %2063 = vmatpush1.xpose.msra.mxu0 0.0
    %2064 = vmatprep.subr.mxu0 0.0
    %2065 = vmatpush1.xpose.msra.mxu0 0.0
    %2066 = vmatprep.subr.mxu0 0.0
    %2067 = vmatpush1.xpose.msra.mxu0 0.0
    %2068 = vmatprep.subr.mxu0 0.0
    %2069 = vmatpush1.xpose.msra.mxu0 0.0
    %2070 = vmatprep.subr.mxu0 0.0
    %2071 = vmatpush1.xpose.msra.mxu0 0.0
    %2072 = vmatprep.subr.mxu0 0.0
    %2073 = vmatpush1.xpose.msra.mxu0 0.0
    %2074 = vmatprep.subr.mxu0 0.0
    %2075 = vmatpush1.xpose.msra.mxu0 0.0
    %2076 = vmatprep.subr.mxu0 0.0
    %2077 = vmatpush1.xpose.msra.mxu0 0.0
    %2078 = vmatprep.subr.mxu0 0.0
    %2079 = vmatpush1.xpose.msra.mxu0 0.0
    %2080 = vmatprep.subr.mxu0 0.0
    %2081 = vmatpush1.xpose.msra.mxu0 0.0
    %2082 = vmatprep.subr.mxu0 0.0
    %2083 = vmatpush1.xpose.msra.mxu0 0.0
    %2084 = vmatprep.subr.mxu0 0.0
    %2085 = vmatpush1.xpose.msra.mxu0 0.0
    %2086 = vmatprep.subr.mxu0 0.0
    %2087 = vmatpush1.xpose.msra.mxu0 0.0
    %2088 = vmatprep.subr.mxu0 0.0
    %2089 = vmatpush1.xpose.msra.mxu0 0.0
    %2090 = vmatprep.subr.mxu0 0.0
    %2091 = vmatpush1.xpose.msra.mxu0 0.0
    %2092 = vmatprep.subr.mxu0 0.0
    %2093 = vmatpush1.xpose.msra.mxu0 0.0
    %2094 = vmatprep.subr.mxu0 0.0
    %2095 = vmatpush1.xpose.msra.mxu0 0.0
    %2096 = vmatprep.subr.mxu0 0.0
    %2097 = vmatpush1.xpose.msra.mxu0 0.0
    %2098 = vmatprep.subr.mxu0 0.0
    %2099 = vmatpush1.xpose.msra.mxu0 0.0
    %2100 = vmatprep.subr.mxu0 0.0
    %2101 = vmatpush1.xpose.msra.mxu0 0.0
    %2102 = vmatprep.subr.mxu0 0.0
    %2103 = vmatpush1.xpose.msra.mxu0 0.0
    %2104 = vmatprep.subr.mxu0 0.0
    %2105 = vmatpush1.xpose.msra.mxu0 0.0
    %2106 = vmatprep.subr.mxu0 0.0
    %2107 = vmatpush1.xpose.msra.mxu0 0.0
    %2108 = vmatprep.subr.mxu0 0.0
    %2109 = vmatpush1.xpose.msra.mxu0 0.0
    %2110 = vmatprep.subr.mxu0 0.0
    %2111 = vmatpush1.xpose.msra.mxu0 0.0
    %2112 = vmatprep.subr.mxu0 0.0
    %2113 = vmatpush1.xpose.msra.mxu0 0.0
    %2114 = vmatprep.subr.mxu0 0.0
    %2115 = vmatpush1.xpose.msra.mxu0 0.0
    %2116 = vmatprep.subr.mxu0 0.0
    %2117 = vmatpush1.xpose.msra.mxu0 0.0
    %2118 = vmatprep.subr.mxu0 0.0
    %2119 = vmatpush1.xpose.msra.mxu0 0.0
    %2120 = vmatprep.subr.mxu0 0.0
    %2121 = vmatpush1.xpose.msra.mxu0 0.0
    %2122 = vmatprep.subr.mxu0 0.0
    %2123 = vmatpush1.xpose.msra.mxu0 0.0
    %2124 = vmatprep.mubr.f32.mxu0 0.0
    %2125 = vmatmul.mubr.f32.gmra.mrb[0].mxu0 %v2055
    %v2126 = vpop.f32.mrb[0].mxu0
    %v2127 = vadd.f32 0.0, %v2126
    %v2128 = vpop.f32.mrb[0].mxu0
    %2129 = vdwg.mxu0
    %v2131 = vsel %vm1977, %v504, 0
    %v2134 = vsel %vm1977, %v1064, 0
    %2136 = vmatprep.subr.mxu0 0.0
    %2137 = vmatpush1.xpose.msra.mxu0 %v2134
    %2138 = vmatprep.subr.mxu0 0.0
    %2139 = vmatpush1.xpose.msra.mxu0 0.0
    %2140 = vmatprep.subr.mxu0 0.0
    %2141 = vmatpush1.xpose.msra.mxu0 0.0
    %2142 = vmatprep.subr.mxu0 0.0
    %2143 = vmatpush1.xpose.msra.mxu0 0.0
    %2144 = vmatprep.subr.mxu0 0.0
    %2145 = vmatpush1.xpose.msra.mxu0 0.0
    %2146 = vmatprep.subr.mxu0 0.0
    %2147 = vmatpush1.xpose.msra.mxu0 0.0
    %2148 = vmatprep.subr.mxu0 0.0
    %2149 = vmatpush1.xpose.msra.mxu0 0.0
    %2150 = vmatprep.subr.mxu0 0.0
    %2151 = vmatpush1.xpose.msra.mxu0 0.0
    %2152 = vmatprep.subr.mxu0 0.0
    %2153 = vmatpush1.xpose.msra.mxu0 0.0
    %2154 = vmatprep.subr.mxu0 0.0
    %2155 = vmatpush1.xpose.msra.mxu0 0.0
    %2156 = vmatprep.subr.mxu0 0.0
    %2157 = vmatpush1.xpose.msra.mxu0 0.0
    %2158 = vmatprep.subr.mxu0 0.0
    %2159 = vmatpush1.xpose.msra.mxu0 0.0
    %2160 = vmatprep.subr.mxu0 0.0
    %2161 = vmatpush1.xpose.msra.mxu0 0.0
    %2162 = vmatprep.subr.mxu0 0.0
    %2163 = vmatpush1.xpose.msra.mxu0 0.0
    %2164 = vmatprep.subr.mxu0 0.0
    %2165 = vmatpush1.xpose.msra.mxu0 0.0
    %2166 = vmatprep.subr.mxu0 0.0
    %2167 = vmatpush1.xpose.msra.mxu0 0.0
    %2168 = vmatprep.subr.mxu0 0.0
    %2169 = vmatpush1.xpose.msra.mxu0 0.0
    %2170 = vmatprep.subr.mxu0 0.0
    %2171 = vmatpush1.xpose.msra.mxu0 0.0
    %2172 = vmatprep.subr.mxu0 0.0
    %2173 = vmatpush1.xpose.msra.mxu0 0.0
    %2174 = vmatprep.subr.mxu0 0.0
    %2175 = vmatpush1.xpose.msra.mxu0 0.0
    %2176 = vmatprep.subr.mxu0 0.0
    %2177 = vmatpush1.xpose.msra.mxu0 0.0
    %2178 = vmatprep.subr.mxu0 0.0
    %2179 = vmatpush1.xpose.msra.mxu0 0.0
    %2180 = vmatprep.subr.mxu0 0.0
    %2181 = vmatpush1.xpose.msra.mxu0 0.0
    %2182 = vmatprep.subr.mxu0 0.0
    %2183 = vmatpush1.xpose.msra.mxu0 0.0
    %2184 = vmatprep.subr.mxu0 0.0
    %2185 = vmatpush1.xpose.msra.mxu0 0.0
    %2186 = vmatprep.subr.mxu0 0.0
    %2187 = vmatpush1.xpose.msra.mxu0 0.0
    %2188 = vmatprep.subr.mxu0 0.0
    %2189 = vmatpush1.xpose.msra.mxu0 0.0
    %2190 = vmatprep.subr.mxu0 0.0
    %2191 = vmatpush1.xpose.msra.mxu0 0.0
    %2192 = vmatprep.subr.mxu0 0.0
    %2193 = vmatpush1.xpose.msra.mxu0 0.0
    %2194 = vmatprep.subr.mxu0 0.0
    %2195 = vmatpush1.xpose.msra.mxu0 0.0
    %2196 = vmatprep.subr.mxu0 0.0
    %2197 = vmatpush1.xpose.msra.mxu0 0.0
    %2198 = vmatprep.subr.mxu0 0.0
    %2199 = vmatpush1.xpose.msra.mxu0 0.0
    %2200 = vmatprep.mubr.f32.mxu0 0.0
    %2201 = vmatmul.mubr.f32.gmra.mrb[0].mxu0 %v2131
    %v2202 = vpop.f32.mrb[0].mxu0
    %v2203 = vadd.f32 0.0, %v2202
    %v2204 = vpop.f32.mrb[0].mxu0
    %2205 = vdwg.mxu0
    %v2207 = vsel %vm1977, %v574, 0
    %v2210 = vsel %vm1977, %v1134, 0
    %2212 = vmatprep.subr.mxu0 0.0
    %2213 = vmatpush1.xpose.msra.mxu0 %v2210
    %2214 = vmatprep.subr.mxu0 0.0
    %2215 = vmatpush1.xpose.msra.mxu0 0.0
    %2216 = vmatprep.subr.mxu0 0.0
    %2217 = vmatpush1.xpose.msra.mxu0 0.0
    %2218 = vmatprep.subr.mxu0 0.0
    %2219 = vmatpush1.xpose.msra.mxu0 0.0
    %2220 = vmatprep.subr.mxu0 0.0
    %2221 = vmatpush1.xpose.msra.mxu0 0.0
    %2222 = vmatprep.subr.mxu0 0.0
    %2223 = vmatpush1.xpose.msra.mxu0 0.0
    %2224 = vmatprep.subr.mxu0 0.0
    %2225 = vmatpush1.xpose.msra.mxu0 0.0
    %2226 = vmatprep.subr.mxu0 0.0
    %2227 = vmatpush1.xpose.msra.mxu0 0.0
    %2228 = vmatprep.subr.mxu0 0.0
    %2229 = vmatpush1.xpose.msra.mxu0 0.0
    %2230 = vmatprep.subr.mxu0 0.0
    %2231 = vmatpush1.xpose.msra.mxu0 0.0
    %2232 = vmatprep.subr.mxu0 0.0
    %2233 = vmatpush1.xpose.msra.mxu0 0.0
    %2234 = vmatprep.subr.mxu0 0.0
    %2235 = vmatpush1.xpose.msra.mxu0 0.0
    %2236 = vmatprep.subr.mxu0 0.0
    %2237 = vmatpush1.xpose.msra.mxu0 0.0
    %2238 = vmatprep.subr.mxu0 0.0
    %2239 = vmatpush1.xpose.msra.mxu0 0.0
    %2240 = vmatprep.subr.mxu0 0.0
    %2241 = vmatpush1.xpose.msra.mxu0 0.0
    %2242 = vmatprep.subr.mxu0 0.0
    %2243 = vmatpush1.xpose.msra.mxu0 0.0
    %2244 = vmatprep.subr.mxu0 0.0
    %2245 = vmatpush1.xpose.msra.mxu0 0.0
    %2246 = vmatprep.subr.mxu0 0.0
    %2247 = vmatpush1.xpose.msra.mxu0 0.0
    %2248 = vmatprep.subr.mxu0 0.0
    %2249 = vmatpush1.xpose.msra.mxu0 0.0
    %2250 = vmatprep.subr.mxu0 0.0
    %2251 = vmatpush1.xpose.msra.mxu0 0.0
    %2252 = vmatprep.subr.mxu0 0.0
    %2253 = vmatpush1.xpose.msra.mxu0 0.0
    %2254 = vmatprep.subr.mxu0 0.0
    %2255 = vmatpush1.xpose.msra.mxu0 0.0
    %2256 = vmatprep.subr.mxu0 0.0
    %2257 = vmatpush1.xpose.msra.mxu0 0.0
    %2258 = vmatprep.subr.mxu0 0.0
    %2259 = vmatpush1.xpose.msra.mxu0 0.0
    %2260 = vmatprep.subr.mxu0 0.0
    %2261 = vmatpush1.xpose.msra.mxu0 0.0
    %2262 = vmatprep.subr.mxu0 0.0
    %2263 = vmatpush1.xpose.msra.mxu0 0.0
    %2264 = vmatprep.subr.mxu0 0.0
    %2265 = vmatpush1.xpose.msra.mxu0 0.0
    %2266 = vmatprep.subr.mxu0 0.0
    %2267 = vmatpush1.xpose.msra.mxu0 0.0
    %2268 = vmatprep.subr.mxu0 0.0
    %2269 = vmatpush1.xpose.msra.mxu0 0.0
    %2270 = vmatprep.subr.mxu0 0.0
    %2271 = vmatpush1.xpose.msra.mxu0 0.0
    %2272 = vmatprep.subr.mxu0 0.0
    %2273 = vmatpush1.xpose.msra.mxu0 0.0
    %2274 = vmatprep.subr.mxu0 0.0
    %2275 = vmatpush1.xpose.msra.mxu0 0.0
    %2276 = vmatprep.mubr.f32.mxu0 0.0
    %2277 = vmatmul.mubr.f32.gmra.mrb[0].mxu0 %v2207
    %v2278 = vpop.f32.mrb[0].mxu0
    %v2279 = vadd.f32 0.0, %v2278
    %v2280 = vpop.f32.mrb[0].mxu0
    %2281 = vdwg.mxu0
    %v2283 = vsel %vm1977, %v644, 0
    %v2286 = vsel %vm1977, %v1204, 0
    %2288 = vmatprep.subr.mxu0 0.0
    %2289 = vmatpush1.xpose.msra.mxu0 %v2286
    %2290 = vmatprep.subr.mxu0 0.0
    %2291 = vmatpush1.xpose.msra.mxu0 0.0
    %2292 = vmatprep.subr.mxu0 0.0
    %2293 = vmatpush1.xpose.msra.mxu0 0.0
    %2294 = vmatprep.subr.mxu0 0.0
    %2295 = vmatpush1.xpose.msra.mxu0 0.0
    %2296 = vmatprep.subr.mxu0 0.0
    %2297 = vmatpush1.xpose.msra.mxu0 0.0
    %2298 = vmatprep.subr.mxu0 0.0
    %2299 = vmatpush1.xpose.msra.mxu0 0.0
    %2300 = vmatprep.subr.mxu0 0.0
    %2301 = vmatpush1.xpose.msra.mxu0 0.0
    %2302 = vmatprep.subr.mxu0 0.0
    %2303 = vmatpush1.xpose.msra.mxu0 0.0
    %2304 = vmatprep.subr.mxu0 0.0
    %2305 = vmatpush1.xpose.msra.mxu0 0.0
    %2306 = vmatprep.subr.mxu0 0.0
    %2307 = vmatpush1.xpose.msra.mxu0 0.0
    %2308 = vmatprep.subr.mxu0 0.0
    %2309 = vmatpush1.xpose.msra.mxu0 0.0
    %2310 = vmatprep.subr.mxu0 0.0
    %2311 = vmatpush1.xpose.msra.mxu0 0.0
    %2312 = vmatprep.subr.mxu0 0.0
    %2313 = vmatpush1.xpose.msra.mxu0 0.0
    %2314 = vmatprep.subr.mxu0 0.0
    %2315 = vmatpush1.xpose.msra.mxu0 0.0
    %2316 = vmatprep.subr.mxu0 0.0
    %2317 = vmatpush1.xpose.msra.mxu0 0.0
    %2318 = vmatprep.subr.mxu0 0.0
    %2319 = vmatpush1.xpose.msra.mxu0 0.0
    %2320 = vmatprep.subr.mxu0 0.0
    %2321 = vmatpush1.xpose.msra.mxu0 0.0
    %2322 = vmatprep.subr.mxu0 0.0
    %2323 = vmatpush1.xpose.msra.mxu0 0.0
    %2324 = vmatprep.subr.mxu0 0.0
    %2325 = vmatpush1.xpose.msra.mxu0 0.0
    %2326 = vmatprep.subr.mxu0 0.0
    %2327 = vmatpush1.xpose.msra.mxu0 0.0
    %2328 = vmatprep.subr.mxu0 0.0
    %2329 = vmatpush1.xpose.msra.mxu0 0.0
    %2330 = vmatprep.subr.mxu0 0.0
    %2331 = vmatpush1.xpose.msra.mxu0 0.0
    %2332 = vmatprep.subr.mxu0 0.0
    %2333 = vmatpush1.xpose.msra.mxu0 0.0
    %2334 = vmatprep.subr.mxu0 0.0
    %2335 = vmatpush1.xpose.msra.mxu0 0.0
    %2336 = vmatprep.subr.mxu0 0.0
    %2337 = vmatpush1.xpose.msra.mxu0 0.0
    %2338 = vmatprep.subr.mxu0 0.0
    %2339 = vmatpush1.xpose.msra.mxu0 0.0
    %2340 = vmatprep.subr.mxu0 0.0
    %2341 = vmatpush1.xpose.msra.mxu0 0.0
    %2342 = vmatprep.subr.mxu0 0.0
    %2343 = vmatpush1.xpose.msra.mxu0 0.0
    %2344 = vmatprep.subr.mxu0 0.0
    %2345 = vmatpush1.xpose.msra.mxu0 0.0
    %2346 = vmatprep.subr.mxu0 0.0
    %2347 = vmatpush1.xpose.msra.mxu0 0.0
    %2348 = vmatprep.subr.mxu0 0.0
    %2349 = vmatpush1.xpose.msra.mxu0 0.0
    %2350 = vmatprep.subr.mxu0 0.0
    %2351 = vmatpush1.xpose.msra.mxu0 0.0
    %2352 = vmatprep.mubr.f32.mxu0 0.0
    %2353 = vmatmul.mubr.f32.gmra.mrb[0].mxu0 %v2283
    %v2354 = vpop.f32.mrb[0].mxu0
    %v2355 = vadd.f32 0.0, %v2354
    %v2356 = vpop.f32.mrb[0].mxu0
    %2357 = vdwg.mxu0
    %v2359 = vsel %vm1977, %v714, 0
    %v2362 = vsel %vm1977, %v1274, 0
    %2364 = vmatprep.subr.mxu0 0.0
    %2365 = vmatpush1.xpose.msra.mxu0 %v2362
    %2366 = vmatprep.subr.mxu0 0.0
    %2367 = vmatpush1.xpose.msra.mxu0 0.0
    %2368 = vmatprep.subr.mxu0 0.0
    %2369 = vmatpush1.xpose.msra.mxu0 0.0
    %2370 = vmatprep.subr.mxu0 0.0
    %2371 = vmatpush1.xpose.msra.mxu0 0.0
    %2372 = vmatprep.subr.mxu0 0.0
    %2373 = vmatpush1.xpose.msra.mxu0 0.0
    %2374 = vmatprep.subr.mxu0 0.0
    %2375 = vmatpush1.xpose.msra.mxu0 0.0
    %2376 = vmatprep.subr.mxu0 0.0
    %2377 = vmatpush1.xpose.msra.mxu0 0.0
    %2378 = vmatprep.subr.mxu0 0.0
    %2379 = vmatpush1.xpose.msra.mxu0 0.0
    %2380 = vmatprep.subr.mxu0 0.0
    %2381 = vmatpush1.xpose.msra.mxu0 0.0
    %2382 = vmatprep.subr.mxu0 0.0
    %2383 = vmatpush1.xpose.msra.mxu0 0.0
    %2384 = vmatprep.subr.mxu0 0.0
    %2385 = vmatpush1.xpose.msra.mxu0 0.0
    %2386 = vmatprep.subr.mxu0 0.0
    %2387 = vmatpush1.xpose.msra.mxu0 0.0
    %2388 = vmatprep.subr.mxu0 0.0
    %2389 = vmatpush1.xpose.msra.mxu0 0.0
    %2390 = vmatprep.subr.mxu0 0.0
    %2391 = vmatpush1.xpose.msra.mxu0 0.0
    %2392 = vmatprep.subr.mxu0 0.0
    %2393 = vmatpush1.xpose.msra.mxu0 0.0
    %2394 = vmatprep.subr.mxu0 0.0
    %2395 = vmatpush1.xpose.msra.mxu0 0.0
    %2396 = vmatprep.subr.mxu0 0.0
    %2397 = vmatpush1.xpose.msra.mxu0 0.0
    %2398 = vmatprep.subr.mxu0 0.0
    %2399 = vmatpush1.xpose.msra.mxu0 0.0
    %2400 = vmatprep.subr.mxu0 0.0
    %2401 = vmatpush1.xpose.msra.mxu0 0.0
    %2402 = vmatprep.subr.mxu0 0.0
    %2403 = vmatpush1.xpose.msra.mxu0 0.0
    %2404 = vmatprep.subr.mxu0 0.0
    %2405 = vmatpush1.xpose.msra.mxu0 0.0
    %2406 = vmatprep.subr.mxu0 0.0
    %2407 = vmatpush1.xpose.msra.mxu0 0.0
    %2408 = vmatprep.subr.mxu0 0.0
    %2409 = vmatpush1.xpose.msra.mxu0 0.0
    %2410 = vmatprep.subr.mxu0 0.0
    %2411 = vmatpush1.xpose.msra.mxu0 0.0
    %2412 = vmatprep.subr.mxu0 0.0
    %2413 = vmatpush1.xpose.msra.mxu0 0.0
    %2414 = vmatprep.subr.mxu0 0.0
    %2415 = vmatpush1.xpose.msra.mxu0 0.0
    %2416 = vmatprep.subr.mxu0 0.0
    %2417 = vmatpush1.xpose.msra.mxu0 0.0
    %2418 = vmatprep.subr.mxu0 0.0
    %2419 = vmatpush1.xpose.msra.mxu0 0.0
    %2420 = vmatprep.subr.mxu0 0.0
    %2421 = vmatpush1.xpose.msra.mxu0 0.0
    %2422 = vmatprep.subr.mxu0 0.0
    %2423 = vmatpush1.xpose.msra.mxu0 0.0
    %2424 = vmatprep.subr.mxu0 0.0
    %2425 = vmatpush1.xpose.msra.mxu0 0.0
    %2426 = vmatprep.subr.mxu0 0.0
    %2427 = vmatpush1.xpose.msra.mxu0 0.0
    %2428 = vmatprep.mubr.f32.mxu0 0.0
    %2429 = vmatmul.mubr.f32.gmra.mrb[0].mxu0 %v2359
    %v2430 = vpop.f32.mrb[0].mxu0
    %v2431 = vadd.f32 0.0, %v2430
    %v2432 = vpop.f32.mrb[0].mxu0
    %2433 = vdwg.mxu0
    %v2435 = vsel %vm1977, %v784, 0
    %v2438 = vsel %vm1977, %v1344, 0
    %2440 = vmatprep.subr.mxu0 0.0
    %2441 = vmatpush1.xpose.msra.mxu0 %v2438
    %2442 = vmatprep.subr.mxu0 0.0
    %2443 = vmatpush1.xpose.msra.mxu0 0.0
    %2444 = vmatprep.subr.mxu0 0.0
    %2445 = vmatpush1.xpose.msra.mxu0 0.0
    %2446 = vmatprep.subr.mxu0 0.0
    %2447 = vmatpush1.xpose.msra.mxu0 0.0
    %2448 = vmatprep.subr.mxu0 0.0
    %2449 = vmatpush1.xpose.msra.mxu0 0.0
    %2450 = vmatprep.subr.mxu0 0.0
    %2451 = vmatpush1.xpose.msra.mxu0 0.0
    %2452 = vmatprep.subr.mxu0 0.0
    %2453 = vmatpush1.xpose.msra.mxu0 0.0
    %2454 = vmatprep.subr.mxu0 0.0
    %2455 = vmatpush1.xpose.msra.mxu0 0.0
    %2456 = vmatprep.subr.mxu0 0.0
    %2457 = vmatpush1.xpose.msra.mxu0 0.0
    %2458 = vmatprep.subr.mxu0 0.0
    %2459 = vmatpush1.xpose.msra.mxu0 0.0
    %2460 = vmatprep.subr.mxu0 0.0
    %2461 = vmatpush1.xpose.msra.mxu0 0.0
    %2462 = vmatprep.subr.mxu0 0.0
    %2463 = vmatpush1.xpose.msra.mxu0 0.0
    %2464 = vmatprep.subr.mxu0 0.0
    %2465 = vmatpush1.xpose.msra.mxu0 0.0
    %2466 = vmatprep.subr.mxu0 0.0
    %2467 = vmatpush1.xpose.msra.mxu0 0.0
    %2468 = vmatprep.subr.mxu0 0.0
    %2469 = vmatpush1.xpose.msra.mxu0 0.0
    %2470 = vmatprep.subr.mxu0 0.0
    %2471 = vmatpush1.xpose.msra.mxu0 0.0
    %2472 = vmatprep.subr.mxu0 0.0
    %2473 = vmatpush1.xpose.msra.mxu0 0.0
    %2474 = vmatprep.subr.mxu0 0.0
    %2475 = vmatpush1.xpose.msra.mxu0 0.0
    %2476 = vmatprep.subr.mxu0 0.0
    %2477 = vmatpush1.xpose.msra.mxu0 0.0
    %2478 = vmatprep.subr.mxu0 0.0
    %2479 = vmatpush1.xpose.msra.mxu0 0.0
    %2480 = vmatprep.subr.mxu0 0.0
    %2481 = vmatpush1.xpose.msra.mxu0 0.0
    %2482 = vmatprep.subr.mxu0 0.0
    %2483 = vmatpush1.xpose.msra.mxu0 0.0
    %2484 = vmatprep.subr.mxu0 0.0
    %2485 = vmatpush1.xpose.msra.mxu0 0.0
    %2486 = vmatprep.subr.mxu0 0.0
    %2487 = vmatpush1.xpose.msra.mxu0 0.0
    %2488 = vmatprep.subr.mxu0 0.0
    %2489 = vmatpush1.xpose.msra.mxu0 0.0
    %2490 = vmatprep.subr.mxu0 0.0
    %2491 = vmatpush1.xpose.msra.mxu0 0.0
    %2492 = vmatprep.subr.mxu0 0.0
    %2493 = vmatpush1.xpose.msra.mxu0 0.0
    %2494 = vmatprep.subr.mxu0 0.0
    %2495 = vmatpush1.xpose.msra.mxu0 0.0
    %2496 = vmatprep.subr.mxu0 0.0
    %2497 = vmatpush1.xpose.msra.mxu0 0.0
    %2498 = vmatprep.subr.mxu0 0.0
    %2499 = vmatpush1.xpose.msra.mxu0 0.0
    %2500 = vmatprep.subr.mxu0 0.0
    %2501 = vmatpush1.xpose.msra.mxu0 0.0
    %2502 = vmatprep.subr.mxu0 0.0
    %2503 = vmatpush1.xpose.msra.mxu0 0.0
    %2504 = vmatprep.mubr.f32.mxu0 0.0
    %2505 = vmatmul.mubr.f32.gmra.mrb[0].mxu0 %v2435
    %v2506 = vpop.f32.mrb[0].mxu0
    %v2507 = vadd.f32 0.0, %v2506
    %v2508 = vpop.f32.mrb[0].mxu0
    %2509 = vdwg.mxu0
    %v2511 = vsel %vm1977, %v854, 0
    %v2514 = vsel %vm1977, %v1414, 0
    %2516 = vmatprep.subr.mxu0 0.0
    %2517 = vmatpush1.xpose.msra.mxu0 %v2514
    %2518 = vmatprep.subr.mxu0 0.0
    %2519 = vmatpush1.xpose.msra.mxu0 0.0
    %2520 = vmatprep.subr.mxu0 0.0
    %2521 = vmatpush1.xpose.msra.mxu0 0.0
    %2522 = vmatprep.subr.mxu0 0.0
    %2523 = vmatpush1.xpose.msra.mxu0 0.0
    %2524 = vmatprep.subr.mxu0 0.0
    %2525 = vmatpush1.xpose.msra.mxu0 0.0
    %2526 = vmatprep.subr.mxu0 0.0
    %2527 = vmatpush1.xpose.msra.mxu0 0.0
    %2528 = vmatprep.subr.mxu0 0.0
    %2529 = vmatpush1.xpose.msra.mxu0 0.0
    %2530 = vmatprep.subr.mxu0 0.0
    %2531 = vmatpush1.xpose.msra.mxu0 0.0
    %2532 = vmatprep.subr.mxu0 0.0
    %2533 = vmatpush1.xpose.msra.mxu0 0.0
    %2534 = vmatprep.subr.mxu0 0.0
    %2535 = vmatpush1.xpose.msra.mxu0 0.0
    %2536 = vmatprep.subr.mxu0 0.0
    %2537 = vmatpush1.xpose.msra.mxu0 0.0
    %2538 = vmatprep.subr.mxu0 0.0
    %2539 = vmatpush1.xpose.msra.mxu0 0.0
    %2540 = vmatprep.subr.mxu0 0.0
    %2541 = vmatpush1.xpose.msra.mxu0 0.0
    %2542 = vmatprep.subr.mxu0 0.0
    %2543 = vmatpush1.xpose.msra.mxu0 0.0
    %2544 = vmatprep.subr.mxu0 0.0
    %2545 = vmatpush1.xpose.msra.mxu0 0.0
    %2546 = vmatprep.subr.mxu0 0.0
    %2547 = vmatpush1.xpose.msra.mxu0 0.0
    %2548 = vmatprep.subr.mxu0 0.0
    %2549 = vmatpush1.xpose.msra.mxu0 0.0
    %2550 = vmatprep.subr.mxu0 0.0
    %2551 = vmatpush1.xpose.msra.mxu0 0.0
    %2552 = vmatprep.subr.mxu0 0.0
    %2553 = vmatpush1.xpose.msra.mxu0 0.0
    %2554 = vmatprep.subr.mxu0 0.0
    %2555 = vmatpush1.xpose.msra.mxu0 0.0
    %2556 = vmatprep.subr.mxu0 0.0
    %2557 = vmatpush1.xpose.msra.mxu0 0.0
    %2558 = vmatprep.subr.mxu0 0.0
    %2559 = vmatpush1.xpose.msra.mxu0 0.0
    %2560 = vmatprep.subr.mxu0 0.0
    %2561 = vmatpush1.xpose.msra.mxu0 0.0
    %2562 = vmatprep.subr.mxu0 0.0
    %2563 = vmatpush1.xpose.msra.mxu0 0.0
    %2564 = vmatprep.subr.mxu0 0.0
    %2565 = vmatpush1.xpose.msra.mxu0 0.0
    %2566 = vmatprep.subr.mxu0 0.0
    %2567 = vmatpush1.xpose.msra.mxu0 0.0
    %2568 = vmatprep.subr.mxu0 0.0
    %2569 = vmatpush1.xpose.msra.mxu0 0.0
    %2570 = vmatprep.subr.mxu0 0.0
    %2571 = vmatpush1.xpose.msra.mxu0 0.0
    %2572 = vmatprep.subr.mxu0 0.0
    %2573 = vmatpush1.xpose.msra.mxu0 0.0
    %2574 = vmatprep.subr.mxu0 0.0
    %2575 = vmatpush1.xpose.msra.mxu0 0.0
    %2576 = vmatprep.subr.mxu0 0.0
    %2577 = vmatpush1.xpose.msra.mxu0 0.0
    %2578 = vmatprep.subr.mxu0 0.0
    %2579 = vmatpush1.xpose.msra.mxu0 0.0
    %2580 = vmatprep.mubr.f32.mxu0 0.0
    %2581 = vmatmul.mubr.f32.gmra.mrb[0].mxu0 %v2511
    %v2582 = vpop.f32.mrb[0].mxu0
    %v2583 = vadd.f32 0.0, %v2582
    %v2584 = vpop.f32.mrb[0].mxu0
    %2585 = vdwg.mxu0
    %v2586 = vld [vmem:[%s5] sm:$0xff]
    %v2587 = vmul.f32 %v2051, %v2586
    %v2588 = vmul.f32 %v2127, %v2586
    %v2589 = vmul.f32 %v2203, %v2586
    %v2590 = vmul.f32 %v2279, %v2586
    %v2591 = vmul.f32 %v2355, %v2586
    %v2592 = vmul.f32 %v2431, %v2586
    %v2593 = vmul.f32 %v2507, %v2586
    %v2594 = vmul.f32 %v2583, %v2586
    %v2595 = vsub.f32 1.0, %v2586
    %v2596 = vmul.f32 %v2595, 10000.0
    %v2597 = vsub.f32 %v2587, %v2596
    %v2598 = vsub.f32 %v2588, %v2596
    %v2599 = vsub.f32 %v2589, %v2596
    %v2600 = vsub.f32 %v2590, %v2596
    %v2601 = vsub.f32 %v2591, %v2596
    %v2602 = vsub.f32 %v2592, %v2596
    %v2603 = vsub.f32 %v2593, %v2596
    %v2604 = vsub.f32 %v2594, %v2596
    %v2605 = vsel %vm1977, %v2597, -inf
    %2606 = vmax.xlane.f32.xlu0 %v2605
    %v2607 = vpop.xlane.xlu0 %2606
    %v2608 = vsel %vm1977, %v2598, -inf
    %2609 = vmax.xlane.f32.xlu0 %v2608
    %v2610 = vpop.xlane.xlu0 %2609
    %v2611 = vsel %vm1977, %v2599, -inf
    %2612 = vmax.xlane.f32.xlu0 %v2611
    %v2613 = vpop.xlane.xlu0 %2612
    %v2614 = vsel %vm1977, %v2600, -inf
    %2615 = vmax.xlane.f32.xlu0 %v2614
    %v2616 = vpop.xlane.xlu0 %2615
    %v2617 = vsel %vm1977, %v2601, -inf
    %2618 = vmax.xlane.f32.xlu0 %v2617
    %v2619 = vpop.xlane.xlu0 %2618
    %v2620 = vsel %vm1977, %v2602, -inf
    %2621 = vmax.xlane.f32.xlu0 %v2620
    %v2622 = vpop.xlane.xlu0 %2621
    %v2623 = vsel %vm1977, %v2603, -inf
    %2624 = vmax.xlane.f32.xlu0 %v2623
    %v2625 = vpop.xlane.xlu0 %2624
    %v2626 = vsel %vm1977, %v2604, -inf
    %2627 = vmax.xlane.f32.xlu0 %v2626
    %v2628 = vpop.xlane.xlu0 %2627
    %v2629 = vsub.f32 %v2597, %v2607
    %v2630 = vsub.f32 %v2598, %v2610
    %v2631 = vsub.f32 %v2599, %v2613
    %v2632 = vsub.f32 %v2600, %v2616
    %v2633 = vsub.f32 %v2601, %v2619
    %v2634 = vsub.f32 %v2602, %v2622
    %v2635 = vsub.f32 %v2603, %v2625
    %v2636 = vsub.f32 %v2604, %v2628
    %v2637 = vmul.f32 %v2629, 1.442695
    %v2638 = vpow.pop %v2637
    %v2639 = vmul.f32 %v2630, 1.442695
    %v2640 = vpow.pop %v2639
    %v2641 = vmul.f32 %v2631, 1.442695
    %v2642 = vpow.pop %v2641
    %v2643 = vmul.f32 %v2632, 1.442695
    %v2644 = vpow.pop %v2643
    %v2645 = vmul.f32 %v2633, 1.442695
    %v2646 = vpow.pop %v2645
    %v2647 = vmul.f32 %v2634, 1.442695
    %v2648 = vpow.pop %v2647
    %v2649 = vmul.f32 %v2635, 1.442695
    %v2650 = vpow.pop %v2649
    %v2651 = vmul.f32 %v2636, 1.442695
    %v2652 = vpow.pop %v2651
    %v2653 = vsel %vm1977, %v2638, 0.0
    %2654 = vadd.xlane.f32.xlu0 %v2653
    %v2655 = vpop.xlane.xlu0 %2654
    %v2656 = vsel %vm1977, %v2640, 0.0
    %2657 = vadd.xlane.f32.xlu0 %v2656
    %v2658 = vpop.xlane.xlu0 %2657
    %v2659 = vsel %vm1977, %v2642, 0.0
    %2660 = vadd.xlane.f32.xlu0 %v2659
    %v2661 = vpop.xlane.xlu0 %2660
    %v2662 = vsel %vm1977, %v2644, 0.0
    %2663 = vadd.xlane.f32.xlu0 %v2662
    %v2664 = vpop.xlane.xlu0 %2663
    %v2665 = vsel %vm1977, %v2646, 0.0
    %2666 = vadd.xlane.f32.xlu0 %v2665
    %v2667 = vpop.xlane.xlu0 %2666
    %v2668 = vsel %vm1977, %v2648, 0.0
    %2669 = vadd.xlane.f32.xlu0 %v2668
    %v2670 = vpop.xlane.xlu0 %2669
    %v2671 = vsel %vm1977, %v2650, 0.0
    %2672 = vadd.xlane.f32.xlu0 %v2671
    %v2673 = vpop.xlane.xlu0 %2672
    %v2674 = vsel %vm1977, %v2652, 0.0
    %2675 = vadd.xlane.f32.xlu0 %v2674
    %v2676 = vpop.xlane.xlu0 %2675
    %v2677 = vrcp.pop %v2655
    %v2678 = vrcp.pop %v2658
    %v2679 = vrcp.pop %v2661
    %v2680 = vrcp.pop %v2664
    %v2681 = vrcp.pop %v2667
    %v2682 = vrcp.pop %v2670
    %v2683 = vrcp.pop %v2673
    %v2684 = vrcp.pop %v2676
    %v2685 = vmul.f32 %v2638, %v2677
    %v2686 = vmul.f32 %v2640, %v2678
    %v2687 = vmul.f32 %v2642, %v2679
    %v2688 = vmul.f32 %v2644, %v2680
    %v2689 = vmul.f32 %v2646, %v2681
    %v2690 = vmul.f32 %v2648, %v2682
    %v2691 = vmul.f32 %v2650, %v2683
    %v2692 = vmul.f32 %v2652, %v2684
    %v2694 = vsel %vm1977, %v2685, 0
    %2696 = vmatprep.subr.mxu0 0.0
    %2697 = vmatpush1.msra.mxu0 %v1484
    %2698 = vmatprep.subr.mxu0 0.0
    %2699 = vmatpush1.msra.mxu0 0.0
    %2700 = vmatprep.subr.mxu0 0.0
    %2701 = vmatpush1.msra.mxu0 0.0
    %2702 = vmatprep.subr.mxu0 0.0
    %2703 = vmatpush1.msra.mxu0 0.0
    %2704 = vmatprep.subr.mxu0 0.0
    %2705 = vmatpush1.msra.mxu0 0.0
    %2706 = vmatprep.subr.mxu0 0.0
    %2707 = vmatpush1.msra.mxu0 0.0
    %2708 = vmatprep.subr.mxu0 0.0
    %2709 = vmatpush1.msra.mxu0 0.0
    %2710 = vmatprep.subr.mxu0 0.0
    %2711 = vmatpush1.msra.mxu0 0.0
    %2712 = vmatprep.subr.mxu0 0.0
    %2713 = vmatpush1.msra.mxu0 0.0
    %2714 = vmatprep.subr.mxu0 0.0
    %2715 = vmatpush1.msra.mxu0 0.0
    %2716 = vmatprep.subr.mxu0 0.0
    %2717 = vmatpush1.msra.mxu0 0.0
    %2718 = vmatprep.subr.mxu0 0.0
    %2719 = vmatpush1.msra.mxu0 0.0
    %2720 = vmatprep.subr.mxu0 0.0
    %2721 = vmatpush1.msra.mxu0 0.0
    %2722 = vmatprep.subr.mxu0 0.0
    %2723 = vmatpush1.msra.mxu0 0.0
    %2724 = vmatprep.subr.mxu0 0.0
    %2725 = vmatpush1.msra.mxu0 0.0
    %2726 = vmatprep.subr.mxu0 0.0
    %2727 = vmatpush1.msra.mxu0 0.0
    %2728 = vmatprep.subr.mxu0 0.0
    %2729 = vmatpush1.msra.mxu0 0.0
    %2730 = vmatprep.subr.mxu0 0.0
    %2731 = vmatpush1.msra.mxu0 0.0
    %2732 = vmatprep.subr.mxu0 0.0
    %2733 = vmatpush1.msra.mxu0 0.0
    %2734 = vmatprep.subr.mxu0 0.0
    %2735 = vmatpush1.msra.mxu0 0.0
    %2736 = vmatprep.subr.mxu0 0.0
    %2737 = vmatpush1.msra.mxu0 0.0
    %2738 = vmatprep.subr.mxu0 0.0
    %2739 = vmatpush1.msra.mxu0 0.0
    %2740 = vmatprep.subr.mxu0 0.0
    %2741 = vmatpush1.msra.mxu0 0.0
    %2742 = vmatprep.subr.mxu0 0.0
    %2743 = vmatpush1.msra.mxu0 0.0
    %2744 = vmatprep.subr.mxu0 0.0
    %2745 = vmatpush1.msra.mxu0 0.0
    %2746 = vmatprep.subr.mxu0 0.0
    %2747 = vmatpush1.msra.mxu0 0.0
    %2748 = vmatprep.subr.mxu0 0.0
    %2749 = vmatpush1.msra.mxu0 0.0
    %2750 = vmatprep.subr.mxu0 0.0
    %2751 = vmatpush1.msra.mxu0 0.0
    %2752 = vmatprep.subr.mxu0 0.0
    %2753 = vmatpush1.msra.mxu0 0.0
    %2754 = vmatprep.subr.mxu0 0.0
    %2755 = vmatpush1.msra.mxu0 0.0
    %2756 = vmatprep.subr.mxu0 0.0
    %2757 = vmatpush1.msra.mxu0 0.0
    %2758 = vmatprep.subr.mxu0 0.0
    %2759 = vmatpush1.msra.mxu0 0.0
    %2760 = vmatprep.mubr.f32.mxu0 0.0
    %2761 = vmatmul.mubr.f32.gmra.mrb[0].mxu0 %v2694
    %v2762 = vpop.f32.mrb[0].mxu0
    %v2763 = vadd.f32 0.0, %v2762
    %v2764 = vpop.f32.mrb[0].mxu0
    %2765 = vdwg.mxu0
    %v2767 = vsel %vm1977, %v2686, 0
    %2769 = vmatprep.subr.mxu0 0.0
    %2770 = vmatpush1.msra.mxu0 %v1554
    %2771 = vmatprep.subr.mxu0 0.0
    %2772 = vmatpush1.msra.mxu0 0.0
    %2773 = vmatprep.subr.mxu0 0.0
    %2774 = vmatpush1.msra.mxu0 0.0
    %2775 = vmatprep.subr.mxu0 0.0
    %2776 = vmatpush1.msra.mxu0 0.0
    %2777 = vmatprep.subr.mxu0 0.0
    %2778 = vmatpush1.msra.mxu0 0.0
    %2779 = vmatprep.subr.mxu0 0.0
    %2780 = vmatpush1.msra.mxu0 0.0
    %2781 = vmatprep.subr.mxu0 0.0
    %2782 = vmatpush1.msra.mxu0 0.0
    %2783 = vmatprep.subr.mxu0 0.0
    %2784 = vmatpush1.msra.mxu0 0.0
    %2785 = vmatprep.subr.mxu0 0.0
    %2786 = vmatpush1.msra.mxu0 0.0
    %2787 = vmatprep.subr.mxu0 0.0
    %2788 = vmatpush1.msra.mxu0 0.0
    %2789 = vmatprep.subr.mxu0 0.0
    %2790 = vmatpush1.msra.mxu0 0.0
    %2791 = vmatprep.subr.mxu0 0.0
    %2792 = vmatpush1.msra.mxu0 0.0
    %2793 = vmatprep.subr.mxu0 0.0
    %2794 = vmatpush1.msra.mxu0 0.0
    %2795 = vmatprep.subr.mxu0 0.0
    %2796 = vmatpush1.msra.mxu0 0.0
    %2797 = vmatprep.subr.mxu0 0.0
    %2798 = vmatpush1.msra.mxu0 0.0
    %2799 = vmatprep.subr.mxu0 0.0
    %2800 = vmatpush1.msra.mxu0 0.0
    %2801 = vmatprep.subr.mxu0 0.0
    %2802 = vmatpush1.msra.mxu0 0.0
    %2803 = vmatprep.subr.mxu0 0.0
    %2804 = vmatpush1.msra.mxu0 0.0
    %2805 = vmatprep.subr.mxu0 0.0
    %2806 = vmatpush1.msra.mxu0 0.0
    %2807 = vmatprep.subr.mxu0 0.0
    %2808 = vmatpush1.msra.mxu0 0.0
    %2809 = vmatprep.subr.mxu0 0.0
    %2810 = vmatpush1.msra.mxu0 0.0
    %2811 = vmatprep.subr.mxu0 0.0
    %2812 = vmatpush1.msra.mxu0 0.0
    %2813 = vmatprep.subr.mxu0 0.0
    %2814 = vmatpush1.msra.mxu0 0.0
    %2815 = vmatprep.subr.mxu0 0.0
    %2816 = vmatpush1.msra.mxu0 0.0
    %2817 = vmatprep.subr.mxu0 0.0
    %2818 = vmatpush1.msra.mxu0 0.0
    %2819 = vmatprep.subr.mxu0 0.0
    %2820 = vmatpush1.msra.mxu0 0.0
    %2821 = vmatprep.subr.mxu0 0.0
    %2822 = vmatpush1.msra.mxu0 0.0
    %2823 = vmatprep.subr.mxu0 0.0
    %2824 = vmatpush1.msra.mxu0 0.0
    %2825 = vmatprep.subr.mxu0 0.0
    %2826 = vmatpush1.msra.mxu0 0.0
    %2827 = vmatprep.subr.mxu0 0.0
    %2828 = vmatpush1.msra.mxu0 0.0
    %2829 = vmatprep.subr.mxu0 0.0
    %2830 = vmatpush1.msra.mxu0 0.0
    %2831 = vmatprep.subr.mxu0 0.0
    %2832 = vmatpush1.msra.mxu0 0.0
    %2833 = vmatprep.mubr.f32.mxu0 0.0
    %2834 = vmatmul.mubr.f32.gmra.mrb[0].mxu0 %v2767
    %v2835 = vpop.f32.mrb[0].mxu0
    %v2836 = vadd.f32 0.0, %v2835
    %v2837 = vpop.f32.mrb[0].mxu0
    %2838 = vdwg.mxu0
    %v2840 = vsel %vm1977, %v2687, 0
    %2842 = vmatprep.subr.mxu0 0.0
    %2843 = vmatpush1.msra.mxu0 %v1624
    %2844 = vmatprep.subr.mxu0 0.0
    %2845 = vmatpush1.msra.mxu0 0.0
    %2846 = vmatprep.subr.mxu0 0.0
    %2847 = vmatpush1.msra.mxu0 0.0
    %2848 = vmatprep.subr.mxu0 0.0
    %2849 = vmatpush1.msra.mxu0 0.0
    %2850 = vmatprep.subr.mxu0 0.0
    %2851 = vmatpush1.msra.mxu0 0.0
    %2852 = vmatprep.subr.mxu0 0.0
    %2853 = vmatpush1.msra.mxu0 0.0
    %2854 = vmatprep.subr.mxu0 0.0
    %2855 = vmatpush1.msra.mxu0 0.0
    %2856 = vmatprep.subr.mxu0 0.0
    %2857 = vmatpush1.msra.mxu0 0.0
    %2858 = vmatprep.subr.mxu0 0.0
    %2859 = vmatpush1.msra.mxu0 0.0
    %2860 = vmatprep.subr.mxu0 0.0
    %2861 = vmatpush1.msra.mxu0 0.0
    %2862 = vmatprep.subr.mxu0 0.0
    %2863 = vmatpush1.msra.mxu0 0.0
    %2864 = vmatprep.subr.mxu0 0.0
    %2865 = vmatpush1.msra.mxu0 0.0
    %2866 = vmatprep.subr.mxu0 0.0
    %2867 = vmatpush1.msra.mxu0 0.0
    %2868 = vmatprep.subr.mxu0 0.0
    %2869 = vmatpush1.msra.mxu0 0.0
    %2870 = vmatprep.subr.mxu0 0.0
    %2871 = vmatpush1.msra.mxu0 0.0
    %2872 = vmatprep.subr.mxu0 0.0
    %2873 = vmatpush1.msra.mxu0 0.0
    %2874 = vmatprep.subr.mxu0 0.0
    %2875 = vmatpush1.msra.mxu0 0.0
    %2876 = vmatprep.subr.mxu0 0.0
    %2877 = vmatpush1.msra.mxu0 0.0
    %2878 = vmatprep.subr.mxu0 0.0
    %2879 = vmatpush1.msra.mxu0 0.0
    %2880 = vmatprep.subr.mxu0 0.0
    %2881 = vmatpush1.msra.mxu0 0.0
    %2882 = vmatprep.subr.mxu0 0.0
    %2883 = vmatpush1.msra.mxu0 0.0
    %2884 = vmatprep.subr.mxu0 0.0
    %2885 = vmatpush1.msra.mxu0 0.0
    %2886 = vmatprep.subr.mxu0 0.0
    %2887 = vmatpush1.msra.mxu0 0.0
    %2888 = vmatprep.subr.mxu0 0.0
    %2889 = vmatpush1.msra.mxu0 0.0
    %2890 = vmatprep.subr.mxu0 0.0
    %2891 = vmatpush1.msra.mxu0 0.0
    %2892 = vmatprep.subr.mxu0 0.0
    %2893 = vmatpush1.msra.mxu0 0.0
    %2894 = vmatprep.subr.mxu0 0.0
    %2895 = vmatpush1.msra.mxu0 0.0
    %2896 = vmatprep.subr.mxu0 0.0
    %2897 = vmatpush1.msra.mxu0 0.0
    %2898 = vmatprep.subr.mxu0 0.0
    %2899 = vmatpush1.msra.mxu0 0.0
    %2900 = vmatprep.subr.mxu0 0.0
    %2901 = vmatpush1.msra.mxu0 0.0
    %2902 = vmatprep.subr.mxu0 0.0
    %2903 = vmatpush1.msra.mxu0 0.0
    %2904 = vmatprep.subr.mxu0 0.0
    %2905 = vmatpush1.msra.mxu0 0.0
    %2906 = vmatprep.mubr.f32.mxu0 0.0
    %2907 = vmatmul.mubr.f32.gmra.mrb[0].mxu0 %v2840
    %v2908 = vpop.f32.mrb[0].mxu0
    %v2909 = vadd.f32 0.0, %v2908
    %v2910 = vpop.f32.mrb[0].mxu0
    %2911 = vdwg.mxu0
    %v2913 = vsel %vm1977, %v2688, 0
    %2915 = vmatprep.subr.mxu0 0.0
    %2916 = vmatpush1.msra.mxu0 %v1694
    %2917 = vmatprep.subr.mxu0 0.0
    %2918 = vmatpush1.msra.mxu0 0.0
    %2919 = vmatprep.subr.mxu0 0.0
    %2920 = vmatpush1.msra.mxu0 0.0
    %2921 = vmatprep.subr.mxu0 0.0
    %2922 = vmatpush1.msra.mxu0 0.0
    %2923 = vmatprep.subr.mxu0 0.0
    %2924 = vmatpush1.msra.mxu0 0.0
    %2925 = vmatprep.subr.mxu0 0.0
    %2926 = vmatpush1.msra.mxu0 0.0
    %2927 = vmatprep.subr.mxu0 0.0
    %2928 = vmatpush1.msra.mxu0 0.0
    %2929 = vmatprep.subr.mxu0 0.0
    %2930 = vmatpush1.msra.mxu0 0.0
    %2931 = vmatprep.subr.mxu0 0.0
    %2932 = vmatpush1.msra.mxu0 0.0
    %2933 = vmatprep.subr.mxu0 0.0
    %2934 = vmatpush1.msra.mxu0 0.0
    %2935 = vmatprep.subr.mxu0 0.0
    %2936 = vmatpush1.msra.mxu0 0.0
    %2937 = vmatprep.subr.mxu0 0.0
    %2938 = vmatpush1.msra.mxu0 0.0
    %2939 = vmatprep.subr.mxu0 0.0
    %2940 = vmatpush1.msra.mxu0 0.0
    %2941 = vmatprep.subr.mxu0 0.0
    %2942 = vmatpush1.msra.mxu0 0.0
    %2943 = vmatprep.subr.mxu0 0.0
    %2944 = vmatpush1.msra.mxu0 0.0
    %2945 = vmatprep.subr.mxu0 0.0
    %2946 = vmatpush1.msra.mxu0 0.0
    %2947 = vmatprep.subr.mxu0 0.0
    %2948 = vmatpush1.msra.mxu0 0.0
    %2949 = vmatprep.subr.mxu0 0.0
    %2950 = vmatpush1.msra.mxu0 0.0
    %2951 = vmatprep.subr.mxu0 0.0
    %2952 = vmatpush1.msra.mxu0 0.0
    %2953 = vmatprep.subr.mxu0 0.0
    %2954 = vmatpush1.msra.mxu0 0.0
    %2955 = vmatprep.subr.mxu0 0.0
    %2956 = vmatpush1.msra.mxu0 0.0
    %2957 = vmatprep.subr.mxu0 0.0
    %2958 = vmatpush1.msra.mxu0 0.0
    %2959 = vmatprep.subr.mxu0 0.0
    %2960 = vmatpush1.msra.mxu0 0.0
    %2961 = vmatprep.subr.mxu0 0.0
    %2962 = vmatpush1.msra.mxu0 0.0
    %2963 = vmatprep.subr.mxu0 0.0
    %2964 = vmatpush1.msra.mxu0 0.0
    %2965 = vmatprep.subr.mxu0 0.0
    %2966 = vmatpush1.msra.mxu0 0.0
    %2967 = vmatprep.subr.mxu0 0.0
    %2968 = vmatpush1.msra.mxu0 0.0
    %2969 = vmatprep.subr.mxu0 0.0
    %2970 = vmatpush1.msra.mxu0 0.0
    %2971 = vmatprep.subr.mxu0 0.0
    %2972 = vmatpush1.msra.mxu0 0.0
    %2973 = vmatprep.subr.mxu0 0.0
    %2974 = vmatpush1.msra.mxu0 0.0
    %2975 = vmatprep.subr.mxu0 0.0
    %2976 = vmatpush1.msra.mxu0 0.0
    %2977 = vmatprep.subr.mxu0 0.0
    %2978 = vmatpush1.msra.mxu0 0.0
    %2979 = vmatprep.mubr.f32.mxu0 0.0
    %2980 = vmatmul.mubr.f32.gmra.mrb[0].mxu0 %v2913
    %v2981 = vpop.f32.mrb[0].mxu0
    %v2982 = vadd.f32 0.0, %v2981
    %v2983 = vpop.f32.mrb[0].mxu0
    %2984 = vdwg.mxu0
    %v2986 = vsel %vm1977, %v2689, 0
    %2988 = vmatprep.subr.mxu0 0.0
    %2989 = vmatpush1.msra.mxu0 %v1764
    %2990 = vmatprep.subr.mxu0 0.0
    %2991 = vmatpush1.msra.mxu0 0.0
    %2992 = vmatprep.subr.mxu0 0.0
    %2993 = vmatpush1.msra.mxu0 0.0
    %2994 = vmatprep.subr.mxu0 0.0
    %2995 = vmatpush1.msra.mxu0 0.0
    %2996 = vmatprep.subr.mxu0 0.0
    %2997 = vmatpush1.msra.mxu0 0.0
    %2998 = vmatprep.subr.mxu0 0.0
    %2999 = vmatpush1.msra.mxu0 0.0
    %3000 = vmatprep.subr.mxu0 0.0
    %3001 = vmatpush1.msra.mxu0 0.0
    %3002 = vmatprep.subr.mxu0 0.0
    %3003 = vmatpush1.msra.mxu0 0.0
    %3004 = vmatprep.subr.mxu0 0.0
    %3005 = vmatpush1.msra.mxu0 0.0
    %3006 = vmatprep.subr.mxu0 0.0
    %3007 = vmatpush1.msra.mxu0 0.0
    %3008 = vmatprep.subr.mxu0 0.0
    %3009 = vmatpush1.msra.mxu0 0.0
    %3010 = vmatprep.subr.mxu0 0.0
    %3011 = vmatpush1.msra.mxu0 0.0
    %3012 = vmatprep.subr.mxu0 0.0
    %3013 = vmatpush1.msra.mxu0 0.0
    %3014 = vmatprep.subr.mxu0 0.0
    %3015 = vmatpush1.msra.mxu0 0.0
    %3016 = vmatprep.subr.mxu0 0.0
    %3017 = vmatpush1.msra.mxu0 0.0
    %3018 = vmatprep.subr.mxu0 0.0
    %3019 = vmatpush1.msra.mxu0 0.0
    %3020 = vmatprep.subr.mxu0 0.0
    %3021 = vmatpush1.msra.mxu0 0.0
    %3022 = vmatprep.subr.mxu0 0.0
    %3023 = vmatpush1.msra.mxu0 0.0
    %3024 = vmatprep.subr.mxu0 0.0
    %3025 = vmatpush1.msra.mxu0 0.0
    %3026 = vmatprep.subr.mxu0 0.0
    %3027 = vmatpush1.msra.mxu0 0.0
    %3028 = vmatprep.subr.mxu0 0.0
    %3029 = vmatpush1.msra.mxu0 0.0
    %3030 = vmatprep.subr.mxu0 0.0
    %3031 = vmatpush1.msra.mxu0 0.0
    %3032 = vmatprep.subr.mxu0 0.0
    %3033 = vmatpush1.msra.mxu0 0.0
    %3034 = vmatprep.subr.mxu0 0.0
    %3035 = vmatpush1.msra.mxu0 0.0
    %3036 = vmatprep.subr.mxu0 0.0
    %3037 = vmatpush1.msra.mxu0 0.0
    %3038 = vmatprep.subr.mxu0 0.0
    %3039 = vmatpush1.msra.mxu0 0.0
    %3040 = vmatprep.subr.mxu0 0.0
    %3041 = vmatpush1.msra.mxu0 0.0
    %3042 = vmatprep.subr.mxu0 0.0
    %3043 = vmatpush1.msra.mxu0 0.0
    %3044 = vmatprep.subr.mxu0 0.0
    %3045 = vmatpush1.msra.mxu0 0.0
    %3046 = vmatprep.subr.mxu0 0.0
    %3047 = vmatpush1.msra.mxu0 0.0
    %3048 = vmatprep.subr.mxu0 0.0
    %3049 = vmatpush1.msra.mxu0 0.0
    %3050 = vmatprep.subr.mxu0 0.0
    %3051 = vmatpush1.msra.mxu0 0.0
    %3052 = vmatprep.mubr.f32.mxu0 0.0
    %3053 = vmatmul.mubr.f32.gmra.mrb[0].mxu0 %v2986
    %v3054 = vpop.f32.mrb[0].mxu0
    %v3055 = vadd.f32 0.0, %v3054
    %v3056 = vpop.f32.mrb[0].mxu0
    %3057 = vdwg.mxu0
    %v3059 = vsel %vm1977, %v2690, 0
    %3061 = vmatprep.subr.mxu0 0.0
    %3062 = vmatpush1.msra.mxu0 %v1834
    %3063 = vmatprep.subr.mxu0 0.0
    %3064 = vmatpush1.msra.mxu0 0.0
    %3065 = vmatprep.subr.mxu0 0.0
    %3066 = vmatpush1.msra.mxu0 0.0
    %3067 = vmatprep.subr.mxu0 0.0
    %3068 = vmatpush1.msra.mxu0 0.0
    %3069 = vmatprep.subr.mxu0 0.0
    %3070 = vmatpush1.msra.mxu0 0.0
    %3071 = vmatprep.subr.mxu0 0.0
    %3072 = vmatpush1.msra.mxu0 0.0
    %3073 = vmatprep.subr.mxu0 0.0
    %3074 = vmatpush1.msra.mxu0 0.0
    %3075 = vmatprep.subr.mxu0 0.0
    %3076 = vmatpush1.msra.mxu0 0.0
    %3077 = vmatprep.subr.mxu0 0.0
    %3078 = vmatpush1.msra.mxu0 0.0
    %3079 = vmatprep.subr.mxu0 0.0
    %3080 = vmatpush1.msra.mxu0 0.0
    %3081 = vmatprep.subr.mxu0 0.0
    %3082 = vmatpush1.msra.mxu0 0.0
    %3083 = vmatprep.subr.mxu0 0.0
    %3084 = vmatpush1.msra.mxu0 0.0
    %3085 = vmatprep.subr.mxu0 0.0
    %3086 = vmatpush1.msra.mxu0 0.0
    %3087 = vmatprep.subr.mxu0 0.0
    %3088 = vmatpush1.msra.mxu0 0.0
    %3089 = vmatprep.subr.mxu0 0.0
    %3090 = vmatpush1.msra.mxu0 0.0
    %3091 = vmatprep.subr.mxu0 0.0
    %3092 = vmatpush1.msra.mxu0 0.0
    %3093 = vmatprep.subr.mxu0 0.0
    %3094 = vmatpush1.msra.mxu0 0.0
    %3095 = vmatprep.subr.mxu0 0.0
    %3096 = vmatpush1.msra.mxu0 0.0
    %3097 = vmatprep.subr.mxu0 0.0
    %3098 = vmatpush1.msra.mxu0 0.0
    %3099 = vmatprep.subr.mxu0 0.0
    %3100 = vmatpush1.msra.mxu0 0.0
    %3101 = vmatprep.subr.mxu0 0.0
    %3102 = vmatpush1.msra.mxu0 0.0
    %3103 = vmatprep.subr.mxu0 0.0
    %3104 = vmatpush1.msra.mxu0 0.0
    %3105 = vmatprep.subr.mxu0 0.0
    %3106 = vmatpush1.msra.mxu0 0.0
    %3107 = vmatprep.subr.mxu0 0.0
    %3108 = vmatpush1.msra.mxu0 0.0
    %3109 = vmatprep.subr.mxu0 0.0
    %3110 = vmatpush1.msra.mxu0 0.0
    %3111 = vmatprep.subr.mxu0 0.0
    %3112 = vmatpush1.msra.mxu0 0.0
    %3113 = vmatprep.subr.mxu0 0.0
    %3114 = vmatpush1.msra.mxu0 0.0
    %3115 = vmatprep.subr.mxu0 0.0
    %3116 = vmatpush1.msra.mxu0 0.0
    %3117 = vmatprep.subr.mxu0 0.0
    %3118 = vmatpush1.msra.mxu0 0.0
    %3119 = vmatprep.subr.mxu0 0.0
    %3120 = vmatpush1.msra.mxu0 0.0
    %3121 = vmatprep.subr.mxu0 0.0
    %3122 = vmatpush1.msra.mxu0 0.0
    %3123 = vmatprep.subr.mxu0 0.0
    %3124 = vmatpush1.msra.mxu0 0.0
    %3125 = vmatprep.mubr.f32.mxu0 0.0
    %3126 = vmatmul.mubr.f32.gmra.mrb[0].mxu0 %v3059
    %v3127 = vpop.f32.mrb[0].mxu0
    %v3128 = vadd.f32 0.0, %v3127
    %v3129 = vpop.f32.mrb[0].mxu0
    %3130 = vdwg.mxu0
    %v3132 = vsel %vm1977, %v2691, 0
    %3134 = vmatprep.subr.mxu0 0.0
    %3135 = vmatpush1.msra.mxu0 %v1904
    %3136 = vmatprep.subr.mxu0 0.0
    %3137 = vmatpush1.msra.mxu0 0.0
    %3138 = vmatprep.subr.mxu0 0.0
    %3139 = vmatpush1.msra.mxu0 0.0
    %3140 = vmatprep.subr.mxu0 0.0
    %3141 = vmatpush1.msra.mxu0 0.0
    %3142 = vmatprep.subr.mxu0 0.0
    %3143 = vmatpush1.msra.mxu0 0.0
    %3144 = vmatprep.subr.mxu0 0.0
    %3145 = vmatpush1.msra.mxu0 0.0
    %3146 = vmatprep.subr.mxu0 0.0
    %3147 = vmatpush1.msra.mxu0 0.0
    %3148 = vmatprep.subr.mxu0 0.0
    %3149 = vmatpush1.msra.mxu0 0.0
    %3150 = vmatprep.subr.mxu0 0.0
    %3151 = vmatpush1.msra.mxu0 0.0
    %3152 = vmatprep.subr.mxu0 0.0
    %3153 = vmatpush1.msra.mxu0 0.0
    %3154 = vmatprep.subr.mxu0 0.0
    %3155 = vmatpush1.msra.mxu0 0.0
    %3156 = vmatprep.subr.mxu0 0.0
    %3157 = vmatpush1.msra.mxu0 0.0
    %3158 = vmatprep.subr.mxu0 0.0
    %3159 = vmatpush1.msra.mxu0 0.0
    %3160 = vmatprep.subr.mxu0 0.0
    %3161 = vmatpush1.msra.mxu0 0.0
    %3162 = vmatprep.subr.mxu0 0.0
    %3163 = vmatpush1.msra.mxu0 0.0
    %3164 = vmatprep.subr.mxu0 0.0
    %3165 = vmatpush1.msra.mxu0 0.0
    %3166 = vmatprep.subr.mxu0 0.0
    %3167 = vmatpush1.msra.mxu0 0.0
    %3168 = vmatprep.subr.mxu0 0.0
    %3169 = vmatpush1.msra.mxu0 0.0
    %3170 = vmatprep.subr.mxu0 0.0
    %3171 = vmatpush1.msra.mxu0 0.0
    %3172 = vmatprep.subr.mxu0 0.0
    %3173 = vmatpush1.msra.mxu0 0.0
    %3174 = vmatprep.subr.mxu0 0.0
    %3175 = vmatpush1.msra.mxu0 0.0
    %3176 = vmatprep.subr.mxu0 0.0
    %3177 = vmatpush1.msra.mxu0 0.0
    %3178 = vmatprep.subr.mxu0 0.0
    %3179 = vmatpush1.msra.mxu0 0.0
    %3180 = vmatprep.subr.mxu0 0.0
    %3181 = vmatpush1.msra.mxu0 0.0
    %3182 = vmatprep.subr.mxu0 0.0
    %3183 = vmatpush1.msra.mxu0 0.0
    %3184 = vmatprep.subr.mxu0 0.0
    %3185 = vmatpush1.msra.mxu0 0.0
    %3186 = vmatprep.subr.mxu0 0.0
    %3187 = vmatpush1.msra.mxu0 0.0
    %3188 = vmatprep.subr.mxu0 0.0
    %3189 = vmatpush1.msra.mxu0 0.0
    %3190 = vmatprep.subr.mxu0 0.0
    %3191 = vmatpush1.msra.mxu0 0.0
    %3192 = vmatprep.subr.mxu0 0.0
    %3193 = vmatpush1.msra.mxu0 0.0
    %3194 = vmatprep.subr.mxu0 0.0
    %3195 = vmatpush1.msra.mxu0 0.0
    %3196 = vmatprep.subr.mxu0 0.0
    %3197 = vmatpush1.msra.mxu0 0.0
    %3198 = vmatprep.mubr.f32.mxu0 0.0
    %3199 = vmatmul.mubr.f32.gmra.mrb[0].mxu0 %v3132
    %v3200 = vpop.f32.mrb[0].mxu0
    %v3201 = vadd.f32 0.0, %v3200
    %v3202 = vpop.f32.mrb[0].mxu0
    %3203 = vdwg.mxu0
    %v3205 = vsel %vm1977, %v2692, 0
    %3207 = vmatprep.subr.mxu0 0.0
    %3208 = vmatpush1.msra.mxu0 %v1974
    %3209 = vmatprep.subr.mxu0 0.0
    %3210 = vmatpush1.msra.mxu0 0.0
    %3211 = vmatprep.subr.mxu0 0.0
    %3212 = vmatpush1.msra.mxu0 0.0
    %3213 = vmatprep.subr.mxu0 0.0
    %3214 = vmatpush1.msra.mxu0 0.0
    %3215 = vmatprep.subr.mxu0 0.0
    %3216 = vmatpush1.msra.mxu0 0.0
    %3217 = vmatprep.subr.mxu0 0.0
    %3218 = vmatpush1.msra.mxu0 0.0
    %3219 = vmatprep.subr.mxu0 0.0
    %3220 = vmatpush1.msra.mxu0 0.0
    %3221 = vmatprep.subr.mxu0 0.0
    %3222 = vmatpush1.msra.mxu0 0.0
    %3223 = vmatprep.subr.mxu0 0.0
    %3224 = vmatpush1.msra.mxu0 0.0
    %3225 = vmatprep.subr.mxu0 0.0
    %3226 = vmatpush1.msra.mxu0 0.0
    %3227 = vmatprep.subr.mxu0 0.0
    %3228 = vmatpush1.msra.mxu0 0.0
    %3229 = vmatprep.subr.mxu0 0.0
    %3230 = vmatpush1.msra.mxu0 0.0
    %3231 = vmatprep.subr.mxu0 0.0
    %3232 = vmatpush1.msra.mxu0 0.0
    %3233 = vmatprep.subr.mxu0 0.0
    %3234 = vmatpush1.msra.mxu0 0.0
    %3235 = vmatprep.subr.mxu0 0.0
    %3236 = vmatpush1.msra.mxu0 0.0
    %3237 = vmatprep.subr.mxu0 0.0
    %3238 = vmatpush1.msra.mxu0 0.0
    %3239 = vmatprep.subr.mxu0 0.0
    %3240 = vmatpush1.msra.mxu0 0.0
    %3241 = vmatprep.subr.mxu0 0.0
    %3242 = vmatpush1.msra.mxu0 0.0
    %3243 = vmatprep.subr.mxu0 0.0
    %3244 = vmatpush1.msra.mxu0 0.0
    %3245 = vmatprep.subr.mxu0 0.0
    %3246 = vmatpush1.msra.mxu0 0.0
    %3247 = vmatprep.subr.mxu0 0.0
    %3248 = vmatpush1.msra.mxu0 0.0
    %3249 = vmatprep.subr.mxu0 0.0
    %3250 = vmatpush1.msra.mxu0 0.0
    %3251 = vmatprep.subr.mxu0 0.0
    %3252 = vmatpush1.msra.mxu0 0.0
    %3253 = vmatprep.subr.mxu0 0.0
    %3254 = vmatpush1.msra.mxu0 0.0
    %3255 = vmatprep.subr.mxu0 0.0
    %3256 = vmatpush1.msra.mxu0 0.0
    %3257 = vmatprep.subr.mxu0 0.0
    %3258 = vmatpush1.msra.mxu0 0.0
    %3259 = vmatprep.subr.mxu0 0.0
    %3260 = vmatpush1.msra.mxu0 0.0
    %3261 = vmatprep.subr.mxu0 0.0
    %3262 = vmatpush1.msra.mxu0 0.0
    %3263 = vmatprep.subr.mxu0 0.0
    %3264 = vmatpush1.msra.mxu0 0.0
    %3265 = vmatprep.subr.mxu0 0.0
    %3266 = vmatpush1.msra.mxu0 0.0
    %3267 = vmatprep.subr.mxu0 0.0
    %3268 = vmatpush1.msra.mxu0 0.0
    %3269 = vmatprep.subr.mxu0 0.0
    %3270 = vmatpush1.msra.mxu0 0.0
    %3271 = vmatprep.mubr.f32.mxu0 0.0
    %3272 = vmatmul.mubr.f32.gmra.mrb[0].mxu0 %v3205
    %v3273 = vpop.f32.mrb[0].mxu0
    %v3274 = vadd.f32 0.0, %v3273
    %v3275 = vpop.f32.mrb[0].mxu0
    %3276 = vdwg.mxu0
    %v3277 = vld [vmem:[%s3] sm:$0xff]
    %v3278 = vld [vmem:[%s3 + $0x8] sm:$0xff]
    %v3279 = vld [vmem:[%s3 + $0x10] sm:$0xff]
    %v3280 = vld [vmem:[%s3 + $0x18] sm:$0xff]
    %v3281 = vld [vmem:[%s3 + $0x20] sm:$0xff]
    %v3282 = vld [vmem:[%s3 + $0x28] sm:$0xff]
    %v3283 = vld [vmem:[%s3 + $0x30] sm:$0xff]
    %v3284 = vld [vmem:[%s3 + $0x38] sm:$0xff]
    %v3286 = vsel %vm1977, %v2763, 0
    %3288 = vmatprep.subr.mxu0 0.0
    %3289 = vmatpush1.msra.mxu0 %v3277
    %3290 = vmatprep.subr.mxu0 0.0
    %3291 = vmatpush1.msra.mxu0 0.0
    %3292 = vmatprep.subr.mxu0 0.0
    %3293 = vmatpush1.msra.mxu0 0.0
    %3294 = vmatprep.subr.mxu0 0.0
    %3295 = vmatpush1.msra.mxu0 0.0
    %3296 = vmatprep.subr.mxu0 0.0
    %3297 = vmatpush1.msra.mxu0 0.0
    %3298 = vmatprep.subr.mxu0 0.0
    %3299 = vmatpush1.msra.mxu0 0.0
    %3300 = vmatprep.subr.mxu0 0.0
    %3301 = vmatpush1.msra.mxu0 0.0
    %3302 = vmatprep.subr.mxu0 0.0
    %3303 = vmatpush1.msra.mxu0 0.0
    %3304 = vmatprep.subr.mxu0 0.0
    %3305 = vmatpush1.msra.mxu0 0.0
    %3306 = vmatprep.subr.mxu0 0.0
    %3307 = vmatpush1.msra.mxu0 0.0
    %3308 = vmatprep.subr.mxu0 0.0
    %3309 = vmatpush1.msra.mxu0 0.0
    %3310 = vmatprep.subr.mxu0 0.0
    %3311 = vmatpush1.msra.mxu0 0.0
    %3312 = vmatprep.subr.mxu0 0.0
    %3313 = vmatpush1.msra.mxu0 0.0
    %3314 = vmatprep.subr.mxu0 0.0
    %3315 = vmatpush1.msra.mxu0 0.0
    %3316 = vmatprep.subr.mxu0 0.0
    %3317 = vmatpush1.msra.mxu0 0.0
    %3318 = vmatprep.subr.mxu0 0.0
    %3319 = vmatpush1.msra.mxu0 0.0
    %3320 = vmatprep.subr.mxu0 0.0
    %3321 = vmatpush1.msra.mxu0 0.0
    %3322 = vmatprep.subr.mxu0 0.0
    %3323 = vmatpush1.msra.mxu0 0.0
    %3324 = vmatprep.subr.mxu0 0.0
    %3325 = vmatpush1.msra.mxu0 0.0
    %3326 = vmatprep.subr.mxu0 0.0
    %3327 = vmatpush1.msra.mxu0 0.0
    %3328 = vmatprep.subr.mxu0 0.0
    %3329 = vmatpush1.msra.mxu0 0.0
    %3330 = vmatprep.subr.mxu0 0.0
    %3331 = vmatpush1.msra.mxu0 0.0
    %3332 = vmatprep.subr.mxu0 0.0
    %3333 = vmatpush1.msra.mxu0 0.0
    %3334 = vmatprep.subr.mxu0 0.0
    %3335 = vmatpush1.msra.mxu0 0.0
    %3336 = vmatprep.subr.mxu0 0.0
    %3337 = vmatpush1.msra.mxu0 0.0
    %3338 = vmatprep.subr.mxu0 0.0
    %3339 = vmatpush1.msra.mxu0 0.0
    %3340 = vmatprep.subr.mxu0 0.0
    %3341 = vmatpush1.msra.mxu0 0.0
    %3342 = vmatprep.subr.mxu0 0.0
    %3343 = vmatpush1.msra.mxu0 0.0
    %3344 = vmatprep.subr.mxu0 0.0
    %3345 = vmatpush1.msra.mxu0 0.0
    %3346 = vmatprep.subr.mxu0 0.0
    %3347 = vmatpush1.msra.mxu0 0.0
    %3348 = vmatprep.subr.mxu0 0.0
    %3349 = vmatpush1.msra.mxu0 0.0
    %3350 = vmatprep.subr.mxu0 0.0
    %3351 = vmatpush1.msra.mxu0 0.0
    %3352 = vmatprep.mubr.f32.mxu0 0.0
    %3353 = vmatmul.mubr.f32.gmra.mrb[0].mxu0 %v3286
    %v3354 = vpop.f32.mrb[0].mxu0
    %v3355 = vadd.f32 0.0, %v3354
    %v3356 = vpop.f32.mrb[0].mxu0
    %3357 = vdwg.mxu0
    %v3359 = vsel %vm1977, %v2836, 0
    %3361 = vmatprep.subr.mxu0 0.0
    %3362 = vmatpush1.msra.mxu0 %v3278
    %3363 = vmatprep.subr.mxu0 0.0
    %3364 = vmatpush1.msra.mxu0 0.0
    %3365 = vmatprep.subr.mxu0 0.0
    %3366 = vmatpush1.msra.mxu0 0.0
    %3367 = vmatprep.subr.mxu0 0.0
    %3368 = vmatpush1.msra.mxu0 0.0
    %3369 = vmatprep.subr.mxu0 0.0
    %3370 = vmatpush1.msra.mxu0 0.0
    %3371 = vmatprep.subr.mxu0 0.0
    %3372 = vmatpush1.msra.mxu0 0.0
    %3373 = vmatprep.subr.mxu0 0.0
    %3374 = vmatpush1.msra.mxu0 0.0
    %3375 = vmatprep.subr.mxu0 0.0
    %3376 = vmatpush1.msra.mxu0 0.0
    %3377 = vmatprep.subr.mxu0 0.0
    %3378 = vmatpush1.msra.mxu0 0.0
    %3379 = vmatprep.subr.mxu0 0.0
    %3380 = vmatpush1.msra.mxu0 0.0
    %3381 = vmatprep.subr.mxu0 0.0
    %3382 = vmatpush1.msra.mxu0 0.0
    %3383 = vmatprep.subr.mxu0 0.0
    %3384 = vmatpush1.msra.mxu0 0.0
    %3385 = vmatprep.subr.mxu0 0.0
    %3386 = vmatpush1.msra.mxu0 0.0
    %3387 = vmatprep.subr.mxu0 0.0
    %3388 = vmatpush1.msra.mxu0 0.0
    %3389 = vmatprep.subr.mxu0 0.0
    %3390 = vmatpush1.msra.mxu0 0.0
    %3391 = vmatprep.subr.mxu0 0.0
    %3392 = vmatpush1.msra.mxu0 0.0
    %3393 = vmatprep.subr.mxu0 0.0
    %3394 = vmatpush1.msra.mxu0 0.0
    %3395 = vmatprep.subr.mxu0 0.0
    %3396 = vmatpush1.msra.mxu0 0.0
    %3397 = vmatprep.subr.mxu0 0.0
    %3398 = vmatpush1.msra.mxu0 0.0
    %3399 = vmatprep.subr.mxu0 0.0
    %3400 = vmatpush1.msra.mxu0 0.0
    %3401 = vmatprep.subr.mxu0 0.0
    %3402 = vmatpush1.msra.mxu0 0.0
    %3403 = vmatprep.subr.mxu0 0.0
    %3404 = vmatpush1.msra.mxu0 0.0
    %3405 = vmatprep.subr.mxu0 0.0
    %3406 = vmatpush1.msra.mxu0 0.0
    %3407 = vmatprep.subr.mxu0 0.0
    %3408 = vmatpush1.msra.mxu0 0.0
    %3409 = vmatprep.subr.mxu0 0.0
    %3410 = vmatpush1.msra.mxu0 0.0
    %3411 = vmatprep.subr.mxu0 0.0
    %3412 = vmatpush1.msra.mxu0 0.0
    %3413 = vmatprep.subr.mxu0 0.0
    %3414 = vmatpush1.msra.mxu0 0.0
    %3415 = vmatprep.subr.mxu0 0.0
    %3416 = vmatpush1.msra.mxu0 0.0
    %3417 = vmatprep.subr.mxu0 0.0
    %3418 = vmatpush1.msra.mxu0 0.0
    %3419 = vmatprep.subr.mxu0 0.0
    %3420 = vmatpush1.msra.mxu0 0.0
    %3421 = vmatprep.subr.mxu0 0.0
    %3422 = vmatpush1.msra.mxu0 0.0
    %3423 = vmatprep.subr.mxu0 0.0
    %3424 = vmatpush1.msra.mxu0 0.0
    %3425 = vmatprep.mubr.f32.mxu0 0.0
    %3426 = vmatmul.mubr.f32.gmra.mrb[0].mxu0 %v3359
    %v3427 = vpop.f32.mrb[0].mxu0
    %v3428 = vadd.f32 0.0, %v3427
    %v3429 = vpop.f32.mrb[0].mxu0
    %3430 = vdwg.mxu0
    %v3432 = vsel %vm1977, %v2909, 0
    %3434 = vmatprep.subr.mxu0 0.0
    %3435 = vmatpush1.msra.mxu0 %v3279
    %3436 = vmatprep.subr.mxu0 0.0
    %3437 = vmatpush1.msra.mxu0 0.0
    %3438 = vmatprep.subr.mxu0 0.0
    %3439 = vmatpush1.msra.mxu0 0.0
    %3440 = vmatprep.subr.mxu0 0.0
    %3441 = vmatpush1.msra.mxu0 0.0
    %3442 = vmatprep.subr.mxu0 0.0
    %3443 = vmatpush1.msra.mxu0 0.0
    %3444 = vmatprep.subr.mxu0 0.0
    %3445 = vmatpush1.msra.mxu0 0.0
    %3446 = vmatprep.subr.mxu0 0.0
    %3447 = vmatpush1.msra.mxu0 0.0
    %3448 = vmatprep.subr.mxu0 0.0
    %3449 = vmatpush1.msra.mxu0 0.0
    %3450 = vmatprep.subr.mxu0 0.0
    %3451 = vmatpush1.msra.mxu0 0.0
    %3452 = vmatprep.subr.mxu0 0.0
    %3453 = vmatpush1.msra.mxu0 0.0
    %3454 = vmatprep.subr.mxu0 0.0
    %3455 = vmatpush1.msra.mxu0 0.0
    %3456 = vmatprep.subr.mxu0 0.0
    %3457 = vmatpush1.msra.mxu0 0.0
    %3458 = vmatprep.subr.mxu0 0.0
    %3459 = vmatpush1.msra.mxu0 0.0
    %3460 = vmatprep.subr.mxu0 0.0
    %3461 = vmatpush1.msra.mxu0 0.0
    %3462 = vmatprep.subr.mxu0 0.0
    %3463 = vmatpush1.msra.mxu0 0.0
    %3464 = vmatprep.subr.mxu0 0.0
    %3465 = vmatpush1.msra.mxu0 0.0
    %3466 = vmatprep.subr.mxu0 0.0
    %3467 = vmatpush1.msra.mxu0 0.0
    %3468 = vmatprep.subr.mxu0 0.0
    %3469 = vmatpush1.msra.mxu0 0.0
    %3470 = vmatprep.subr.mxu0 0.0
    %3471 = vmatpush1.msra.mxu0 0.0
    %3472 = vmatprep.subr.mxu0 0.0
    %3473 = vmatpush1.msra.mxu0 0.0
    %3474 = vmatprep.subr.mxu0 0.0
    %3475 = vmatpush1.msra.mxu0 0.0
    %3476 = vmatprep.subr.mxu0 0.0
    %3477 = vmatpush1.msra.mxu0 0.0
    %3478 = vmatprep.subr.mxu0 0.0
    %3479 = vmatpush1.msra.mxu0 0.0
    %3480 = vmatprep.subr.mxu0 0.0
    %3481 = vmatpush1.msra.mxu0 0.0
    %3482 = vmatprep.subr.mxu0 0.0
    %3483 = vmatpush1.msra.mxu0 0.0
    %3484 = vmatprep.subr.mxu0 0.0
    %3485 = vmatpush1.msra.mxu0 0.0
    %3486 = vmatprep.subr.mxu0 0.0
    %3487 = vmatpush1.msra.mxu0 0.0
    %3488 = vmatprep.subr.mxu0 0.0
    %3489 = vmatpush1.msra.mxu0 0.0
    %3490 = vmatprep.subr.mxu0 0.0
    %3491 = vmatpush1.msra.mxu0 0.0
    %3492 = vmatprep.subr.mxu0 0.0
    %3493 = vmatpush1.msra.mxu0 0.0
    %3494 = vmatprep.subr.mxu0 0.0
    %3495 = vmatpush1.msra.mxu0 0.0
    %3496 = vmatprep.subr.mxu0 0.0
    %3497 = vmatpush1.msra.mxu0 0.0
    %3498 = vmatprep.mubr.f32.mxu0 0.0
    %3499 = vmatmul.mubr.f32.gmra.mrb[0].mxu0 %v3432
    %v3500 = vpop.f32.mrb[0].mxu0
    %v3501 = vadd.f32 0.0, %v3500
    %v3502 = vpop.f32.mrb[0].mxu0
    %3503 = vdwg.mxu0
    %v3505 = vsel %vm1977, %v2982, 0
    %3507 = vmatprep.subr.mxu0 0.0
    %3508 = vmatpush1.msra.mxu0 %v3280
    %3509 = vmatprep.subr.mxu0 0.0
    %3510 = vmatpush1.msra.mxu0 0.0
    %3511 = vmatprep.subr.mxu0 0.0
    %3512 = vmatpush1.msra.mxu0 0.0
    %3513 = vmatprep.subr.mxu0 0.0
    %3514 = vmatpush1.msra.mxu0 0.0
    %3515 = vmatprep.subr.mxu0 0.0
    %3516 = vmatpush1.msra.mxu0 0.0
    %3517 = vmatprep.subr.mxu0 0.0
    %3518 = vmatpush1.msra.mxu0 0.0
    %3519 = vmatprep.subr.mxu0 0.0
    %3520 = vmatpush1.msra.mxu0 0.0
    %3521 = vmatprep.subr.mxu0 0.0
    %3522 = vmatpush1.msra.mxu0 0.0
    %3523 = vmatprep.subr.mxu0 0.0
    %3524 = vmatpush1.msra.mxu0 0.0
    %3525 = vmatprep.subr.mxu0 0.0
    %3526 = vmatpush1.msra.mxu0 0.0
    %3527 = vmatprep.subr.mxu0 0.0
    %3528 = vmatpush1.msra.mxu0 0.0
    %3529 = vmatprep.subr.mxu0 0.0
    %3530 = vmatpush1.msra.mxu0 0.0
    %3531 = vmatprep.subr.mxu0 0.0
    %3532 = vmatpush1.msra.mxu0 0.0
    %3533 = vmatprep.subr.mxu0 0.0
    %3534 = vmatpush1.msra.mxu0 0.0
    %3535 = vmatprep.subr.mxu0 0.0
    %3536 = vmatpush1.msra.mxu0 0.0
    %3537 = vmatprep.subr.mxu0 0.0
    %3538 = vmatpush1.msra.mxu0 0.0
    %3539 = vmatprep.subr.mxu0 0.0
    %3540 = vmatpush1.msra.mxu0 0.0
    %3541 = vmatprep.subr.mxu0 0.0
    %3542 = vmatpush1.msra.mxu0 0.0
    %3543 = vmatprep.subr.mxu0 0.0
    %3544 = vmatpush1.msra.mxu0 0.0
    %3545 = vmatprep.subr.mxu0 0.0
    %3546 = vmatpush1.msra.mxu0 0.0
    %3547 = vmatprep.subr.mxu0 0.0
    %3548 = vmatpush1.msra.mxu0 0.0
    %3549 = vmatprep.subr.mxu0 0.0
    %3550 = vmatpush1.msra.mxu0 0.0
    %3551 = vmatprep.subr.mxu0 0.0
    %3552 = vmatpush1.msra.mxu0 0.0
    %3553 = vmatprep.subr.mxu0 0.0
    %3554 = vmatpush1.msra.mxu0 0.0
    %3555 = vmatprep.subr.mxu0 0.0
    %3556 = vmatpush1.msra.mxu0 0.0
    %3557 = vmatprep.subr.mxu0 0.0
    %3558 = vmatpush1.msra.mxu0 0.0
    %3559 = vmatprep.subr.mxu0 0.0
    %3560 = vmatpush1.msra.mxu0 0.0
    %3561 = vmatprep.subr.mxu0 0.0
    %3562 = vmatpush1.msra.mxu0 0.0
    %3563 = vmatprep.subr.mxu0 0.0
    %3564 = vmatpush1.msra.mxu0 0.0
    %3565 = vmatprep.subr.mxu0 0.0
    %3566 = vmatpush1.msra.mxu0 0.0
    %3567 = vmatprep.subr.mxu0 0.0
    %3568 = vmatpush1.msra.mxu0 0.0
    %3569 = vmatprep.subr.mxu0 0.0
    %3570 = vmatpush1.msra.mxu0 0.0
    %3571 = vmatprep.mubr.f32.mxu0 0.0
    %3572 = vmatmul.mubr.f32.gmra.mrb[0].mxu0 %v3505
    %v3573 = vpop.f32.mrb[0].mxu0
    %v3574 = vadd.f32 0.0, %v3573
    %v3575 = vpop.f32.mrb[0].mxu0
    %3576 = vdwg.mxu0
    %v3578 = vsel %vm1977, %v3055, 0
    %3580 = vmatprep.subr.mxu0 0.0
    %3581 = vmatpush1.msra.mxu0 %v3281
    %3582 = vmatprep.subr.mxu0 0.0
    %3583 = vmatpush1.msra.mxu0 0.0
    %3584 = vmatprep.subr.mxu0 0.0
    %3585 = vmatpush1.msra.mxu0 0.0
    %3586 = vmatprep.subr.mxu0 0.0
    %3587 = vmatpush1.msra.mxu0 0.0
    %3588 = vmatprep.subr.mxu0 0.0
    %3589 = vmatpush1.msra.mxu0 0.0
    %3590 = vmatprep.subr.mxu0 0.0
    %3591 = vmatpush1.msra.mxu0 0.0
    %3592 = vmatprep.subr.mxu0 0.0
    %3593 = vmatpush1.msra.mxu0 0.0
    %3594 = vmatprep.subr.mxu0 0.0
    %3595 = vmatpush1.msra.mxu0 0.0
    %3596 = vmatprep.subr.mxu0 0.0
    %3597 = vmatpush1.msra.mxu0 0.0
    %3598 = vmatprep.subr.mxu0 0.0
    %3599 = vmatpush1.msra.mxu0 0.0
    %3600 = vmatprep.subr.mxu0 0.0
    %3601 = vmatpush1.msra.mxu0 0.0
    %3602 = vmatprep.subr.mxu0 0.0
    %3603 = vmatpush1.msra.mxu0 0.0
    %3604 = vmatprep.subr.mxu0 0.0
    %3605 = vmatpush1.msra.mxu0 0.0
    %3606 = vmatprep.subr.mxu0 0.0
    %3607 = vmatpush1.msra.mxu0 0.0
    %3608 = vmatprep.subr.mxu0 0.0
    %3609 = vmatpush1.msra.mxu0 0.0
    %3610 = vmatprep.subr.mxu0 0.0
    %3611 = vmatpush1.msra.mxu0 0.0
    %3612 = vmatprep.subr.mxu0 0.0
    %3613 = vmatpush1.msra.mxu0 0.0
    %3614 = vmatprep.subr.mxu0 0.0
    %3615 = vmatpush1.msra.mxu0 0.0
    %3616 = vmatprep.subr.mxu0 0.0
    %3617 = vmatpush1.msra.mxu0 0.0
    %3618 = vmatprep.subr.mxu0 0.0
    %3619 = vmatpush1.msra.mxu0 0.0
    %3620 = vmatprep.subr.mxu0 0.0
    %3621 = vmatpush1.msra.mxu0 0.0
    %3622 = vmatprep.subr.mxu0 0.0
    %3623 = vmatpush1.msra.mxu0 0.0
    %3624 = vmatprep.subr.mxu0 0.0
    %3625 = vmatpush1.msra.mxu0 0.0
    %3626 = vmatprep.subr.mxu0 0.0
    %3627 = vmatpush1.msra.mxu0 0.0
    %3628 = vmatprep.subr.mxu0 0.0
    %3629 = vmatpush1.msra.mxu0 0.0
    %3630 = vmatprep.subr.mxu0 0.0
    %3631 = vmatpush1.msra.mxu0 0.0
    %3632 = vmatprep.subr.mxu0 0.0
    %3633 = vmatpush1.msra.mxu0 0.0
    %3634 = vmatprep.subr.mxu0 0.0
    %3635 = vmatpush1.msra.mxu0 0.0
    %3636 = vmatprep.subr.mxu0 0.0
    %3637 = vmatpush1.msra.mxu0 0.0
    %3638 = vmatprep.subr.mxu0 0.0
    %3639 = vmatpush1.msra.mxu0 0.0
    %3640 = vmatprep.subr.mxu0 0.0
    %3641 = vmatpush1.msra.mxu0 0.0
    %3642 = vmatprep.subr.mxu0 0.0
    %3643 = vmatpush1.msra.mxu0 0.0
    %3644 = vmatprep.mubr.f32.mxu0 0.0
    %3645 = vmatmul.mubr.f32.gmra.mrb[0].mxu0 %v3578
    %v3646 = vpop.f32.mrb[0].mxu0
    %v3647 = vadd.f32 0.0, %v3646
    %v3648 = vpop.f32.mrb[0].mxu0
    %3649 = vdwg.mxu0
    %v3651 = vsel %vm1977, %v3128, 0
    %3653 = vmatprep.subr.mxu0 0.0
    %3654 = vmatpush1.msra.mxu0 %v3282
    %3655 = vmatprep.subr.mxu0 0.0
    %3656 = vmatpush1.msra.mxu0 0.0
    %3657 = vmatprep.subr.mxu0 0.0
    %3658 = vmatpush1.msra.mxu0 0.0
    %3659 = vmatprep.subr.mxu0 0.0
    %3660 = vmatpush1.msra.mxu0 0.0
    %3661 = vmatprep.subr.mxu0 0.0
    %3662 = vmatpush1.msra.mxu0 0.0
    %3663 = vmatprep.subr.mxu0 0.0
    %3664 = vmatpush1.msra.mxu0 0.0
    %3665 = vmatprep.subr.mxu0 0.0
    %3666 = vmatpush1.msra.mxu0 0.0
    %3667 = vmatprep.subr.mxu0 0.0
    %3668 = vmatpush1.msra.mxu0 0.0
    %3669 = vmatprep.subr.mxu0 0.0
    %3670 = vmatpush1.msra.mxu0 0.0
    %3671 = vmatprep.subr.mxu0 0.0
    %3672 = vmatpush1.msra.mxu0 0.0
    %3673 = vmatprep.subr.mxu0 0.0
    %3674 = vmatpush1.msra.mxu0 0.0
    %3675 = vmatprep.subr.mxu0 0.0
    %3676 = vmatpush1.msra.mxu0 0.0
    %3677 = vmatprep.subr.mxu0 0.0
    %3678 = vmatpush1.msra.mxu0 0.0
    %3679 = vmatprep.subr.mxu0 0.0
    %3680 = vmatpush1.msra.mxu0 0.0
    %3681 = vmatprep.subr.mxu0 0.0
    %3682 = vmatpush1.msra.mxu0 0.0
    %3683 = vmatprep.subr.mxu0 0.0
    %3684 = vmatpush1.msra.mxu0 0.0
    %3685 = vmatprep.subr.mxu0 0.0
    %3686 = vmatpush1.msra.mxu0 0.0
    %3687 = vmatprep.subr.mxu0 0.0
    %3688 = vmatpush1.msra.mxu0 0.0
    %3689 = vmatprep.subr.mxu0 0.0
    %3690 = vmatpush1.msra.mxu0 0.0
    %3691 = vmatprep.subr.mxu0 0.0
    %3692 = vmatpush1.msra.mxu0 0.0
    %3693 = vmatprep.subr.mxu0 0.0
    %3694 = vmatpush1.msra.mxu0 0.0
    %3695 = vmatprep.subr.mxu0 0.0
    %3696 = vmatpush1.msra.mxu0 0.0
    %3697 = vmatprep.subr.mxu0 0.0
    %3698 = vmatpush1.msra.mxu0 0.0
    %3699 = vmatprep.subr.mxu0 0.0
    %3700 = vmatpush1.msra.mxu0 0.0
    %3701 = vmatprep.subr.mxu0 0.0
    %3702 = vmatpush1.msra.mxu0 0.0
    %3703 = vmatprep.subr.mxu0 0.0
    %3704 = vmatpush1.msra.mxu0 0.0
    %3705 = vmatprep.subr.mxu0 0.0
    %3706 = vmatpush1.msra.mxu0 0.0
    %3707 = vmatprep.subr.mxu0 0.0
    %3708 = vmatpush1.msra.mxu0 0.0
    %3709 = vmatprep.subr.mxu0 0.0
    %3710 = vmatpush1.msra.mxu0 0.0
    %3711 = vmatprep.subr.mxu0 0.0
    %3712 = vmatpush1.msra.mxu0 0.0
    %3713 = vmatprep.subr.mxu0 0.0
    %3714 = vmatpush1.msra.mxu0 0.0
    %3715 = vmatprep.subr.mxu0 0.0
    %3716 = vmatpush1.msra.mxu0 0.0
    %3717 = vmatprep.mubr.f32.mxu0 0.0
    %3718 = vmatmul.mubr.f32.gmra.mrb[0].mxu0 %v3651
    %v3719 = vpop.f32.mrb[0].mxu0
    %v3720 = vadd.f32 0.0, %v3719
    %v3721 = vpop.f32.mrb[0].mxu0
    %3722 = vdwg.mxu0
    %v3724 = vsel %vm1977, %v3201, 0
    %3726 = vmatprep.subr.mxu0 0.0
    %3727 = vmatpush1.msra.mxu0 %v3283
    %3728 = vmatprep.subr.mxu0 0.0
    %3729 = vmatpush1.msra.mxu0 0.0
    %3730 = vmatprep.subr.mxu0 0.0
    %3731 = vmatpush1.msra.mxu0 0.0
    %3732 = vmatprep.subr.mxu0 0.0
    %3733 = vmatpush1.msra.mxu0 0.0
    %3734 = vmatprep.subr.mxu0 0.0
    %3735 = vmatpush1.msra.mxu0 0.0
    %3736 = vmatprep.subr.mxu0 0.0
    %3737 = vmatpush1.msra.mxu0 0.0
    %3738 = vmatprep.subr.mxu0 0.0
    %3739 = vmatpush1.msra.mxu0 0.0
    %3740 = vmatprep.subr.mxu0 0.0
    %3741 = vmatpush1.msra.mxu0 0.0
    %3742 = vmatprep.subr.mxu0 0.0
    %3743 = vmatpush1.msra.mxu0 0.0
    %3744 = vmatprep.subr.mxu0 0.0
    %3745 = vmatpush1.msra.mxu0 0.0
    %3746 = vmatprep.subr.mxu0 0.0
    %3747 = vmatpush1.msra.mxu0 0.0
    %3748 = vmatprep.subr.mxu0 0.0
    %3749 = vmatpush1.msra.mxu0 0.0
    %3750 = vmatprep.subr.mxu0 0.0
    %3751 = vmatpush1.msra.mxu0 0.0
    %3752 = vmatprep.subr.mxu0 0.0
    %3753 = vmatpush1.msra.mxu0 0.0
    %3754 = vmatprep.subr.mxu0 0.0
    %3755 = vmatpush1.msra.mxu0 0.0
    %3756 = vmatprep.subr.mxu0 0.0
    %3757 = vmatpush1.msra.mxu0 0.0
    %3758 = vmatprep.subr.mxu0 0.0
    %3759 = vmatpush1.msra.mxu0 0.0
    %3760 = vmatprep.subr.mxu0 0.0
    %3761 = vmatpush1.msra.mxu0 0.0
    %3762 = vmatprep.subr.mxu0 0.0
    %3763 = vmatpush1.msra.mxu0 0.0
    %3764 = vmatprep.subr.mxu0 0.0
    %3765 = vmatpush1.msra.mxu0 0.0
    %3766 = vmatprep.subr.mxu0 0.0
    %3767 = vmatpush1.msra.mxu0 0.0
    %3768 = vmatprep.subr.mxu0 0.0
    %3769 = vmatpush1.msra.mxu0 0.0
    %3770 = vmatprep.subr.mxu0 0.0
    %3771 = vmatpush1.msra.mxu0 0.0
    %3772 = vmatprep.subr.mxu0 0.0
    %3773 = vmatpush1.msra.mxu0 0.0
    %3774 = vmatprep.subr.mxu0 0.0
    %3775 = vmatpush1.msra.mxu0 0.0
    %3776 = vmatprep.subr.mxu0 0.0
    %3777 = vmatpush1.msra.mxu0 0.0
    %3778 = vmatprep.subr.mxu0 0.0
    %3779 = vmatpush1.msra.mxu0 0.0
    %3780 = vmatprep.subr.mxu0 0.0
    %3781 = vmatpush1.msra.mxu0 0.0
    %3782 = vmatprep.subr.mxu0 0.0
    %3783 = vmatpush1.msra.mxu0 0.0
    %3784 = vmatprep.subr.mxu0 0.0
    %3785 = vmatpush1.msra.mxu0 0.0
    %3786 = vmatprep.subr.mxu0 0.0
    %3787 = vmatpush1.msra.mxu0 0.0
    %3788 = vmatprep.subr.mxu0 0.0
    %3789 = vmatpush1.msra.mxu0 0.0
    %3790 = vmatprep.mubr.f32.mxu0 0.0
    %3791 = vmatmul.mubr.f32.gmra.mrb[0].mxu0 %v3724
    %v3792 = vpop.f32.mrb[0].mxu0
    %v3793 = vadd.f32 0.0, %v3792
    %v3794 = vpop.f32.mrb[0].mxu0
    %3795 = vdwg.mxu0
    %v3797 = vsel %vm1977, %v3274, 0
    %3799 = vmatprep.subr.mxu0 0.0
    %3800 = vmatpush1.msra.mxu0 %v3284
    %3801 = vmatprep.subr.mxu0 0.0
    %3802 = vmatpush1.msra.mxu0 0.0
    %3803 = vmatprep.subr.mxu0 0.0
    %3804 = vmatpush1.msra.mxu0 0.0
    %3805 = vmatprep.subr.mxu0 0.0
    %3806 = vmatpush1.msra.mxu0 0.0
    %3807 = vmatprep.subr.mxu0 0.0
    %3808 = vmatpush1.msra.mxu0 0.0
    %3809 = vmatprep.subr.mxu0 0.0
    %3810 = vmatpush1.msra.mxu0 0.0
    %3811 = vmatprep.subr.mxu0 0.0
    %3812 = vmatpush1.msra.mxu0 0.0
    %3813 = vmatprep.subr.mxu0 0.0
    %3814 = vmatpush1.msra.mxu0 0.0
    %3815 = vmatprep.subr.mxu0 0.0
    %3816 = vmatpush1.msra.mxu0 0.0
    %3817 = vmatprep.subr.mxu0 0.0
    %3818 = vmatpush1.msra.mxu0 0.0
    %3819 = vmatprep.subr.mxu0 0.0
    %3820 = vmatpush1.msra.mxu0 0.0
    %3821 = vmatprep.subr.mxu0 0.0
    %3822 = vmatpush1.msra.mxu0 0.0
    %3823 = vmatprep.subr.mxu0 0.0
    %3824 = vmatpush1.msra.mxu0 0.0
    %3825 = vmatprep.subr.mxu0 0.0
    %3826 = vmatpush1.msra.mxu0 0.0
    %3827 = vmatprep.subr.mxu0 0.0
    %3828 = vmatpush1.msra.mxu0 0.0
    %3829 = vmatprep.subr.mxu0 0.0
    %3830 = vmatpush1.msra.mxu0 0.0
    %3831 = vmatprep.subr.mxu0 0.0
    %3832 = vmatpush1.msra.mxu0 0.0
    %3833 = vmatprep.subr.mxu0 0.0
    %3834 = vmatpush1.msra.mxu0 0.0
    %3835 = vmatprep.subr.mxu0 0.0
    %3836 = vmatpush1.msra.mxu0 0.0
    %3837 = vmatprep.subr.mxu0 0.0
    %3838 = vmatpush1.msra.mxu0 0.0
    %3839 = vmatprep.subr.mxu0 0.0
    %3840 = vmatpush1.msra.mxu0 0.0
    %3841 = vmatprep.subr.mxu0 0.0
    %3842 = vmatpush1.msra.mxu0 0.0
    %3843 = vmatprep.subr.mxu0 0.0
    %3844 = vmatpush1.msra.mxu0 0.0
    %3845 = vmatprep.subr.mxu0 0.0
    %3846 = vmatpush1.msra.mxu0 0.0
    %3847 = vmatprep.subr.mxu0 0.0
    %3848 = vmatpush1.msra.mxu0 0.0
    %3849 = vmatprep.subr.mxu0 0.0
    %3850 = vmatpush1.msra.mxu0 0.0
    %3851 = vmatprep.subr.mxu0 0.0
    %3852 = vmatpush1.msra.mxu0 0.0
    %3853 = vmatprep.subr.mxu0 0.0
    %3854 = vmatpush1.msra.mxu0 0.0
    %3855 = vmatprep.subr.mxu0 0.0
    %3856 = vmatpush1.msra.mxu0 0.0
    %3857 = vmatprep.subr.mxu0 0.0
    %3858 = vmatpush1.msra.mxu0 0.0
    %3859 = vmatprep.subr.mxu0 0.0
    %3860 = vmatpush1.msra.mxu0 0.0
    %3861 = vmatprep.subr.mxu0 0.0
    %3862 = vmatpush1.msra.mxu0 0.0
    %3863 = vmatprep.mubr.f32.mxu0 0.0
    %3864 = vmatmul.mubr.f32.gmra.mrb[0].mxu0 %v3797
    %v3865 = vpop.f32.mrb[0].mxu0
    %v3866 = vadd.f32 0.0, %v3865
    %v3867 = vpop.f32.mrb[0].mxu0
    %3868 = vdwg.mxu0
    %v3869 = vsel %vm290, %v3355, 0.0
    %v3870 = vsel %vm290, %v3501, 0.0
    %v3871 = vadd.f32 %v3869, %v3870
    %v3872 = vsel %vm290, %v3647, 0.0
    %v3873 = vadd.f32 %v3871, %v3872
    %v3874 = vsel %vm290, %v3793, 0.0
    %v3875 = vadd.f32 %v3873, %v3874
    %v3876 = vsel %vm290, %v3428, 0.0
    %v3877 = vsel %vm290, %v3574, 0.0
    %v3878 = vadd.f32 %v3876, %v3877
    %v3879 = vsel %vm290, %v3720, 0.0
    %v3880 = vadd.f32 %v3878, %v3879
    %v3881 = vsel %vm290, %v3866, 0.0
    %v3882 = vadd.f32 %v3880, %v3881
    %v3883 = vld [vmem:[%s4] sm:$0x1]
    %v3885 = vlaneseq
    %v3886 = vshrl.u32 %v3885, 7
    %v3887 = vsub.s32 0, %v3886
    %v3888 = vrot.slane %v3883, %v3887
    %v3890 = vadd.f32 %v3875, %v3888
    %v3891 = vadd.f32 %v3882, %v3888
    %3892 = vst.msk [vmem:[#allocation2] sm:$0xff] %vm290, %v3890
    %3893 = vst.msk [vmem:[#allocation2 + $0x8] sm:$0xff] %vm290, %v3891
    // Predicated region
    $region26: #{tpu_custom_call.1} parent=1 // pred_check
      _
    $region27: #{tpu_custom_call.1} parent=1 // pred_check_branch
      %3895 = sbr.rel (0) target = $region29
    $region28: #{tpu_custom_call.1} parent=1 // pred_region
      %s3897 = ssub.s32 256, 256
      %3898 = vsyncadd [#allocation3], %s3897
      %s3899 = sshll.u32 [#allocation2], 4
      %s3900 = int_to_ptr.vmem [resolvable:$true] %s3899
      %3905 = dma.vmem_to_hbm [thread:$0]  %s3900, 256, %s6, [#allocation3], 128, 128, 8
    $region29: #{tpu_custom_call.1} parent=1 // pred_fallthru
      _
    // Predicated region
    $region30: #{tpu_custom_call.1} parent=1 // pred_check
      _
    $region31: #{tpu_custom_call.1} parent=1 // pred_check_branch
      %3907 = sbr.rel (0) target = $region33
    $region32: #{tpu_custom_call.1} parent=1 // pred_region
      %3908 = dma.done [#allocation3], 256
    $region33: #{tpu_custom_call.1} parent=1 // pred_fallthru
      _
    %3909 = vsyncpa [#allocation3], 1

</llo_original>
